<compile_context>
chip_gen: v6e
topology: v6e:2x2x1
jax: 0.10.0
libtpu: 0.0.40
codegen_flags: <defaults>
</compile_context>

<pallas_src>
from itertools import groupby

import numpy as np
import jax
import jax.numpy as jnp
from jax import lax
from jax.experimental import pallas as pl
from jax.experimental.pallas import tpu as pltpu

VOCAB = "0123456789"
NUM_CLASSES = len(VOCAB) + 1     # +1 for CTC blank
RNN_UNITS = 32

N_PAD = 8          # fp32 sublane granularity — batch rows padded to this
GATE_LANES = 128   # each 2H gate group lane-padded to a full vreg width
STATE_LANES = 128  # fused [h_fwd | h_bwd | 0...] state lane width
C_PAD = 128        # lane-dense padded classifier width


def _round_up(x, m):
    return ((x + m - 1) // m) * m


def _vmem():
    return pl.BlockSpec(memory_space=pltpu.MemorySpace.VMEM)


# ----------------------------- fused kernel -----------------------------

def _crnn_kernel(a_ref, wc_ref, bc_ref,
                 w0p_ref, w0q_ref, whh0_ref, b0_ref,
                 w1p_ref, w1q_ref, whh1_ref, b1_ref,
                 wlp_ref, wlq_ref, bl_ref,
                 o_ref):
    """Whole CRNN forward, all operands VMEM-resident.

    a_ref   : (T*N_PAD, K_pad)        im2col patches, rows ordered (t, n)
    wc_ref  : (K_pad, STATE_LANES)    "fat" conv weight (cols 0..C*Hout-1 live)
    w?p/w?q : (STATE_LANES, 4*G)      packed input->gate weights (P: fwd-time
                                      stream, Q: bwd-time stream), g-cols x2
    whh?    : (STATE_LANES, 4*G)      block-diag hidden->gate weights, g-cols x2
    b?      : (1, 4*G)                packed b_ih + b_hh, g-cols x2
    wlp/wlq : (STATE_LANES, C_PAD)    packed classifier weights, lane-padded
    o_ref   : (T*N_PAD, C_PAD)        lane-dense padded logits, rows (t, n)
    """
    TN = o_ref.shape[0]
    T = TN // N_PAD
    G = GATE_LANES
    SL = STATE_LANES

    def mm(a, b):
        return jnp.dot(a, b, preferred_element_type=jnp.float32)

    # ---- feature extractor: Conv2d(3x3, s=2, p=1) + ReLU as one lane-dense
    #      matmul whose output is already the (t, n)-ordered sequence layout.
    feat = jnp.maximum(mm(a_ref[...], wc_ref[...]) + bc_ref[...], 0.0)  # (T*NP, SL)

    # ---- one fused bidirectional LSTM layer ----
    def bilstm(x_all, wp_ref, wq_ref, whh_ref, b_ref):
        whh = whh_ref[...]
        # Hoisted input projections for ALL timesteps, both directions.
        ga = mm(x_all, wp_ref[...]) + b_ref[...]     # forward-time stream (+bias)
        gb = mm(x_all, wq_ref[...])                  # backward-time stream
        h = jnp.zeros((N_PAD, SL), jnp.float32)      # [h_fwd | h_bwd | 0]
        c = jnp.zeros((N_PAD, SL), jnp.float32)
        hs = []
        # Statically unrolled recurrence (T is small and static); per step one
        # (8,128)x(128,512) matmul, one slab tanh, one tanh(c), pure-VPU rest.
        for s in range(T):
            rf = s * N_PAD                 # forward direction consumes time s
            rb = (T - 1 - s) * N_PAD       # backward direction consumes T-1-s
            gates = ga[rf:rf + N_PAD, :] + gb[rb:rb + N_PAD, :] + mm(h, whh)
            t = jnp.tanh(0.5 * gates)                  # single EUP slab
            i = 0.5 * t[:, 0 * G:1 * G] + 0.5          # sigmoid via affine
            f = 0.5 * t[:, 1 * G:2 * G] + 0.5
            o = 0.5 * t[:, 2 * G:3 * G] + 0.5
            g = t[:, 3 * G:4 * G]                      # g-cols pre-scaled by 2
            c = f * c + i * g
            h = o * jnp.tanh(c)
            hs.append(h)    # hs[s] = [h_fwd(s) | h_bwd(T-1-s) | 0]
        return hs

    h0 = bilstm(feat, w0p_ref, w0q_ref, whh0_ref, b0_ref)
    h1 = bilstm(jnp.concatenate(h0, axis=0), w1p_ref, w1q_ref, whh1_ref, b1_ref)

    # ---- classifier: two bulk matmuls over the step-ordered / reverse-ordered
    #      state stacks and ONE unmasked lane-dense store.
    sa = jnp.concatenate(h1, axis=0)           # block t = [h1_fwd(t) | h1_bwd(T-1-t)]
    sb = jnp.concatenate(h1[::-1], axis=0)     # block t = [h1_fwd(T-1-t) | h1_bwd(t)]
    o_ref[...] = mm(sa, wlp_ref[...]) + mm(sb, wlq_ref[...]) + bl_ref[...]


# ----------------------------- host-side glue -----------------------------

def _im2col_columns(x):
    """(N, Cin, H, W) -> (Wout*N, Cin*(H+2)*3) patch matrix, rows ordered (w, n).

    Each row holds the full padded-height, 3-wide column window needed by all
    output rows of that output column (the per-output-row selection is folded
    into the packed conv weight)."""
    N, Cin, H, W = x.shape
    Wout = (W + 2 - 3) // 2 + 1
    xp = jnp.pad(x, ((0, 0), (0, 0), (1, 1), (1, 1)))
    cols = [xp[:, :, :, kw:kw + 2 * (Wout - 1) + 1:2] for kw in range(3)]
    p = jnp.stack(cols, axis=-1)                  # (N, Cin, H+2, Wout, 3)
    p = p.transpose(3, 0, 1, 2, 4)                # (Wout, N, Cin, H+2, 3)
    return p.reshape(Wout * N, Cin * (H + 2) * 3)


def crnn_forward(x, pp):
    """Returns logits of shape (N, T, len(vocab)+1), matching CRNN.forward out_map."""
    n = x.shape[0]
    assert n <= N_PAD, "add a batch grid for larger batches (see TODO at top)"
    a = _im2col_columns(x)                        # (T*n, Kc), rows ordered (t, n)
    t = a.shape[0] // n
    kc = a.shape[1]
    k_pad = pp["wc"].shape[0]
    # Sublane-pad batch (n -> N_PAD) and lane-pad K (kc -> k_pad); padded rows
    # never mix with real ones (all ops are row-independent across batch).
    a = a.reshape(t, n, kc)
    a = jnp.pad(a, ((0, 0), (0, N_PAD - n), (0, k_pad - kc)))
    a = a.reshape(t * N_PAD, k_pad)

    out = pl.pallas_call(
        _crnn_kernel,
        out_shape=jax.ShapeDtypeStruct((t * N_PAD, C_PAD), jnp.float32),
        in_specs=[_vmem()] * 14,
        out_specs=_vmem(),
    )(a, pp["wc"], pp["bc"],
      pp["w0p"], pp["w0q"], pp["whh0"], pp["b0"],
      pp["w1p"], pp["w1q"], pp["whh1"], pp["b1"],
      pp["wlp"], pp["wlq"], pp["bl"])

    out = out.reshape(t, N_PAD, C_PAD)
    # TODO(synk): emit the (N, T, C) layout directly from the kernel to drop this copy.
    return out[:, :n, :NUM_CLASSES].transpose(1, 0, 2)   # (N, T, C)


# ----------------------------- parameter init & packing -----------------------------

def init_raw_params(key, cin=4, cout=8, lstm_features=64, rnn_units=RNN_UNITS):
    keys = jax.random.split(key, 16)
    ki = iter(keys)

    # Conv: kaiming_normal_(mode='fan_out', nonlinearity='relu'), bias zero
    fan_out = cout * 3 * 3
    conv_w = jax.random.normal(next(ki), (cout, cin, 3, 3), jnp.float32) * (2.0 / fan_out) ** 0.5
    conv_b = jnp.zeros((cout,), jnp.float32)

    def lstm_dir_params(k, input_size, hidden):
        k1, k2, k3, k4 = jax.random.split(k, 4)
        bound = 1.0 / (hidden ** 0.5)
        u = lambda kk, shape: jax.random.uniform(kk, shape, jnp.float32, -bound, bound)
        return (u(k1, (4 * hidden, input_size)),   # w_ih   (torch gate order i,f,g,o)
                u(k2, (4 * hidden, hidden)),       # w_hh
                u(k3, (4 * hidden,)),              # b_ih
                u(k4, (4 * hidden,)))              # b_hh

    lstm = []
    in_sz = lstm_features
    for _ in range(2):
        fwd = lstm_dir_params(next(ki), in_sz, rnn_units)
        bwd = lstm_dir_params(next(ki), in_sz, rnn_units)
        lstm.append({"fwd": fwd, "bwd": bwd})
        in_sz = 2 * rnn_units

    bound = 1.0 / ((2 * rnn_units) ** 0.5)
    lin_w = jax.random.uniform(next(ki), (NUM_CLASSES, 2 * rnn_units), jnp.float32, -bound, bound)
    lin_b = jax.random.uniform(next(ki), (NUM_CLASSES,), jnp.float32, -bound, bound)

    return {"conv_w": conv_w, "conv_b": conv_b, "lstm": lstm,
            "lin_w": lin_w, "lin_b": lin_b}


def pack_params(raw, img_h, rnn_units=RNN_UNITS):
    """One-time host-side packing of all weights into lane-dense kernel layouts."""
    Hp = img_h + 2
    Hout = (img_h + 2 - 3) // 2 + 1
    conv_w = np.asarray(raw["conv_w"], np.float32)
    conv_b = np.asarray(raw["conv_b"], np.float32)
    Cout, Cin, KH, KW = conv_w.shape

    Kc = Cin * Hp * KW
    K_pad = _round_up(Kc, 128)            # 216 -> 256: clean MXU K-passes
    D = Cout * Hout
    H = rnn_units
    G = GATE_LANES
    assert D <= STATE_LANES and 2 * H <= G and NUM_CLASSES <= C_PAD

    # "Fat" conv weight: output column d = c*Hout + h (matches torch's
    # reshape(features, (N, C*H, W)) flattening); rows indexed (cin, ih, kw).
    wc = np.zeros((K_pad, STATE_LANES), np.float32)
    for c in range(Cout):
        for h in range(Hout):
            for ci in range(Cin):
                for kh in range(KH):
                    ih = 2 * h + kh                      # padded input row
                    for kw in range(KW):
                        wc[ci * Hp * KW + ih * KW + kw, c * Hout + h] = conv_w[c, ci, kh, kw]
    bc = np.zeros((1, STATE_LANES), np.float32)
    bc[0, :D] = np.repeat(conv_b, Hout)

    # torch gate order (i,f,g,o) -> packed gate group order (i,f,o,g);
    # each group occupies a full 128-lane vreg: [fwd H | bwd H | zeros].
    GG = {0: 0, 1: 1, 3: 2, 2: 3}

    def cols(k, d):
        s = GG[k] * G + d * H
        return slice(s, s + H)

    def pack_layer(p_fwd, p_bwd, first):
        w_ih_f, w_hh_f, b_ih_f, b_hh_f = [np.asarray(t, np.float32) for t in p_fwd]
        w_ih_b, w_hh_b, b_ih_b, b_hh_b = [np.asarray(t, np.float32) for t in p_bwd]
        whh = np.zeros((STATE_LANES, 4 * G), np.float32)   # block-diag, both dirs
        bias = np.zeros((1, 4 * G), np.float32)
        wp = np.zeros((STATE_LANES, 4 * G), np.float32)    # forward-time input stream
        wq = np.zeros((STATE_LANES, 4 * G), np.float32)    # backward-time input stream
        for k in range(4):
            r = slice(k * H, (k + 1) * H)
            whh[0:H, cols(k, 0)] = w_hh_f[r, :].T
            whh[H:2 * H, cols(k, 1)] = w_hh_b[r, :].T
            bias[0, cols(k, 0)] = b_ih_f[r] + b_hh_f[r]
            bias[0, cols(k, 1)] = b_ih_b[r] + b_hh_b[r]
            if first:
                # layer 0: raw features feed both directions (time-shifted via Q)
                din = w_ih_f.shape[1]
                wp[0:din, cols(k, 0)] = w_ih_f[r, :].T
                wq[0:din, cols(k, 1)] = w_ih_b[r, :].T
            else:
                # layer 1 consumes the fused state of layer 0:
                #   state(s) = [h0_fwd(s) | h0_bwd(T-1-s)]
                wp[0:H, cols(k, 0)] = w_ih_f[r, 0:H].T          # h0_fwd(s)      -> fwd gates
                wp[H:2 * H, cols(k, 1)] = w_ih_b[r, H:2 * H].T  # h0_bwd(T-1-s)  -> bwd gates
                wq[0:H, cols(k, 1)] = w_ih_b[r, 0:H].T          # h0_fwd(T-1-s)  -> bwd gates
                wq[H:2 * H, cols(k, 0)] = w_ih_f[r, H:2 * H].T  # h0_bwd(s)      -> fwd gates
        # Pre-scale the g-gate group by 2 so the kernel's single tanh(0.5*gates)
        # slab yields tanh(v) on g lanes and sigmoid(v) (via 0.5*t+0.5) elsewhere.
        gsl = slice(GG[2] * G, (GG[2] + 1) * G)
        for m in (wp, wq, whh):
            m[:, gsl] *= 2.0
        bias[:, gsl] *= 2.0
        return wp, wq, whh, bias

    w0p, w0q, whh0, b0 = pack_layer(raw["lstm"][0]["fwd"], raw["lstm"][0]["bwd"], True)
    w1p, w1q, whh1, b1 = pack_layer(raw["lstm"][1]["fwd"], raw["lstm"][1]["bwd"], False)

    # Classifier, packed against the fused-state layout and lane-padded to 128.
    lin_w = np.asarray(raw["lin_w"], np.float32)
    lin_b = np.asarray(raw["lin_b"], np.float32)
    wlp = np.zeros((STATE_LANES, C_PAD), np.float32)
    wlq = np.zeros((STATE_LANES, C_PAD), np.float32)
    wlp[0:H, 0:NUM_CLASSES] = lin_w[:, 0:H].T          # uses h1_fwd(t) from state(t)
    wlq[H:2 * H, 0:NUM_CLASSES] = lin_w[:, H:2 * H].T  # uses h1_bwd(t) from state(T-1-t)
    bl = np.zeros((1, C_PAD), np.float32)
    bl[0, 0:NUM_CLASSES] = lin_b

    packed = dict(wc=wc, bc=bc, w0p=w0p, w0q=w0q, whh0=whh0, b0=b0,
                  w1p=w1p, w1q=w1q, whh1=whh1, b1=b1, wlp=wlp, wlq=wlq, bl=bl)
    return {k: jnp.asarray(v) for k, v in packed.items()}


# ----------------------------- plain-JAX reference (correctness check) -----------------------------

def reference_forward(x, raw):
    feats = lax.conv_general_dilated(x, raw["conv_w"], (2, 2), [(1, 1), (1, 1)],
                                     dimension_numbers=("NCHW", "OIHW", "NCHW"))
    feats = jnp.maximum(feats + raw["conv_b"][None, :, None, None], 0.0)
    n, c, h, w = feats.shape
    seq = feats.reshape(n, c * h, w).transpose(0, 2, 1)        # (N, T, D)
    xs = seq.transpose(1, 0, 2)                                # (T, N, D)

    def lstm_dir(inp, params, reverse):
        w_ih, w_hh, b_ih, b_hh = params
        H = w_hh.shape[1]
        order = range(inp.shape[0] - 1, -1, -1) if reverse else range(inp.shape[0])
        hh = jnp.zeros((inp.shape[1], H), jnp.float32)
        cc = jnp.zeros((inp.shape[1], H), jnp.float32)
        outs = [None] * inp.shape[0]
        for t in order:
            g = inp[t] @ w_ih.T + hh @ w_hh.T + b_ih + b_hh
            i = jax.nn.sigmoid(g[:, 0 * H:1 * H])
            f = jax.nn.sigmoid(g[:, 1 * H:2 * H])
            gg = jnp.tanh(g[:, 2 * H:3 * H])
            o = jax.nn.sigmoid(g[:, 3 * H:4 * H])
            cc = f * cc + i * gg
            hh = o * jnp.tanh(cc)
            outs[t] = hh
        return jnp.stack(outs, axis=0)

    for layer in raw["lstm"]:
        xs = jnp.concatenate([lstm_dir(xs, layer["fwd"], False),
                              lstm_dir(xs, layer["bwd"], True)], axis=-1)
    dec = xs.transpose(1, 0, 2)                                # (N, T, 2H)
    return dec @ raw["lin_w"].T + raw["lin_b"]


# ----------------------------- CTC post-processing -----------------------------

def ctc_best_path_decode(logits):
    """CTCPostProcessor.ctc_best_path numeric part in JAX; string collapse host-side."""
    probs = jax.nn.softmax(logits, axis=-1)
    best_path = jnp.argmax(probs, axis=-1)        # (N, T)
    seq_probs = jnp.min(jnp.max(probs, axis=-1), axis=1)
    blank = len(VOCAB)
    # TODO(synk): itertools.groupby string collapse has no Pallas equivalent; done on host.
    words = []
    for seq in jax.device_get(best_path):
        collapsed = [VOCAB[k] for k, _ in groupby(seq.tolist()) if k != blank]
        words.append("".join(collapsed))
    return list(zip(words, jax.device_get(seq_probs).tolist()))


# ----------------------------- main -----------------------------

if __name__ == "__main__":
    key = jax.random.PRNGKey(0)
    kx, kp = jax.random.split(key)

    # x: (N=2, C=4, H=16, W=16) NCHW.  Conv(s=2) -> features (2, 8, 8, 8),
    # so lstm_features = H*C = 64 and sequence length T = W = 8.
    x = jax.random.normal(kx, (2, 4, 16, 16), jnp.float32)
    raw = init_raw_params(kp, cin=4, cout=8, lstm_features=64, rnn_units=RNN_UNITS)
    packed = pack_params(raw, img_h=16, rnn_units=RNN_UNITS)

    logits = jax.block_until_ready(jax.jit(crnn_forward)(x, packed))
    assert logits.shape == (2, 8, NUM_CLASSES), logits.shape

    # correctness check against a straightforward JAX implementation
    # (tolerance stays loose to cover MXU default-precision f32 matmuls and the
    #  sigmoid-as-tanh identity's different rounding)
    ref = jax.block_until_ready(jax.jit(reference_forward)(x, raw))
    max_err = float(jnp.max(jnp.abs(logits - ref)))
    assert max_err < 2e-2, f"kernel/reference mismatch: max abs err = {max_err}"

    out = {"out_map": logits, "preds": ctc_best_path_decode(logits)}
    assert len(out["preds"]) == 2

    print("KERNEL_OK")
</pallas_src>

<mosaic_0001>
module attributes {stable_mosaic.version = 11 : i64} {
  func.func @_crnn_kernel(%arg0: memref<64x256xf32, #tpu.memory_space<vmem>>, %arg1: memref<256x128xf32, #tpu.memory_space<vmem>>, %arg2: memref<1x128xf32, #tpu.memory_space<vmem>>, %arg3: memref<128x512xf32, #tpu.memory_space<vmem>>, %arg4: memref<128x512xf32, #tpu.memory_space<vmem>>, %arg5: memref<128x512xf32, #tpu.memory_space<vmem>>, %arg6: memref<1x512xf32, #tpu.memory_space<vmem>>, %arg7: memref<128x512xf32, #tpu.memory_space<vmem>>, %arg8: memref<128x512xf32, #tpu.memory_space<vmem>>, %arg9: memref<128x512xf32, #tpu.memory_space<vmem>>, %arg10: memref<1x512xf32, #tpu.memory_space<vmem>>, %arg11: memref<128x128xf32, #tpu.memory_space<vmem>>, %arg12: memref<128x128xf32, #tpu.memory_space<vmem>>, %arg13: memref<1x128xf32, #tpu.memory_space<vmem>>, %arg14: memref<64x128xf32, #tpu.memory_space<vmem>>) attributes {dimension_semantics = [], scalar_prefetch = 0 : i64, scratch_operands = 0 : i64, tpu.core_type = #tpu.core_type<tc>} {
    %c0 = arith.constant 0 : index
    %c0_0 = arith.constant 0 : index
    %0 = vector.load %arg0[%c0, %c0_0] : memref<64x256xf32, #tpu.memory_space<vmem>>, vector<64x256xf32>
    %c0_1 = arith.constant 0 : index
    %c0_2 = arith.constant 0 : index
    %1 = vector.load %arg1[%c0_1, %c0_2] : memref<256x128xf32, #tpu.memory_space<vmem>>, vector<256x128xf32>
    %cst = arith.constant dense<0.000000e+00> : vector<64x128xf32>
    %2 = tpu.matmul %0, %1, %cst {dimension_numbers = #tpu.dot_dimension_numbers<[1], [0], [0], [1], [0, 0, 1, 1], [], []>} : vector<64x256xf32>, vector<256x128xf32>, vector<64x128xf32> -> vector<64x128xf32>
    %c0_3 = arith.constant 0 : index
    %c0_4 = arith.constant 0 : index
    %3 = vector.load %arg2[%c0_3, %c0_4] : memref<1x128xf32, #tpu.memory_space<vmem>>, vector<1x128xf32>
    %4 = vector.broadcast %3 : vector<1x128xf32> to vector<64x128xf32>
    %5 = arith.addf %2, %4 : vector<64x128xf32>
    %cst_5 = arith.constant 0.000000e+00 : f32
    %6 = vector.broadcast %cst_5 : f32 to vector<64x128xf32>
    %7 = arith.maximumf %5, %6 : vector<64x128xf32>
    %c0_6 = arith.constant 0 : index
    %c0_7 = arith.constant 0 : index
    %8 = vector.load %arg5[%c0_6, %c0_7] : memref<128x512xf32, #tpu.memory_space<vmem>>, vector<128x512xf32>
    %c0_8 = arith.constant 0 : index
    %c0_9 = arith.constant 0 : index
    %9 = vector.load %arg3[%c0_8, %c0_9] : memref<128x512xf32, #tpu.memory_space<vmem>>, vector<128x512xf32>
    %cst_10 = arith.constant dense<0.000000e+00> : vector<64x512xf32>
    %10 = tpu.matmul %7, %9, %cst_10 {dimension_numbers = #tpu.dot_dimension_numbers<[1], [0], [0], [1], [0, 0, 1, 1], [], []>} : vector<64x128xf32>, vector<128x512xf32>, vector<64x512xf32> -> vector<64x512xf32>
    %c0_11 = arith.constant 0 : index
    %c0_12 = arith.constant 0 : index
    %11 = vector.load %arg6[%c0_11, %c0_12] : memref<1x512xf32, #tpu.memory_space<vmem>>, vector<1x512xf32>
    %12 = vector.broadcast %11 : vector<1x512xf32> to vector<64x512xf32>
    %13 = arith.addf %10, %12 : vector<64x512xf32>
    %c0_13 = arith.constant 0 : index
    %c0_14 = arith.constant 0 : index
    %14 = vector.load %arg4[%c0_13, %c0_14] : memref<128x512xf32, #tpu.memory_space<vmem>>, vector<128x512xf32>
    %cst_15 = arith.constant dense<0.000000e+00> : vector<64x512xf32>
    %15 = tpu.matmul %7, %14, %cst_15 {dimension_numbers = #tpu.dot_dimension_numbers<[1], [0], [0], [1], [0, 0, 1, 1], [], []>} : vector<64x128xf32>, vector<128x512xf32>, vector<64x512xf32> -> vector<64x512xf32>
    %cst_16 = arith.constant 0.000000e+00 : f32
    %16 = vector.broadcast %cst_16 : f32 to vector<8x128xf32>
    %cst_17 = arith.constant 0.000000e+00 : f32
    %17 = vector.broadcast %cst_17 : f32 to vector<8x128xf32>
    %18 = vector.extract_strided_slice %13 {offsets = [0, 0], sizes = [8, 512], strides = [1, 1]} : vector<64x512xf32> to vector<8x512xf32>
    %19 = vector.extract_strided_slice %15 {offsets = [56, 0], sizes = [8, 512], strides = [1, 1]} : vector<64x512xf32> to vector<8x512xf32>
    %20 = arith.addf %18, %19 : vector<8x512xf32>
    %cst_18 = arith.constant dense<0.000000e+00> : vector<8x512xf32>
    %21 = tpu.matmul %16, %8, %cst_18 {dimension_numbers = #tpu.dot_dimension_numbers<[1], [0], [0], [1], [0, 0, 1, 1], [], []>} : vector<8x128xf32>, vector<128x512xf32>, vector<8x512xf32> -> vector<8x512xf32>
    %22 = arith.addf %20, %21 : vector<8x512xf32>
    %cst_19 = arith.constant 5.000000e-01 : f32
    %23 = vector.broadcast %cst_19 : f32 to vector<8x512xf32>
    %24 = arith.mulf %23, %22 : vector<8x512xf32>
    %25 = math.tanh %24 : vector<8x512xf32>
    %26 = vector.extract_strided_slice %25 {offsets = [0, 0], sizes = [8, 128], strides = [1, 1]} : vector<8x512xf32> to vector<8x128xf32>
    %cst_20 = arith.constant 5.000000e-01 : f32
    %27 = vector.broadcast %cst_20 : f32 to vector<8x128xf32>
    %28 = arith.mulf %27, %26 : vector<8x128xf32>
    %cst_21 = arith.constant 5.000000e-01 : f32
    %29 = vector.broadcast %cst_21 : f32 to vector<8x128xf32>
    %30 = arith.addf %28, %29 : vector<8x128xf32>
    %31 = vector.extract_strided_slice %25 {offsets = [0, 128], sizes = [8, 128], strides = [1, 1]} : vector<8x512xf32> to vector<8x128xf32>
    %cst_22 = arith.constant 5.000000e-01 : f32
    %32 = vector.broadcast %cst_22 : f32 to vector<8x128xf32>
    %33 = arith.mulf %32, %31 : vector<8x128xf32>
    %cst_23 = arith.constant 5.000000e-01 : f32
    %34 = vector.broadcast %cst_23 : f32 to vector<8x128xf32>
    %35 = arith.addf %33, %34 : vector<8x128xf32>
    %36 = vector.extract_strided_slice %25 {offsets = [0, 256], sizes = [8, 128], strides = [1, 1]} : vector<8x512xf32> to vector<8x128xf32>
    %cst_24 = arith.constant 5.000000e-01 : f32
    %37 = vector.broadcast %cst_24 : f32 to vector<8x128xf32>
    %38 = arith.mulf %37, %36 : vector<8x128xf32>
    %cst_25 = arith.constant 5.000000e-01 : f32
    %39 = vector.broadcast %cst_25 : f32 to vector<8x128xf32>
    %40 = arith.addf %38, %39 : vector<8x128xf32>
    %41 = vector.extract_strided_slice %25 {offsets = [0, 384], sizes = [8, 128], strides = [1, 1]} : vector<8x512xf32> to vector<8x128xf32>
    %42 = arith.mulf %35, %17 : vector<8x128xf32>
    %43 = arith.mulf %30, %41 : vector<8x128xf32>
    %44 = arith.addf %42, %43 : vector<8x128xf32>
    %45 = math.tanh %44 : vector<8x128xf32>
    %46 = arith.mulf %40, %45 : vector<8x128xf32>
    %47 = vector.extract_strided_slice %13 {offsets = [8, 0], sizes = [8, 512], strides = [1, 1]} : vector<64x512xf32> to vector<8x512xf32>
    %48 = vector.extract_strided_slice %15 {offsets = [48, 0], sizes = [8, 512], strides = [1, 1]} : vector<64x512xf32> to vector<8x512xf32>
    %49 = arith.addf %47, %48 : vector<8x512xf32>
    %cst_26 = arith.constant dense<0.000000e+00> : vector<8x512xf32>
    %50 = tpu.matmul %46, %8, %cst_26 {dimension_numbers = #tpu.dot_dimension_numbers<[1], [0], [0], [1], [0, 0, 1, 1], [], []>} : vector<8x128xf32>, vector<128x512xf32>, vector<8x512xf32> -> vector<8x512xf32>
    %51 = arith.addf %49, %50 : vector<8x512xf32>
    %cst_27 = arith.constant 5.000000e-01 : f32
    %52 = vector.broadcast %cst_27 : f32 to vector<8x512xf32>
    %53 = arith.mulf %52, %51 : vector<8x512xf32>
    %54 = math.tanh %53 : vector<8x512xf32>
    %55 = vector.extract_strided_slice %54 {offsets = [0, 0], sizes = [8, 128], strides = [1, 1]} : vector<8x512xf32> to vector<8x128xf32>
    %cst_28 = arith.constant 5.000000e-01 : f32
    %56 = vector.broadcast %cst_28 : f32 to vector<8x128xf32>
    %57 = arith.mulf %56, %55 : vector<8x128xf32>
    %cst_29 = arith.constant 5.000000e-01 : f32
    %58 = vector.broadcast %cst_29 : f32 to vector<8x128xf32>
    %59 = arith.addf %57, %58 : vector<8x128xf32>
    %60 = vector.extract_strided_slice %54 {offsets = [0, 128], sizes = [8, 128], strides = [1, 1]} : vector<8x512xf32> to vector<8x128xf32>
    %cst_30 = arith.constant 5.000000e-01 : f32
    %61 = vector.broadcast %cst_30 : f32 to vector<8x128xf32>
    %62 = arith.mulf %61, %60 : vector<8x128xf32>
    %cst_31 = arith.constant 5.000000e-01 : f32
    %63 = vector.broadcast %cst_31 : f32 to vector<8x128xf32>
    %64 = arith.addf %62, %63 : vector<8x128xf32>
    %65 = vector.extract_strided_slice %54 {offsets = [0, 256], sizes = [8, 128], strides = [1, 1]} : vector<8x512xf32> to vector<8x128xf32>
    %cst_32 = arith.constant 5.000000e-01 : f32
    %66 = vector.broadcast %cst_32 : f32 to vector<8x128xf32>
    %67 = arith.mulf %66, %65 : vector<8x128xf32>
    %cst_33 = arith.constant 5.000000e-01 : f32
    %68 = vector.broadcast %cst_33 : f32 to vector<8x128xf32>
    %69 = arith.addf %67, %68 : vector<8x128xf32>
    %70 = vector.extract_strided_slice %54 {offsets = [0, 384], sizes = [8, 128], strides = [1, 1]} : vector<8x512xf32> to vector<8x128xf32>
    %71 = arith.mulf %64, %44 : vector<8x128xf32>
    %72 = arith.mulf %59, %70 : vector<8x128xf32>
    %73 = arith.addf %71, %72 : vector<8x128xf32>
    %74 = math.tanh %73 : vector<8x128xf32>
    %75 = arith.mulf %69, %74 : vector<8x128xf32>
    %76 = vector.extract_strided_slice %13 {offsets = [16, 0], sizes = [8, 512], strides = [1, 1]} : vector<64x512xf32> to vector<8x512xf32>
    %77 = vector.extract_strided_slice %15 {offsets = [40, 0], sizes = [8, 512], strides = [1, 1]} : vector<64x512xf32> to vector<8x512xf32>
    %78 = arith.addf %76, %77 : vector<8x512xf32>
    %cst_34 = arith.constant dense<0.000000e+00> : vector<8x512xf32>
    %79 = tpu.matmul %75, %8, %cst_34 {dimension_numbers = #tpu.dot_dimension_numbers<[1], [0], [0], [1], [0, 0, 1, 1], [], []>} : vector<8x128xf32>, vector<128x512xf32>, vector<8x512xf32> -> vector<8x512xf32>
    %80 = arith.addf %78, %79 : vector<8x512xf32>
    %cst_35 = arith.constant 5.000000e-01 : f32
    %81 = vector.broadcast %cst_35 : f32 to vector<8x512xf32>
    %82 = arith.mulf %81, %80 : vector<8x512xf32>
    %83 = math.tanh %82 : vector<8x512xf32>
    %84 = vector.extract_strided_slice %83 {offsets = [0, 0], sizes = [8, 128], strides = [1, 1]} : vector<8x512xf32> to vector<8x128xf32>
    %cst_36 = arith.constant 5.000000e-01 : f32
    %85 = vector.broadcast %cst_36 : f32 to vector<8x128xf32>
    %86 = arith.mulf %85, %84 : vector<8x128xf32>
    %cst_37 = arith.constant 5.000000e-01 : f32
    %87 = vector.broadcast %cst_37 : f32 to vector<8x128xf32>
    %88 = arith.addf %86, %87 : vector<8x128xf32>
    %89 = vector.extract_strided_slice %83 {offsets = [0, 128], sizes = [8, 128], strides = [1, 1]} : vector<8x512xf32> to vector<8x128xf32>
    %cst_38 = arith.constant 5.000000e-01 : f32
    %90 = vector.broadcast %cst_38 : f32 to vector<8x128xf32>
    %91 = arith.mulf %90, %89 : vector<8x128xf32>
    %cst_39 = arith.constant 5.000000e-01 : f32
    %92 = vector.broadcast %cst_39 : f32 to vector<8x128xf32>
    %93 = arith.addf %91, %92 : vector<8x128xf32>
    %94 = vector.extract_strided_slice %83 {offsets = [0, 256], sizes = [8, 128], strides = [1, 1]} : vector<8x512xf32> to vector<8x128xf32>
    %cst_40 = arith.constant 5.000000e-01 : f32
    %95 = vector.broadcast %cst_40 : f32 to vector<8x128xf32>
    %96 = arith.mulf %95, %94 : vector<8x128xf32>
    %cst_41 = arith.constant 5.000000e-01 : f32
    %97 = vector.broadcast %cst_41 : f32 to vector<8x128xf32>
    %98 = arith.addf %96, %97 : vector<8x128xf32>
    %99 = vector.extract_strided_slice %83 {offsets = [0, 384], sizes = [8, 128], strides = [1, 1]} : vector<8x512xf32> to vector<8x128xf32>
    %100 = arith.mulf %93, %73 : vector<8x128xf32>
    %101 = arith.mulf %88, %99 : vector<8x128xf32>
    %102 = arith.addf %100, %101 : vector<8x128xf32>
    %103 = math.tanh %102 : vector<8x128xf32>
    %104 = arith.mulf %98, %103 : vector<8x128xf32>
    %105 = vector.extract_strided_slice %13 {offsets = [24, 0], sizes = [8, 512], strides = [1, 1]} : vector<64x512xf32> to vector<8x512xf32>
    %106 = vector.extract_strided_slice %15 {offsets = [32, 0], sizes = [8, 512], strides = [1, 1]} : vector<64x512xf32> to vector<8x512xf32>
    %107 = arith.addf %105, %106 : vector<8x512xf32>
    %cst_42 = arith.constant dense<0.000000e+00> : vector<8x512xf32>
    %108 = tpu.matmul %104, %8, %cst_42 {dimension_numbers = #tpu.dot_dimension_numbers<[1], [0], [0], [1], [0, 0, 1, 1], [], []>} : vector<8x128xf32>, vector<128x512xf32>, vector<8x512xf32> -> vector<8x512xf32>
    %109 = arith.addf %107, %108 : vector<8x512xf32>
    %cst_43 = arith.constant 5.000000e-01 : f32
    %110 = vector.broadcast %cst_43 : f32 to vector<8x512xf32>
    %111 = arith.mulf %110, %109 : vector<8x512xf32>
    %112 = math.tanh %111 : vector<8x512xf32>
    %113 = vector.extract_strided_slice %112 {offsets = [0, 0], sizes = [8, 128], strides = [1, 1]} : vector<8x512xf32> to vector<8x128xf32>
    %cst_44 = arith.constant 5.000000e-01 : f32
    %114 = vector.broadcast %cst_44 : f32 to vector<8x128xf32>
    %115 = arith.mulf %114, %113 : vector<8x128xf32>
    %cst_45 = arith.constant 5.000000e-01 : f32
    %116 = vector.broadcast %cst_45 : f32 to vector<8x128xf32>
    %117 = arith.addf %115, %116 : vector<8x128xf32>
    %118 = vector.extract_strided_slice %112 {offsets = [0, 128], sizes = [8, 128], strides = [1, 1]} : vector<8x512xf32> to vector<8x128xf32>
    %cst_46 = arith.constant 5.000000e-01 : f32
    %119 = vector.broadcast %cst_46 : f32 to vector<8x128xf32>
    %120 = arith.mulf %119, %118 : vector<8x128xf32>
    %cst_47 = arith.constant 5.000000e-01 : f32
    %121 = vector.broadcast %cst_47 : f32 to vector<8x128xf32>
    %122 = arith.addf %120, %121 : vector<8x128xf32>
    %123 = vector.extract_strided_slice %112 {offsets = [0, 256], sizes = [8, 128], strides = [1, 1]} : vector<8x512xf32> to vector<8x128xf32>
    %cst_48 = arith.constant 5.000000e-01 : f32
    %124 = vector.broadcast %cst_48 : f32 to vector<8x128xf32>
    %125 = arith.mulf %124, %123 : vector<8x128xf32>
    %cst_49 = arith.constant 5.000000e-01 : f32
    %126 = vector.broadcast %cst_49 : f32 to vector<8x128xf32>
    %127 = arith.addf %125, %126 : vector<8x128xf32>
    %128 = vector.extract_strided_slice %112 {offsets = [0, 384], sizes = [8, 128], strides = [1, 1]} : vector<8x512xf32> to vector<8x128xf32>
    %129 = arith.mulf %122, %102 : vector<8x128xf32>
    %130 = arith.mulf %117, %128 : vector<8x128xf32>
    %131 = arith.addf %129, %130 : vector<8x128xf32>
    %132 = math.tanh %131 : vector<8x128xf32>
    %133 = arith.mulf %127, %132 : vector<8x128xf32>
    %134 = vector.extract_strided_slice %13 {offsets = [32, 0], sizes = [8, 512], strides = [1, 1]} : vector<64x512xf32> to vector<8x512xf32>
    %135 = vector.extract_strided_slice %15 {offsets = [24, 0], sizes = [8, 512], strides = [1, 1]} : vector<64x512xf32> to vector<8x512xf32>
    %136 = arith.addf %134, %135 : vector<8x512xf32>
    %cst_50 = arith.constant dense<0.000000e+00> : vector<8x512xf32>
    %137 = tpu.matmul %133, %8, %cst_50 {dimension_numbers = #tpu.dot_dimension_numbers<[1], [0], [0], [1], [0, 0, 1, 1], [], []>} : vector<8x128xf32>, vector<128x512xf32>, vector<8x512xf32> -> vector<8x512xf32>
    %138 = arith.addf %136, %137 : vector<8x512xf32>
    %cst_51 = arith.constant 5.000000e-01 : f32
    %139 = vector.broadcast %cst_51 : f32 to vector<8x512xf32>
    %140 = arith.mulf %139, %138 : vector<8x512xf32>
    %141 = math.tanh %140 : vector<8x512xf32>
    %142 = vector.extract_strided_slice %141 {offsets = [0, 0], sizes = [8, 128], strides = [1, 1]} : vector<8x512xf32> to vector<8x128xf32>
    %cst_52 = arith.constant 5.000000e-01 : f32
    %143 = vector.broadcast %cst_52 : f32 to vector<8x128xf32>
    %144 = arith.mulf %143, %142 : vector<8x128xf32>
    %cst_53 = arith.constant 5.000000e-01 : f32
    %145 = vector.broadcast %cst_53 : f32 to vector<8x128xf32>
    %146 = arith.addf %144, %145 : vector<8x128xf32>
    %147 = vector.extract_strided_slice %141 {offsets = [0, 128], sizes = [8, 128], strides = [1, 1]} : vector<8x512xf32> to vector<8x128xf32>
    %cst_54 = arith.constant 5.000000e-01 : f32
    %148 = vector.broadcast %cst_54 : f32 to vector<8x128xf32>
    %149 = arith.mulf %148, %147 : vector<8x128xf32>
    %cst_55 = arith.constant 5.000000e-01 : f32
    %150 = vector.broadcast %cst_55 : f32 to vector<8x128xf32>
    %151 = arith.addf %149, %150 : vector<8x128xf32>
    %152 = vector.extract_strided_slice %141 {offsets = [0, 256], sizes = [8, 128], strides = [1, 1]} : vector<8x512xf32> to vector<8x128xf32>
    %cst_56 = arith.constant 5.000000e-01 : f32
    %153 = vector.broadcast %cst_56 : f32 to vector<8x128xf32>
    %154 = arith.mulf %153, %152 : vector<8x128xf32>
    %cst_57 = arith.constant 5.000000e-01 : f32
    %155 = vector.broadcast %cst_57 : f32 to vector<8x128xf32>
    %156 = arith.addf %154, %155 : vector<8x128xf32>
    %157 = vector.extract_strided_slice %141 {offsets = [0, 384], sizes = [8, 128], strides = [1, 1]} : vector<8x512xf32> to vector<8x128xf32>
    %158 = arith.mulf %151, %131 : vector<8x128xf32>
    %159 = arith.mulf %146, %157 : vector<8x128xf32>
    %160 = arith.addf %158, %159 : vector<8x128xf32>
    %161 = math.tanh %160 : vector<8x128xf32>
    %162 = arith.mulf %156, %161 : vector<8x128xf32>
    %163 = vector.extract_strided_slice %13 {offsets = [40, 0], sizes = [8, 512], strides = [1, 1]} : vector<64x512xf32> to vector<8x512xf32>
    %164 = vector.extract_strided_slice %15 {offsets = [16, 0], sizes = [8, 512], strides = [1, 1]} : vector<64x512xf32> to vector<8x512xf32>
    %165 = arith.addf %163, %164 : vector<8x512xf32>
    %cst_58 = arith.constant dense<0.000000e+00> : vector<8x512xf32>
    %166 = tpu.matmul %162, %8, %cst_58 {dimension_numbers = #tpu.dot_dimension_numbers<[1], [0], [0], [1], [0, 0, 1, 1], [], []>} : vector<8x128xf32>, vector<128x512xf32>, vector<8x512xf32> -> vector<8x512xf32>
    %167 = arith.addf %165, %166 : vector<8x512xf32>
    %cst_59 = arith.constant 5.000000e-01 : f32
    %168 = vector.broadcast %cst_59 : f32 to vector<8x512xf32>
    %169 = arith.mulf %168, %167 : vector<8x512xf32>
    %170 = math.tanh %169 : vector<8x512xf32>
    %171 = vector.extract_strided_slice %170 {offsets = [0, 0], sizes = [8, 128], strides = [1, 1]} : vector<8x512xf32> to vector<8x128xf32>
    %cst_60 = arith.constant 5.000000e-01 : f32
    %172 = vector.broadcast %cst_60 : f32 to vector<8x128xf32>
    %173 = arith.mulf %172, %171 : vector<8x128xf32>
    %cst_61 = arith.constant 5.000000e-01 : f32
    %174 = vector.broadcast %cst_61 : f32 to vector<8x128xf32>
    %175 = arith.addf %173, %174 : vector<8x128xf32>
    %176 = vector.extract_strided_slice %170 {offsets = [0, 128], sizes = [8, 128], strides = [1, 1]} : vector<8x512xf32> to vector<8x128xf32>
    %cst_62 = arith.constant 5.000000e-01 : f32
    %177 = vector.broadcast %cst_62 : f32 to vector<8x128xf32>
    %178 = arith.mulf %177, %176 : vector<8x128xf32>
    %cst_63 = arith.constant 5.000000e-01 : f32
    %179 = vector.broadcast %cst_63 : f32 to vector<8x128xf32>
    %180 = arith.addf %178, %179 : vector<8x128xf32>
    %181 = vector.extract_strided_slice %170 {offsets = [0, 256], sizes = [8, 128], strides = [1, 1]} : vector<8x512xf32> to vector<8x128xf32>
    %cst_64 = arith.constant 5.000000e-01 : f32
    %182 = vector.broadcast %cst_64 : f32 to vector<8x128xf32>
    %183 = arith.mulf %182, %181 : vector<8x128xf32>
    %cst_65 = arith.constant 5.000000e-01 : f32
    %184 = vector.broadcast %cst_65 : f32 to vector<8x128xf32>
    %185 = arith.addf %183, %184 : vector<8x128xf32>
    %186 = vector.extract_strided_slice %170 {offsets = [0, 384], sizes = [8, 128], strides = [1, 1]} : vector<8x512xf32> to vector<8x128xf32>
    %187 = arith.mulf %180, %160 : vector<8x128xf32>
    %188 = arith.mulf %175, %186 : vector<8x128xf32>
    %189 = arith.addf %187, %188 : vector<8x128xf32>
    %190 = math.tanh %189 : vector<8x128xf32>
    %191 = arith.mulf %185, %190 : vector<8x128xf32>
    %192 = vector.extract_strided_slice %13 {offsets = [48, 0], sizes = [8, 512], strides = [1, 1]} : vector<64x512xf32> to vector<8x512xf32>
    %193 = vector.extract_strided_slice %15 {offsets = [8, 0], sizes = [8, 512], strides = [1, 1]} : vector<64x512xf32> to vector<8x512xf32>
    %194 = arith.addf %192, %193 : vector<8x512xf32>
    %cst_66 = arith.constant dense<0.000000e+00> : vector<8x512xf32>
    %195 = tpu.matmul %191, %8, %cst_66 {dimension_numbers = #tpu.dot_dimension_numbers<[1], [0], [0], [1], [0, 0, 1, 1], [], []>} : vector<8x128xf32>, vector<128x512xf32>, vector<8x512xf32> -> vector<8x512xf32>
    %196 = arith.addf %194, %195 : vector<8x512xf32>
    %cst_67 = arith.constant 5.000000e-01 : f32
    %197 = vector.broadcast %cst_67 : f32 to vector<8x512xf32>
    %198 = arith.mulf %197, %196 : vector<8x512xf32>
    %199 = math.tanh %198 : vector<8x512xf32>
    %200 = vector.extract_strided_slice %199 {offsets = [0, 0], sizes = [8, 128], strides = [1, 1]} : vector<8x512xf32> to vector<8x128xf32>
    %cst_68 = arith.constant 5.000000e-01 : f32
    %201 = vector.broadcast %cst_68 : f32 to vector<8x128xf32>
    %202 = arith.mulf %201, %200 : vector<8x128xf32>
    %cst_69 = arith.constant 5.000000e-01 : f32
    %203 = vector.broadcast %cst_69 : f32 to vector<8x128xf32>
    %204 = arith.addf %202, %203 : vector<8x128xf32>
    %205 = vector.extract_strided_slice %199 {offsets = [0, 128], sizes = [8, 128], strides = [1, 1]} : vector<8x512xf32> to vector<8x128xf32>
    %cst_70 = arith.constant 5.000000e-01 : f32
    %206 = vector.broadcast %cst_70 : f32 to vector<8x128xf32>
    %207 = arith.mulf %206, %205 : vector<8x128xf32>
    %cst_71 = arith.constant 5.000000e-01 : f32
    %208 = vector.broadcast %cst_71 : f32 to vector<8x128xf32>
    %209 = arith.addf %207, %208 : vector<8x128xf32>
    %210 = vector.extract_strided_slice %199 {offsets = [0, 256], sizes = [8, 128], strides = [1, 1]} : vector<8x512xf32> to vector<8x128xf32>
    %cst_72 = arith.constant 5.000000e-01 : f32
    %211 = vector.broadcast %cst_72 : f32 to vector<8x128xf32>
    %212 = arith.mulf %211, %210 : vector<8x128xf32>
    %cst_73 = arith.constant 5.000000e-01 : f32
    %213 = vector.broadcast %cst_73 : f32 to vector<8x128xf32>
    %214 = arith.addf %212, %213 : vector<8x128xf32>
    %215 = vector.extract_strided_slice %199 {offsets = [0, 384], sizes = [8, 128], strides = [1, 1]} : vector<8x512xf32> to vector<8x128xf32>
    %216 = arith.mulf %209, %189 : vector<8x128xf32>
    %217 = arith.mulf %204, %215 : vector<8x128xf32>
    %218 = arith.addf %216, %217 : vector<8x128xf32>
    %219 = math.tanh %218 : vector<8x128xf32>
    %220 = arith.mulf %214, %219 : vector<8x128xf32>
    %221 = vector.extract_strided_slice %13 {offsets = [56, 0], sizes = [8, 512], strides = [1, 1]} : vector<64x512xf32> to vector<8x512xf32>
    %222 = vector.extract_strided_slice %15 {offsets = [0, 0], sizes = [8, 512], strides = [1, 1]} : vector<64x512xf32> to vector<8x512xf32>
    %223 = arith.addf %221, %222 : vector<8x512xf32>
    %cst_74 = arith.constant dense<0.000000e+00> : vector<8x512xf32>
    %224 = tpu.matmul %220, %8, %cst_74 {dimension_numbers = #tpu.dot_dimension_numbers<[1], [0], [0], [1], [0, 0, 1, 1], [], []>} : vector<8x128xf32>, vector<128x512xf32>, vector<8x512xf32> -> vector<8x512xf32>
    %225 = arith.addf %223, %224 : vector<8x512xf32>
    %cst_75 = arith.constant 5.000000e-01 : f32
    %226 = vector.broadcast %cst_75 : f32 to vector<8x512xf32>
    %227 = arith.mulf %226, %225 : vector<8x512xf32>
    %228 = math.tanh %227 : vector<8x512xf32>
    %229 = vector.extract_strided_slice %228 {offsets = [0, 0], sizes = [8, 128], strides = [1, 1]} : vector<8x512xf32> to vector<8x128xf32>
    %cst_76 = arith.constant 5.000000e-01 : f32
    %230 = vector.broadcast %cst_76 : f32 to vector<8x128xf32>
    %231 = arith.mulf %230, %229 : vector<8x128xf32>
    %cst_77 = arith.constant 5.000000e-01 : f32
    %232 = vector.broadcast %cst_77 : f32 to vector<8x128xf32>
    %233 = arith.addf %231, %232 : vector<8x128xf32>
    %234 = vector.extract_strided_slice %228 {offsets = [0, 128], sizes = [8, 128], strides = [1, 1]} : vector<8x512xf32> to vector<8x128xf32>
    %cst_78 = arith.constant 5.000000e-01 : f32
    %235 = vector.broadcast %cst_78 : f32 to vector<8x128xf32>
    %236 = arith.mulf %235, %234 : vector<8x128xf32>
    %cst_79 = arith.constant 5.000000e-01 : f32
    %237 = vector.broadcast %cst_79 : f32 to vector<8x128xf32>
    %238 = arith.addf %236, %237 : vector<8x128xf32>
    %239 = vector.extract_strided_slice %228 {offsets = [0, 256], sizes = [8, 128], strides = [1, 1]} : vector<8x512xf32> to vector<8x128xf32>
    %cst_80 = arith.constant 5.000000e-01 : f32
    %240 = vector.broadcast %cst_80 : f32 to vector<8x128xf32>
    %241 = arith.mulf %240, %239 : vector<8x128xf32>
    %cst_81 = arith.constant 5.000000e-01 : f32
    %242 = vector.broadcast %cst_81 : f32 to vector<8x128xf32>
    %243 = arith.addf %241, %242 : vector<8x128xf32>
    %244 = vector.extract_strided_slice %228 {offsets = [0, 384], sizes = [8, 128], strides = [1, 1]} : vector<8x512xf32> to vector<8x128xf32>
    %245 = arith.mulf %238, %218 : vector<8x128xf32>
    %246 = arith.mulf %233, %244 : vector<8x128xf32>
    %247 = arith.addf %245, %246 : vector<8x128xf32>
    %248 = math.tanh %247 : vector<8x128xf32>
    %249 = arith.mulf %243, %248 : vector<8x128xf32>
    %250 = tpu.concatenate %46, %75, %104, %133, %162, %191, %220, %249 in 0 : vector<8x128xf32>, vector<8x128xf32>, vector<8x128xf32>, vector<8x128xf32>, vector<8x128xf32>, vector<8x128xf32>, vector<8x128xf32>, vector<8x128xf32> -> vector<64x128xf32>
    %c0_82 = arith.constant 0 : index
    %c0_83 = arith.constant 0 : index
    %251 = vector.load %arg9[%c0_82, %c0_83] : memref<128x512xf32, #tpu.memory_space<vmem>>, vector<128x512xf32>
    %c0_84 = arith.constant 0 : index
    %c0_85 = arith.constant 0 : index
    %252 = vector.load %arg7[%c0_84, %c0_85] : memref<128x512xf32, #tpu.memory_space<vmem>>, vector<128x512xf32>
    %cst_86 = arith.constant dense<0.000000e+00> : vector<64x512xf32>
    %253 = tpu.matmul %250, %252, %cst_86 {dimension_numbers = #tpu.dot_dimension_numbers<[1], [0], [0], [1], [0, 0, 1, 1], [], []>} : vector<64x128xf32>, vector<128x512xf32>, vector<64x512xf32> -> vector<64x512xf32>
    %c0_87 = arith.constant 0 : index
    %c0_88 = arith.constant 0 : index
    %254 = vector.load %arg10[%c0_87, %c0_88] : memref<1x512xf32, #tpu.memory_space<vmem>>, vector<1x512xf32>
    %255 = vector.broadcast %254 : vector<1x512xf32> to vector<64x512xf32>
    %256 = arith.addf %253, %255 : vector<64x512xf32>
    %c0_89 = arith.constant 0 : index
    %c0_90 = arith.constant 0 : index
    %257 = vector.load %arg8[%c0_89, %c0_90] : memref<128x512xf32, #tpu.memory_space<vmem>>, vector<128x512xf32>
    %cst_91 = arith.constant dense<0.000000e+00> : vector<64x512xf32>
    %258 = tpu.matmul %250, %257, %cst_91 {dimension_numbers = #tpu.dot_dimension_numbers<[1], [0], [0], [1], [0, 0, 1, 1], [], []>} : vector<64x128xf32>, vector<128x512xf32>, vector<64x512xf32> -> vector<64x512xf32>
    %cst_92 = arith.constant 0.000000e+00 : f32
    %259 = vector.broadcast %cst_92 : f32 to vector<8x128xf32>
    %cst_93 = arith.constant 0.000000e+00 : f32
    %260 = vector.broadcast %cst_93 : f32 to vector<8x128xf32>
    %261 = vector.extract_strided_slice %256 {offsets = [0, 0], sizes = [8, 512], strides = [1, 1]} : vector<64x512xf32> to vector<8x512xf32>
    %262 = vector.extract_strided_slice %258 {offsets = [56, 0], sizes = [8, 512], strides = [1, 1]} : vector<64x512xf32> to vector<8x512xf32>
    %263 = arith.addf %261, %262 : vector<8x512xf32>
    %cst_94 = arith.constant dense<0.000000e+00> : vector<8x512xf32>
    %264 = tpu.matmul %259, %251, %cst_94 {dimension_numbers = #tpu.dot_dimension_numbers<[1], [0], [0], [1], [0, 0, 1, 1], [], []>} : vector<8x128xf32>, vector<128x512xf32>, vector<8x512xf32> -> vector<8x512xf32>
    %265 = arith.addf %263, %264 : vector<8x512xf32>
    %cst_95 = arith.constant 5.000000e-01 : f32
    %266 = vector.broadcast %cst_95 : f32 to vector<8x512xf32>
    %267 = arith.mulf %266, %265 : vector<8x512xf32>
    %268 = math.tanh %267 : vector<8x512xf32>
    %269 = vector.extract_strided_slice %268 {offsets = [0, 0], sizes = [8, 128], strides = [1, 1]} : vector<8x512xf32> to vector<8x128xf32>
    %cst_96 = arith.constant 5.000000e-01 : f32
    %270 = vector.broadcast %cst_96 : f32 to vector<8x128xf32>
    %271 = arith.mulf %270, %269 : vector<8x128xf32>
    %cst_97 = arith.constant 5.000000e-01 : f32
    %272 = vector.broadcast %cst_97 : f32 to vector<8x128xf32>
    %273 = arith.addf %271, %272 : vector<8x128xf32>
    %274 = vector.extract_strided_slice %268 {offsets = [0, 128], sizes = [8, 128], strides = [1, 1]} : vector<8x512xf32> to vector<8x128xf32>
    %cst_98 = arith.constant 5.000000e-01 : f32
    %275 = vector.broadcast %cst_98 : f32 to vector<8x128xf32>
    %276 = arith.mulf %275, %274 : vector<8x128xf32>
    %cst_99 = arith.constant 5.000000e-01 : f32
    %277 = vector.broadcast %cst_99 : f32 to vector<8x128xf32>
    %278 = arith.addf %276, %277 : vector<8x128xf32>
    %279 = vector.extract_strided_slice %268 {offsets = [0, 256], sizes = [8, 128], strides = [1, 1]} : vector<8x512xf32> to vector<8x128xf32>
    %cst_100 = arith.constant 5.000000e-01 : f32
    %280 = vector.broadcast %cst_100 : f32 to vector<8x128xf32>
    %281 = arith.mulf %280, %279 : vector<8x128xf32>
    %cst_101 = arith.constant 5.000000e-01 : f32
    %282 = vector.broadcast %cst_101 : f32 to vector<8x128xf32>
    %283 = arith.addf %281, %282 : vector<8x128xf32>
    %284 = vector.extract_strided_slice %268 {offsets = [0, 384], sizes = [8, 128], strides = [1, 1]} : vector<8x512xf32> to vector<8x128xf32>
    %285 = arith.mulf %278, %260 : vector<8x128xf32>
    %286 = arith.mulf %273, %284 : vector<8x128xf32>
    %287 = arith.addf %285, %286 : vector<8x128xf32>
    %288 = math.tanh %287 : vector<8x128xf32>
    %289 = arith.mulf %283, %288 : vector<8x128xf32>
    %290 = vector.extract_strided_slice %256 {offsets = [8, 0], sizes = [8, 512], strides = [1, 1]} : vector<64x512xf32> to vector<8x512xf32>
    %291 = vector.extract_strided_slice %258 {offsets = [48, 0], sizes = [8, 512], strides = [1, 1]} : vector<64x512xf32> to vector<8x512xf32>
    %292 = arith.addf %290, %291 : vector<8x512xf32>
    %cst_102 = arith.constant dense<0.000000e+00> : vector<8x512xf32>
    %293 = tpu.matmul %289, %251, %cst_102 {dimension_numbers = #tpu.dot_dimension_numbers<[1], [0], [0], [1], [0, 0, 1, 1], [], []>} : vector<8x128xf32>, vector<128x512xf32>, vector<8x512xf32> -> vector<8x512xf32>
    %294 = arith.addf %292, %293 : vector<8x512xf32>
    %cst_103 = arith.constant 5.000000e-01 : f32
    %295 = vector.broadcast %cst_103 : f32 to vector<8x512xf32>
    %296 = arith.mulf %295, %294 : vector<8x512xf32>
    %297 = math.tanh %296 : vector<8x512xf32>
    %298 = vector.extract_strided_slice %297 {offsets = [0, 0], sizes = [8, 128], strides = [1, 1]} : vector<8x512xf32> to vector<8x128xf32>
    %cst_104 = arith.constant 5.000000e-01 : f32
    %299 = vector.broadcast %cst_104 : f32 to vector<8x128xf32>
    %300 = arith.mulf %299, %298 : vector<8x128xf32>
    %cst_105 = arith.constant 5.000000e-01 : f32
    %301 = vector.broadcast %cst_105 : f32 to vector<8x128xf32>
    %302 = arith.addf %300, %301 : vector<8x128xf32>
    %303 = vector.extract_strided_slice %297 {offsets = [0, 128], sizes = [8, 128], strides = [1, 1]} : vector<8x512xf32> to vector<8x128xf32>
    %cst_106 = arith.constant 5.000000e-01 : f32
    %304 = vector.broadcast %cst_106 : f32 to vector<8x128xf32>
    %305 = arith.mulf %304, %303 : vector<8x128xf32>
    %cst_107 = arith.constant 5.000000e-01 : f32
    %306 = vector.broadcast %cst_107 : f32 to vector<8x128xf32>
    %307 = arith.addf %305, %306 : vector<8x128xf32>
    %308 = vector.extract_strided_slice %297 {offsets = [0, 256], sizes = [8, 128], strides = [1, 1]} : vector<8x512xf32> to vector<8x128xf32>
    %cst_108 = arith.constant 5.000000e-01 : f32
    %309 = vector.broadcast %cst_108 : f32 to vector<8x128xf32>
    %310 = arith.mulf %309, %308 : vector<8x128xf32>
    %cst_109 = arith.constant 5.000000e-01 : f32
    %311 = vector.broadcast %cst_109 : f32 to vector<8x128xf32>
    %312 = arith.addf %310, %311 : vector<8x128xf32>
    %313 = vector.extract_strided_slice %297 {offsets = [0, 384], sizes = [8, 128], strides = [1, 1]} : vector<8x512xf32> to vector<8x128xf32>
    %314 = arith.mulf %307, %287 : vector<8x128xf32>
    %315 = arith.mulf %302, %313 : vector<8x128xf32>
    %316 = arith.addf %314, %315 : vector<8x128xf32>
    %317 = math.tanh %316 : vector<8x128xf32>
    %318 = arith.mulf %312, %317 : vector<8x128xf32>
    %319 = vector.extract_strided_slice %256 {offsets = [16, 0], sizes = [8, 512], strides = [1, 1]} : vector<64x512xf32> to vector<8x512xf32>
    %320 = vector.extract_strided_slice %258 {offsets = [40, 0], sizes = [8, 512], strides = [1, 1]} : vector<64x512xf32> to vector<8x512xf32>
    %321 = arith.addf %319, %320 : vector<8x512xf32>
    %cst_110 = arith.constant dense<0.000000e+00> : vector<8x512xf32>
    %322 = tpu.matmul %318, %251, %cst_110 {dimension_numbers = #tpu.dot_dimension_numbers<[1], [0], [0], [1], [0, 0, 1, 1], [], []>} : vector<8x128xf32>, vector<128x512xf32>, vector<8x512xf32> -> vector<8x512xf32>
    %323 = arith.addf %321, %322 : vector<8x512xf32>
    %cst_111 = arith.constant 5.000000e-01 : f32
    %324 = vector.broadcast %cst_111 : f32 to vector<8x512xf32>
    %325 = arith.mulf %324, %323 : vector<8x512xf32>
    %326 = math.tanh %325 : vector<8x512xf32>
    %327 = vector.extract_strided_slice %326 {offsets = [0, 0], sizes = [8, 128], strides = [1, 1]} : vector<8x512xf32> to vector<8x128xf32>
    %cst_112 = arith.constant 5.000000e-01 : f32
    %328 = vector.broadcast %cst_112 : f32 to vector<8x128xf32>
    %329 = arith.mulf %328, %327 : vector<8x128xf32>
    %cst_113 = arith.constant 5.000000e-01 : f32
    %330 = vector.broadcast %cst_113 : f32 to vector<8x128xf32>
    %331 = arith.addf %329, %330 : vector<8x128xf32>
    %332 = vector.extract_strided_slice %326 {offsets = [0, 128], sizes = [8, 128], strides = [1, 1]} : vector<8x512xf32> to vector<8x128xf32>
    %cst_114 = arith.constant 5.000000e-01 : f32
    %333 = vector.broadcast %cst_114 : f32 to vector<8x128xf32>
    %334 = arith.mulf %333, %332 : vector<8x128xf32>
    %cst_115 = arith.constant 5.000000e-01 : f32
    %335 = vector.broadcast %cst_115 : f32 to vector<8x128xf32>
    %336 = arith.addf %334, %335 : vector<8x128xf32>
    %337 = vector.extract_strided_slice %326 {offsets = [0, 256], sizes = [8, 128], strides = [1, 1]} : vector<8x512xf32> to vector<8x128xf32>
    %cst_116 = arith.constant 5.000000e-01 : f32
    %338 = vector.broadcast %cst_116 : f32 to vector<8x128xf32>
    %339 = arith.mulf %338, %337 : vector<8x128xf32>
    %cst_117 = arith.constant 5.000000e-01 : f32
    %340 = vector.broadcast %cst_117 : f32 to vector<8x128xf32>
    %341 = arith.addf %339, %340 : vector<8x128xf32>
    %342 = vector.extract_strided_slice %326 {offsets = [0, 384], sizes = [8, 128], strides = [1, 1]} : vector<8x512xf32> to vector<8x128xf32>
    %343 = arith.mulf %336, %316 : vector<8x128xf32>
    %344 = arith.mulf %331, %342 : vector<8x128xf32>
    %345 = arith.addf %343, %344 : vector<8x128xf32>
    %346 = math.tanh %345 : vector<8x128xf32>
    %347 = arith.mulf %341, %346 : vector<8x128xf32>
    %348 = vector.extract_strided_slice %256 {offsets = [24, 0], sizes = [8, 512], strides = [1, 1]} : vector<64x512xf32> to vector<8x512xf32>
    %349 = vector.extract_strided_slice %258 {offsets = [32, 0], sizes = [8, 512], strides = [1, 1]} : vector<64x512xf32> to vector<8x512xf32>
    %350 = arith.addf %348, %349 : vector<8x512xf32>
    %cst_118 = arith.constant dense<0.000000e+00> : vector<8x512xf32>
    %351 = tpu.matmul %347, %251, %cst_118 {dimension_numbers = #tpu.dot_dimension_numbers<[1], [0], [0], [1], [0, 0, 1, 1], [], []>} : vector<8x128xf32>, vector<128x512xf32>, vector<8x512xf32> -> vector<8x512xf32>
    %352 = arith.addf %350, %351 : vector<8x512xf32>
    %cst_119 = arith.constant 5.000000e-01 : f32
    %353 = vector.broadcast %cst_119 : f32 to vector<8x512xf32>
    %354 = arith.mulf %353, %352 : vector<8x512xf32>
    %355 = math.tanh %354 : vector<8x512xf32>
    %356 = vector.extract_strided_slice %355 {offsets = [0, 0], sizes = [8, 128], strides = [1, 1]} : vector<8x512xf32> to vector<8x128xf32>
    %cst_120 = arith.constant 5.000000e-01 : f32
    %357 = vector.broadcast %cst_120 : f32 to vector<8x128xf32>
    %358 = arith.mulf %357, %356 : vector<8x128xf32>
    %cst_121 = arith.constant 5.000000e-01 : f32
    %359 = vector.broadcast %cst_121 : f32 to vector<8x128xf32>
    %360 = arith.addf %358, %359 : vector<8x128xf32>
    %361 = vector.extract_strided_slice %355 {offsets = [0, 128], sizes = [8, 128], strides = [1, 1]} : vector<8x512xf32> to vector<8x128xf32>
    %cst_122 = arith.constant 5.000000e-01 : f32
    %362 = vector.broadcast %cst_122 : f32 to vector<8x128xf32>
    %363 = arith.mulf %362, %361 : vector<8x128xf32>
    %cst_123 = arith.constant 5.000000e-01 : f32
    %364 = vector.broadcast %cst_123 : f32 to vector<8x128xf32>
    %365 = arith.addf %363, %364 : vector<8x128xf32>
    %366 = vector.extract_strided_slice %355 {offsets = [0, 256], sizes = [8, 128], strides = [1, 1]} : vector<8x512xf32> to vector<8x128xf32>
    %cst_124 = arith.constant 5.000000e-01 : f32
    %367 = vector.broadcast %cst_124 : f32 to vector<8x128xf32>
    %368 = arith.mulf %367, %366 : vector<8x128xf32>
    %cst_125 = arith.constant 5.000000e-01 : f32
    %369 = vector.broadcast %cst_125 : f32 to vector<8x128xf32>
    %370 = arith.addf %368, %369 : vector<8x128xf32>
    %371 = vector.extract_strided_slice %355 {offsets = [0, 384], sizes = [8, 128], strides = [1, 1]} : vector<8x512xf32> to vector<8x128xf32>
    %372 = arith.mulf %365, %345 : vector<8x128xf32>
    %373 = arith.mulf %360, %371 : vector<8x128xf32>
    %374 = arith.addf %372, %373 : vector<8x128xf32>
    %375 = math.tanh %374 : vector<8x128xf32>
    %376 = arith.mulf %370, %375 : vector<8x128xf32>
    %377 = vector.extract_strided_slice %256 {offsets = [32, 0], sizes = [8, 512], strides = [1, 1]} : vector<64x512xf32> to vector<8x512xf32>
    %378 = vector.extract_strided_slice %258 {offsets = [24, 0], sizes = [8, 512], strides = [1, 1]} : vector<64x512xf32> to vector<8x512xf32>
    %379 = arith.addf %377, %378 : vector<8x512xf32>
    %cst_126 = arith.constant dense<0.000000e+00> : vector<8x512xf32>
    %380 = tpu.matmul %376, %251, %cst_126 {dimension_numbers = #tpu.dot_dimension_numbers<[1], [0], [0], [1], [0, 0, 1, 1], [], []>} : vector<8x128xf32>, vector<128x512xf32>, vector<8x512xf32> -> vector<8x512xf32>
    %381 = arith.addf %379, %380 : vector<8x512xf32>
    %cst_127 = arith.constant 5.000000e-01 : f32
    %382 = vector.broadcast %cst_127 : f32 to vector<8x512xf32>
    %383 = arith.mulf %382, %381 : vector<8x512xf32>
    %384 = math.tanh %383 : vector<8x512xf32>
    %385 = vector.extract_strided_slice %384 {offsets = [0, 0], sizes = [8, 128], strides = [1, 1]} : vector<8x512xf32> to vector<8x128xf32>
    %cst_128 = arith.constant 5.000000e-01 : f32
    %386 = vector.broadcast %cst_128 : f32 to vector<8x128xf32>
    %387 = arith.mulf %386, %385 : vector<8x128xf32>
    %cst_129 = arith.constant 5.000000e-01 : f32
    %388 = vector.broadcast %cst_129 : f32 to vector<8x128xf32>
    %389 = arith.addf %387, %388 : vector<8x128xf32>
    %390 = vector.extract_strided_slice %384 {offsets = [0, 128], sizes = [8, 128], strides = [1, 1]} : vector<8x512xf32> to vector<8x128xf32>
    %cst_130 = arith.constant 5.000000e-01 : f32
    %391 = vector.broadcast %cst_130 : f32 to vector<8x128xf32>
    %392 = arith.mulf %391, %390 : vector<8x128xf32>
    %cst_131 = arith.constant 5.000000e-01 : f32
    %393 = vector.broadcast %cst_131 : f32 to vector<8x128xf32>
    %394 = arith.addf %392, %393 : vector<8x128xf32>
    %395 = vector.extract_strided_slice %384 {offsets = [0, 256], sizes = [8, 128], strides = [1, 1]} : vector<8x512xf32> to vector<8x128xf32>
    %cst_132 = arith.constant 5.000000e-01 : f32
    %396 = vector.broadcast %cst_132 : f32 to vector<8x128xf32>
    %397 = arith.mulf %396, %395 : vector<8x128xf32>
    %cst_133 = arith.constant 5.000000e-01 : f32
    %398 = vector.broadcast %cst_133 : f32 to vector<8x128xf32>
    %399 = arith.addf %397, %398 : vector<8x128xf32>
    %400 = vector.extract_strided_slice %384 {offsets = [0, 384], sizes = [8, 128], strides = [1, 1]} : vector<8x512xf32> to vector<8x128xf32>
    %401 = arith.mulf %394, %374 : vector<8x128xf32>
    %402 = arith.mulf %389, %400 : vector<8x128xf32>
    %403 = arith.addf %401, %402 : vector<8x128xf32>
    %404 = math.tanh %403 : vector<8x128xf32>
    %405 = arith.mulf %399, %404 : vector<8x128xf32>
    %406 = vector.extract_strided_slice %256 {offsets = [40, 0], sizes = [8, 512], strides = [1, 1]} : vector<64x512xf32> to vector<8x512xf32>
    %407 = vector.extract_strided_slice %258 {offsets = [16, 0], sizes = [8, 512], strides = [1, 1]} : vector<64x512xf32> to vector<8x512xf32>
    %408 = arith.addf %406, %407 : vector<8x512xf32>
    %cst_134 = arith.constant dense<0.000000e+00> : vector<8x512xf32>
    %409 = tpu.matmul %405, %251, %cst_134 {dimension_numbers = #tpu.dot_dimension_numbers<[1], [0], [0], [1], [0, 0, 1, 1], [], []>} : vector<8x128xf32>, vector<128x512xf32>, vector<8x512xf32> -> vector<8x512xf32>
    %410 = arith.addf %408, %409 : vector<8x512xf32>
    %cst_135 = arith.constant 5.000000e-01 : f32
    %411 = vector.broadcast %cst_135 : f32 to vector<8x512xf32>
    %412 = arith.mulf %411, %410 : vector<8x512xf32>
    %413 = math.tanh %412 : vector<8x512xf32>
    %414 = vector.extract_strided_slice %413 {offsets = [0, 0], sizes = [8, 128], strides = [1, 1]} : vector<8x512xf32> to vector<8x128xf32>
    %cst_136 = arith.constant 5.000000e-01 : f32
    %415 = vector.broadcast %cst_136 : f32 to vector<8x128xf32>
    %416 = arith.mulf %415, %414 : vector<8x128xf32>
    %cst_137 = arith.constant 5.000000e-01 : f32
    %417 = vector.broadcast %cst_137 : f32 to vector<8x128xf32>
    %418 = arith.addf %416, %417 : vector<8x128xf32>
    %419 = vector.extract_strided_slice %413 {offsets = [0, 128], sizes = [8, 128], strides = [1, 1]} : vector<8x512xf32> to vector<8x128xf32>
    %cst_138 = arith.constant 5.000000e-01 : f32
    %420 = vector.broadcast %cst_138 : f32 to vector<8x128xf32>
    %421 = arith.mulf %420, %419 : vector<8x128xf32>
    %cst_139 = arith.constant 5.000000e-01 : f32
    %422 = vector.broadcast %cst_139 : f32 to vector<8x128xf32>
    %423 = arith.addf %421, %422 : vector<8x128xf32>
    %424 = vector.extract_strided_slice %413 {offsets = [0, 256], sizes = [8, 128], strides = [1, 1]} : vector<8x512xf32> to vector<8x128xf32>
    %cst_140 = arith.constant 5.000000e-01 : f32
    %425 = vector.broadcast %cst_140 : f32 to vector<8x128xf32>
    %426 = arith.mulf %425, %424 : vector<8x128xf32>
    %cst_141 = arith.constant 5.000000e-01 : f32
    %427 = vector.broadcast %cst_141 : f32 to vector<8x128xf32>
    %428 = arith.addf %426, %427 : vector<8x128xf32>
    %429 = vector.extract_strided_slice %413 {offsets = [0, 384], sizes = [8, 128], strides = [1, 1]} : vector<8x512xf32> to vector<8x128xf32>
    %430 = arith.mulf %423, %403 : vector<8x128xf32>
    %431 = arith.mulf %418, %429 : vector<8x128xf32>
    %432 = arith.addf %430, %431 : vector<8x128xf32>
    %433 = math.tanh %432 : vector<8x128xf32>
    %434 = arith.mulf %428, %433 : vector<8x128xf32>
    %435 = vector.extract_strided_slice %256 {offsets = [48, 0], sizes = [8, 512], strides = [1, 1]} : vector<64x512xf32> to vector<8x512xf32>
    %436 = vector.extract_strided_slice %258 {offsets = [8, 0], sizes = [8, 512], strides = [1, 1]} : vector<64x512xf32> to vector<8x512xf32>
    %437 = arith.addf %435, %436 : vector<8x512xf32>
    %cst_142 = arith.constant dense<0.000000e+00> : vector<8x512xf32>
    %438 = tpu.matmul %434, %251, %cst_142 {dimension_numbers = #tpu.dot_dimension_numbers<[1], [0], [0], [1], [0, 0, 1, 1], [], []>} : vector<8x128xf32>, vector<128x512xf32>, vector<8x512xf32> -> vector<8x512xf32>
    %439 = arith.addf %437, %438 : vector<8x512xf32>
    %cst_143 = arith.constant 5.000000e-01 : f32
    %440 = vector.broadcast %cst_143 : f32 to vector<8x512xf32>
    %441 = arith.mulf %440, %439 : vector<8x512xf32>
    %442 = math.tanh %441 : vector<8x512xf32>
    %443 = vector.extract_strided_slice %442 {offsets = [0, 0], sizes = [8, 128], strides = [1, 1]} : vector<8x512xf32> to vector<8x128xf32>
    %cst_144 = arith.constant 5.000000e-01 : f32
    %444 = vector.broadcast %cst_144 : f32 to vector<8x128xf32>
    %445 = arith.mulf %444, %443 : vector<8x128xf32>
    %cst_145 = arith.constant 5.000000e-01 : f32
    %446 = vector.broadcast %cst_145 : f32 to vector<8x128xf32>
    %447 = arith.addf %445, %446 : vector<8x128xf32>
    %448 = vector.extract_strided_slice %442 {offsets = [0, 128], sizes = [8, 128], strides = [1, 1]} : vector<8x512xf32> to vector<8x128xf32>
    %cst_146 = arith.constant 5.000000e-01 : f32
    %449 = vector.broadcast %cst_146 : f32 to vector<8x128xf32>
    %450 = arith.mulf %449, %448 : vector<8x128xf32>
    %cst_147 = arith.constant 5.000000e-01 : f32
    %451 = vector.broadcast %cst_147 : f32 to vector<8x128xf32>
    %452 = arith.addf %450, %451 : vector<8x128xf32>
    %453 = vector.extract_strided_slice %442 {offsets = [0, 256], sizes = [8, 128], strides = [1, 1]} : vector<8x512xf32> to vector<8x128xf32>
    %cst_148 = arith.constant 5.000000e-01 : f32
    %454 = vector.broadcast %cst_148 : f32 to vector<8x128xf32>
    %455 = arith.mulf %454, %453 : vector<8x128xf32>
    %cst_149 = arith.constant 5.000000e-01 : f32
    %456 = vector.broadcast %cst_149 : f32 to vector<8x128xf32>
    %457 = arith.addf %455, %456 : vector<8x128xf32>
    %458 = vector.extract_strided_slice %442 {offsets = [0, 384], sizes = [8, 128], strides = [1, 1]} : vector<8x512xf32> to vector<8x128xf32>
    %459 = arith.mulf %452, %432 : vector<8x128xf32>
    %460 = arith.mulf %447, %458 : vector<8x128xf32>
    %461 = arith.addf %459, %460 : vector<8x128xf32>
    %462 = math.tanh %461 : vector<8x128xf32>
    %463 = arith.mulf %457, %462 : vector<8x128xf32>
    %464 = vector.extract_strided_slice %256 {offsets = [56, 0], sizes = [8, 512], strides = [1, 1]} : vector<64x512xf32> to vector<8x512xf32>
    %465 = vector.extract_strided_slice %258 {offsets = [0, 0], sizes = [8, 512], strides = [1, 1]} : vector<64x512xf32> to vector<8x512xf32>
    %466 = arith.addf %464, %465 : vector<8x512xf32>
    %cst_150 = arith.constant dense<0.000000e+00> : vector<8x512xf32>
    %467 = tpu.matmul %463, %251, %cst_150 {dimension_numbers = #tpu.dot_dimension_numbers<[1], [0], [0], [1], [0, 0, 1, 1], [], []>} : vector<8x128xf32>, vector<128x512xf32>, vector<8x512xf32> -> vector<8x512xf32>
    %468 = arith.addf %466, %467 : vector<8x512xf32>
    %cst_151 = arith.constant 5.000000e-01 : f32
    %469 = vector.broadcast %cst_151 : f32 to vector<8x512xf32>
    %470 = arith.mulf %469, %468 : vector<8x512xf32>
    %471 = math.tanh %470 : vector<8x512xf32>
    %472 = vector.extract_strided_slice %471 {offsets = [0, 0], sizes = [8, 128], strides = [1, 1]} : vector<8x512xf32> to vector<8x128xf32>
    %cst_152 = arith.constant 5.000000e-01 : f32
    %473 = vector.broadcast %cst_152 : f32 to vector<8x128xf32>
    %474 = arith.mulf %473, %472 : vector<8x128xf32>
    %cst_153 = arith.constant 5.000000e-01 : f32
    %475 = vector.broadcast %cst_153 : f32 to vector<8x128xf32>
    %476 = arith.addf %474, %475 : vector<8x128xf32>
    %477 = vector.extract_strided_slice %471 {offsets = [0, 128], sizes = [8, 128], strides = [1, 1]} : vector<8x512xf32> to vector<8x128xf32>
    %cst_154 = arith.constant 5.000000e-01 : f32
    %478 = vector.broadcast %cst_154 : f32 to vector<8x128xf32>
    %479 = arith.mulf %478, %477 : vector<8x128xf32>
    %cst_155 = arith.constant 5.000000e-01 : f32
    %480 = vector.broadcast %cst_155 : f32 to vector<8x128xf32>
    %481 = arith.addf %479, %480 : vector<8x128xf32>
    %482 = vector.extract_strided_slice %471 {offsets = [0, 256], sizes = [8, 128], strides = [1, 1]} : vector<8x512xf32> to vector<8x128xf32>
    %cst_156 = arith.constant 5.000000e-01 : f32
    %483 = vector.broadcast %cst_156 : f32 to vector<8x128xf32>
    %484 = arith.mulf %483, %482 : vector<8x128xf32>
    %cst_157 = arith.constant 5.000000e-01 : f32
    %485 = vector.broadcast %cst_157 : f32 to vector<8x128xf32>
    %486 = arith.addf %484, %485 : vector<8x128xf32>
    %487 = vector.extract_strided_slice %471 {offsets = [0, 384], sizes = [8, 128], strides = [1, 1]} : vector<8x512xf32> to vector<8x128xf32>
    %488 = arith.mulf %481, %461 : vector<8x128xf32>
    %489 = arith.mulf %476, %487 : vector<8x128xf32>
    %490 = arith.addf %488, %489 : vector<8x128xf32>
    %491 = math.tanh %490 : vector<8x128xf32>
    %492 = arith.mulf %486, %491 : vector<8x128xf32>
    %493 = tpu.concatenate %289, %318, %347, %376, %405, %434, %463, %492 in 0 : vector<8x128xf32>, vector<8x128xf32>, vector<8x128xf32>, vector<8x128xf32>, vector<8x128xf32>, vector<8x128xf32>, vector<8x128xf32>, vector<8x128xf32> -> vector<64x128xf32>
    %494 = tpu.concatenate %492, %463, %434, %405, %376, %347, %318, %289 in 0 : vector<8x128xf32>, vector<8x128xf32>, vector<8x128xf32>, vector<8x128xf32>, vector<8x128xf32>, vector<8x128xf32>, vector<8x128xf32>, vector<8x128xf32> -> vector<64x128xf32>
    %c0_158 = arith.constant 0 : index
    %c0_159 = arith.constant 0 : index
    %495 = vector.load %arg11[%c0_158, %c0_159] : memref<128x128xf32, #tpu.memory_space<vmem>>, vector<128x128xf32>
    %cst_160 = arith.constant dense<0.000000e+00> : vector<64x128xf32>
    %496 = tpu.matmul %493, %495, %cst_160 {dimension_numbers = #tpu.dot_dimension_numbers<[1], [0], [0], [1], [0, 0, 1, 1], [], []>} : vector<64x128xf32>, vector<128x128xf32>, vector<64x128xf32> -> vector<64x128xf32>
    %c0_161 = arith.constant 0 : index
    %c0_162 = arith.constant 0 : index
    %497 = vector.load %arg12[%c0_161, %c0_162] : memref<128x128xf32, #tpu.memory_space<vmem>>, vector<128x128xf32>
    %cst_163 = arith.constant dense<0.000000e+00> : vector<64x128xf32>
    %498 = tpu.matmul %494, %497, %cst_163 {dimension_numbers = #tpu.dot_dimension_numbers<[1], [0], [0], [1], [0, 0, 1, 1], [], []>} : vector<64x128xf32>, vector<128x128xf32>, vector<64x128xf32> -> vector<64x128xf32>
    %499 = arith.addf %496, %498 : vector<64x128xf32>
    %c0_164 = arith.constant 0 : index
    %c0_165 = arith.constant 0 : index
    %500 = vector.load %arg13[%c0_164, %c0_165] : memref<1x128xf32, #tpu.memory_space<vmem>>, vector<1x128xf32>
    %501 = vector.broadcast %500 : vector<1x128xf32> to vector<64x128xf32>
    %502 = arith.addf %499, %501 : vector<64x128xf32>
    %c0_166 = arith.constant 0 : index
    %c0_167 = arith.constant 0 : index
    %503 = vector.load %arg14[%c0_166, %c0_167] : memref<64x128xf32, #tpu.memory_space<vmem>>, vector<64x128xf32>
    tpu.vector_store %arg14[%c0_166, %c0_167], %502 {strides = array<i32>} : memref<64x128xf32, #tpu.memory_space<vmem>>, vector<64x128xf32>,
    return
  }
}

</mosaic_0001>

<llo_original>
// kernel: crnn_forward.1
$region0: #{crnn_forward.1}
  #allocation0 [shape = 'u32[]', space=smem, size = 0x4, offset = 0x4, fixed_abs, tag = 'smem constant byte address 0x4 - core index']
  #allocation1 [shape = 'u32[144,128]{1,0:T(1,128)}', space=vmem, size = 0x12000, scoped, tag = 'internal scratch']
  %s0 = inlined_call_operand.vmem [shape: f32[64,256], index: 0, kind: input, shape index: {}]
  %s1 = inlined_call_operand.hbm [shape: f32[256,128], index: 1, kind: input, shape index: {}]
  %s2 = inlined_call_operand.vmem [shape: f32[1,128], index: 2, kind: input, shape index: {}]
  %s3 = inlined_call_operand.vmem [shape: f32[128,512], index: 3, kind: input, shape index: {}]
  %s4 = inlined_call_operand.vmem [shape: f32[128,512], index: 4, kind: input, shape index: {}]
  %s5 = inlined_call_operand.vmem [shape: f32[128,512], index: 5, kind: input, shape index: {}]
  %s6 = inlined_call_operand.vmem [shape: f32[1,512], index: 6, kind: input, shape index: {}]
  %s7 = inlined_call_operand.vmem [shape: f32[128,512], index: 7, kind: input, shape index: {}]
  %s8 = inlined_call_operand.vmem [shape: f32[128,512], index: 8, kind: input, shape index: {}]
  %s9 = inlined_call_operand.hbm [shape: f32[128,512], index: 9, kind: input, shape index: {}]
  %s10 = inlined_call_operand.vmem [shape: f32[1,512], index: 10, kind: input, shape index: {}]
  %s11 = inlined_call_operand.hbm [shape: f32[128,128], index: 11, kind: input, shape index: {}]
  %s12 = inlined_call_operand.hbm [shape: f32[128,128], index: 12, kind: input, shape index: {}]
  %s13 = inlined_call_operand.vmem [shape: f32[1,128], index: 13, kind: input, shape index: {}]
  %s14 = inlined_call_operand.vmem [shape: f32[64,128], index: 14, kind: output, shape index: {}]
  %s15 = sld [smem:[#allocation0]]
  $region82: #{crnn_forward.1} parent=0
    _
  %s17 = ssub.s32 1, %s15
  %s18 = scalar_select 0, %s17, %s15
  $region1: #{crnn_forward.1} parent=0
    #allocation2 [shape = 'u8[131072]{0}', space=vmem, size = 0x20000, scoped, tag = 'input window, operand 1, single buffered']
    #allocation3 [shape = 's32[1]{0}', space=sflag, size = 0x4, scoped, tag = 'scoped memory for crnn_forward.1']
    #allocation4 [shape = 'u8[262144]{0}', space=vmem, size = 0x40000, scoped, tag = 'input window, operand 9, single buffered']
    #allocation5 [shape = 's32[1]{0}', space=sflag, size = 0x4, scoped, tag = 'scoped memory for crnn_forward.1']
    #allocation6 [shape = 'u8[65536]{0}', space=vmem, size = 0x10000, scoped, tag = 'input window, operand 11, single buffered']
    #allocation7 [shape = 'u8[65536]{0}', space=vmem, size = 0x10000, scoped, tag = 'input window, operand 12, single buffered']
    #allocation8 [shape = 's32[1]{0}', space=sflag, size = 0x4, scoped, tag = 'scoped memory for crnn_forward.1']
    %19 = vsyncpa [#allocation3], 0
    %20 = vsyncpa [#allocation5], 0
    %21 = vsyncpa [#allocation8], 0
    // Predicated region
    $region2: #{crnn_forward.1} parent=1 // pred_check
      _
    $region3: #{crnn_forward.1} parent=1 // pred_check_branch
      %23 = sbr.rel (0) target = $region5
    $region4: #{crnn_forward.1} parent=1 // pred_region
      _
    $region5: #{crnn_forward.1} parent=1 // pred_fallthru
      _
    // Predicated region
    $region6: #{crnn_forward.1} parent=1 // pred_check
      _
    $region7: #{crnn_forward.1} parent=1 // pred_check_branch
      %25 = sbr.rel (0) target = $region9
    $region8: #{crnn_forward.1} parent=1 // pred_region
      %s27 = ssub.s32 4096, 4096
      %28 = vsyncadd [#allocation3], %s27
      %s29 = sshll.u32 [#allocation2], 4
      %s30 = int_to_ptr.vmem [resolvable:$true] %s29
      %35 = dma.hbm_to_vmem [thread:$0]  %s1, 4096, %s30, [#allocation3], 128, 128, 8
    $region9: #{crnn_forward.1} parent=1 // pred_fallthru
      _
    // Predicated region
    $region10: #{crnn_forward.1} parent=1 // pred_check
      _
    $region11: #{crnn_forward.1} parent=1 // pred_check_branch
      %37 = sbr.rel (0) target = $region13
    $region12: #{crnn_forward.1} parent=1 // pred_region
      _
    $region13: #{crnn_forward.1} parent=1 // pred_fallthru
      _
    // Predicated region
    $region14: #{crnn_forward.1} parent=1 // pred_check
      _
    $region15: #{crnn_forward.1} parent=1 // pred_check_branch
      %39 = sbr.rel (0) target = $region17
    $region16: #{crnn_forward.1} parent=1 // pred_region
      _
    $region17: #{crnn_forward.1} parent=1 // pred_fallthru
      _
    // Predicated region
    $region18: #{crnn_forward.1} parent=1 // pred_check
      _
    $region19: #{crnn_forward.1} parent=1 // pred_check_branch
      %41 = sbr.rel (0) target = $region21
    $region20: #{crnn_forward.1} parent=1 // pred_region
      _
    $region21: #{crnn_forward.1} parent=1 // pred_fallthru
      _
    // Predicated region
    $region22: #{crnn_forward.1} parent=1 // pred_check
      _
    $region23: #{crnn_forward.1} parent=1 // pred_check_branch
      %43 = sbr.rel (0) target = $region25
    $region24: #{crnn_forward.1} parent=1 // pred_region
      _
    $region25: #{crnn_forward.1} parent=1 // pred_fallthru
      _
    // Predicated region
    $region26: #{crnn_forward.1} parent=1 // pred_check
      _
    $region27: #{crnn_forward.1} parent=1 // pred_check_branch
      %45 = sbr.rel (0) target = $region29
    $region28: #{crnn_forward.1} parent=1 // pred_region
      _
    $region29: #{crnn_forward.1} parent=1 // pred_fallthru
      _
    // Predicated region
    $region30: #{crnn_forward.1} parent=1 // pred_check
      _
    $region31: #{crnn_forward.1} parent=1 // pred_check_branch
      %47 = sbr.rel (0) target = $region33
    $region32: #{crnn_forward.1} parent=1 // pred_region
      _
    $region33: #{crnn_forward.1} parent=1 // pred_fallthru
      _
    // Predicated region
    $region34: #{crnn_forward.1} parent=1 // pred_check
      _
    $region35: #{crnn_forward.1} parent=1 // pred_check_branch
      %49 = sbr.rel (0) target = $region37
    $region36: #{crnn_forward.1} parent=1 // pred_region
      _
    $region37: #{crnn_forward.1} parent=1 // pred_fallthru
      _
    // Predicated region
    $region38: #{crnn_forward.1} parent=1 // pred_check
      _
    $region39: #{crnn_forward.1} parent=1 // pred_check_branch
      %51 = sbr.rel (0) target = $region41
    $region40: #{crnn_forward.1} parent=1 // pred_region
      %s53 = ssub.s32 8192, 8192
      %54 = vsyncadd [#allocation5], %s53
      %s55 = sshll.u32 [#allocation4], 4
      %s56 = int_to_ptr.vmem [resolvable:$true] %s55
      %61 = dma.hbm_to_vmem [thread:$0]  %s9, 8192, %s56, [#allocation5], 512, 512, 32
    $region41: #{crnn_forward.1} parent=1 // pred_fallthru
      _
    // Predicated region
    $region42: #{crnn_forward.1} parent=1 // pred_check
      _
    $region43: #{crnn_forward.1} parent=1 // pred_check_branch
      %63 = sbr.rel (0) target = $region45
    $region44: #{crnn_forward.1} parent=1 // pred_region
      _
    $region45: #{crnn_forward.1} parent=1 // pred_fallthru
      _
    // Predicated region
    $region46: #{crnn_forward.1} parent=1 // pred_check
      _
    $region47: #{crnn_forward.1} parent=1 // pred_check_branch
      %65 = sbr.rel (0) target = $region49
    $region48: #{crnn_forward.1} parent=1 // pred_region
      %s67 = ssub.s32 2048, 2048
      %68 = vsyncadd [#allocation5], %s67
      %s69 = sshll.u32 [#allocation6], 4
      %s70 = int_to_ptr.vmem [resolvable:$true] %s69
      %75 = dma.hbm_to_vmem [thread:$0]  %s11, 2048, %s70, [#allocation5], 128, 128, 8
    $region49: #{crnn_forward.1} parent=1 // pred_fallthru
      _
    // Predicated region
    $region50: #{crnn_forward.1} parent=1 // pred_check
      _
    $region51: #{crnn_forward.1} parent=1 // pred_check_branch
      %77 = sbr.rel (0) target = $region53
    $region52: #{crnn_forward.1} parent=1 // pred_region
      %s79 = ssub.s32 2048, 2048
      %80 = vsyncadd [#allocation8], %s79
      %s81 = sshll.u32 [#allocation7], 4
      %s82 = int_to_ptr.vmem [resolvable:$true] %s81
      %87 = dma.hbm_to_vmem [thread:$0]  %s12, 2048, %s82, [#allocation8], 128, 128, 8
    $region53: #{crnn_forward.1} parent=1 // pred_fallthru
      _
    // Predicated region
    $region54: #{crnn_forward.1} parent=1 // pred_check
      _
    $region55: #{crnn_forward.1} parent=1 // pred_check_branch
      %89 = sbr.rel (0) target = $region57
    $region56: #{crnn_forward.1} parent=1 // pred_region
      _
    $region57: #{crnn_forward.1} parent=1 // pred_fallthru
      _
    // Predicated region
    $region58: #{crnn_forward.1} parent=1 // pred_check
      _
    $region59: #{crnn_forward.1} parent=1 // pred_check_branch
      %91 = sbr.rel (0) target = $region61
    $region60: #{crnn_forward.1} parent=1 // pred_region
      %92 = dma.done [#allocation3], 4096
    $region61: #{crnn_forward.1} parent=1 // pred_fallthru
      _
    // Predicated region
    $region62: #{crnn_forward.1} parent=1 // pred_check
      _
    $region63: #{crnn_forward.1} parent=1 // pred_check_branch
      %94 = sbr.rel (0) target = $region65
    $region64: #{crnn_forward.1} parent=1 // pred_region
      %95 = dma.done [#allocation5], 8192
    $region65: #{crnn_forward.1} parent=1 // pred_fallthru
      _
    // Predicated region
    $region66: #{crnn_forward.1} parent=1 // pred_check
      _
    $region67: #{crnn_forward.1} parent=1 // pred_check_branch
      %97 = sbr.rel (0) target = $region69
    $region68: #{crnn_forward.1} parent=1 // pred_region
      %98 = dma.done [#allocation5], 2048
    $region69: #{crnn_forward.1} parent=1 // pred_fallthru
      _
    // Predicated region
    $region70: #{crnn_forward.1} parent=1 // pred_check
      _
    $region71: #{crnn_forward.1} parent=1 // pred_check_branch
      %100 = sbr.rel (0) target = $region73
    $region72: #{crnn_forward.1} parent=1 // pred_region
      %101 = dma.done [#allocation8], 2048
    $region73: #{crnn_forward.1} parent=1 // pred_fallthru
      _
    %v102 = vld [vmem:[%s0] sm:$0xff]
    %v103 = vld [vmem:[%s0 + $0x8] sm:$0xff]
    %v104 = vld [vmem:[%s0 + $0x10] sm:$0xff]
    %v105 = vld [vmem:[%s0 + $0x18] sm:$0xff]
    %v106 = vld [vmem:[%s0 + $0x20] sm:$0xff]
    %v107 = vld [vmem:[%s0 + $0x28] sm:$0xff]
    %v108 = vld [vmem:[%s0 + $0x30] sm:$0xff]
    %v109 = vld [vmem:[%s0 + $0x38] sm:$0xff]
    %v110 = vld [vmem:[%s0 + $0x40] sm:$0xff]
    %v111 = vld [vmem:[%s0 + $0x48] sm:$0xff]
    %v112 = vld [vmem:[%s0 + $0x50] sm:$0xff]
    %v113 = vld [vmem:[%s0 + $0x58] sm:$0xff]
    %v114 = vld [vmem:[%s0 + $0x60] sm:$0xff]
    %v115 = vld [vmem:[%s0 + $0x68] sm:$0xff]
    %v116 = vld [vmem:[%s0 + $0x70] sm:$0xff]
    %v117 = vld [vmem:[%s0 + $0x78] sm:$0xff]
    %v118 = vld [vmem:[#allocation2] sm:$0xff]
    %v119 = vld [vmem:[#allocation2 + $0x8] sm:$0xff]
    %v120 = vld [vmem:[#allocation2 + $0x10] sm:$0xff]
    %v121 = vld [vmem:[#allocation2 + $0x18] sm:$0xff]
    %v122 = vld [vmem:[#allocation2 + $0x20] sm:$0xff]
    %v123 = vld [vmem:[#allocation2 + $0x28] sm:$0xff]
    %v124 = vld [vmem:[#allocation2 + $0x30] sm:$0xff]
    %v125 = vld [vmem:[#allocation2 + $0x38] sm:$0xff]
    %v126 = vld [vmem:[#allocation2 + $0x40] sm:$0xff]
    %v127 = vld [vmem:[#allocation2 + $0x48] sm:$0xff]
    %v128 = vld [vmem:[#allocation2 + $0x50] sm:$0xff]
    %v129 = vld [vmem:[#allocation2 + $0x58] sm:$0xff]
    %v130 = vld [vmem:[#allocation2 + $0x60] sm:$0xff]
    %v131 = vld [vmem:[#allocation2 + $0x68] sm:$0xff]
    %v132 = vld [vmem:[#allocation2 + $0x70] sm:$0xff]
    %v133 = vld [vmem:[#allocation2 + $0x78] sm:$0xff]
    %v134 = vld [vmem:[#allocation2 + $0x80] sm:$0xff]
    %v135 = vld [vmem:[#allocation2 + $0x88] sm:$0xff]
    %v136 = vld [vmem:[#allocation2 + $0x90] sm:$0xff]
    %v137 = vld [vmem:[#allocation2 + $0x98] sm:$0xff]
    %v138 = vld [vmem:[#allocation2 + $0xa0] sm:$0xff]
    %v139 = vld [vmem:[#allocation2 + $0xa8] sm:$0xff]
    %v140 = vld [vmem:[#allocation2 + $0xb0] sm:$0xff]
    %v141 = vld [vmem:[#allocation2 + $0xb8] sm:$0xff]
    %v142 = vld [vmem:[#allocation2 + $0xc0] sm:$0xff]
    %v143 = vld [vmem:[#allocation2 + $0xc8] sm:$0xff]
    %v144 = vld [vmem:[#allocation2 + $0xd0] sm:$0xff]
    %v145 = vld [vmem:[#allocation2 + $0xd8] sm:$0xff]
    %v146 = vld [vmem:[#allocation2 + $0xe0] sm:$0xff]
    %v147 = vld [vmem:[#allocation2 + $0xe8] sm:$0xff]
    %v148 = vld [vmem:[#allocation2 + $0xf0] sm:$0xff]
    %v149 = vld [vmem:[#allocation2 + $0xf8] sm:$0xff]
    %v150 = vld [vmem:[%s2] sm:$0x1]
    %v152 = vlaneseq
    %v153 = vshrl.u32 %v152, 7
    %v154 = vsub.s32 0, %v153
    %v155 = vrot.slane %v150, %v154
    %157 = vmatprep.subr.mxu0 0.0
    %158 = vmatpush1.msra.mxu0 %v133
    %159 = vmatprep.subr.mxu0 0.0
    %160 = vmatpush1.msra.mxu0 %v132
    %161 = vmatprep.subr.mxu0 0.0
    %162 = vmatpush1.msra.mxu0 %v131
    %163 = vmatprep.subr.mxu0 0.0
    %164 = vmatpush1.msra.mxu0 %v130
    %165 = vmatprep.subr.mxu0 0.0
    %166 = vmatpush1.msra.mxu0 %v129
    %167 = vmatprep.subr.mxu0 0.0
    %168 = vmatpush1.msra.mxu0 %v128
    %169 = vmatprep.subr.mxu0 0.0
    %170 = vmatpush1.msra.mxu0 %v127
    %171 = vmatprep.subr.mxu0 0.0
    %172 = vmatpush1.msra.mxu0 %v126
    %173 = vmatprep.subr.mxu0 0.0
    %174 = vmatpush1.msra.mxu0 %v125
    %175 = vmatprep.subr.mxu0 0.0
    %176 = vmatpush1.msra.mxu0 %v124
    %177 = vmatprep.subr.mxu0 0.0
    %178 = vmatpush1.msra.mxu0 %v123
    %179 = vmatprep.subr.mxu0 0.0
    %180 = vmatpush1.msra.mxu0 %v122
    %181 = vmatprep.subr.mxu0 0.0
    %182 = vmatpush1.msra.mxu0 %v121
    %183 = vmatprep.subr.mxu0 0.0
    %184 = vmatpush1.msra.mxu0 %v120
    %185 = vmatprep.subr.mxu0 0.0
    %186 = vmatpush1.msra.mxu0 %v119
    %187 = vmatprep.subr.mxu0 0.0
    %188 = vmatpush1.msra.mxu0 %v118
    %189 = vmatprep.subr.mxu0 0.0
    %190 = vmatpush2.msra.mxu0 %v149
    %191 = vmatprep.subr.mxu0 0.0
    %192 = vmatpush2.msra.mxu0 %v148
    %193 = vmatprep.subr.mxu0 0.0
    %194 = vmatpush2.msra.mxu0 %v147
    %195 = vmatprep.subr.mxu0 0.0
    %196 = vmatpush2.msra.mxu0 %v146
    %197 = vmatprep.subr.mxu0 0.0
    %198 = vmatpush2.msra.mxu0 %v145
    %199 = vmatprep.subr.mxu0 0.0
    %200 = vmatpush2.msra.mxu0 %v144
    %201 = vmatprep.subr.mxu0 0.0
    %202 = vmatpush2.msra.mxu0 %v143
    %203 = vmatprep.subr.mxu0 0.0
    %204 = vmatpush2.msra.mxu0 %v142
    %205 = vmatprep.subr.mxu0 0.0
    %206 = vmatpush2.msra.mxu0 %v141
    %207 = vmatprep.subr.mxu0 0.0
    %208 = vmatpush2.msra.mxu0 %v140
    %209 = vmatprep.subr.mxu0 0.0
    %210 = vmatpush2.msra.mxu0 %v139
    %211 = vmatprep.subr.mxu0 0.0
    %212 = vmatpush2.msra.mxu0 %v138
    %213 = vmatprep.subr.mxu0 0.0
    %214 = vmatpush2.msra.mxu0 %v137
    %215 = vmatprep.subr.mxu0 0.0
    %216 = vmatpush2.msra.mxu0 %v136
    %217 = vmatprep.subr.mxu0 0.0
    %218 = vmatpush2.msra.mxu0 %v135
    %219 = vmatprep.subr.mxu0 0.0
    %220 = vmatpush2.msra.mxu0 %v134
    %221 = vmatprep.mubr.f32.mxu0 %v103
    %222 = vmatmul.mubr.f32.gmra.mxu0 %v102
    %v223 = vpop.f32.mrf.mxu0
    %v224 = vadd.f32 %v155, %v223
    %v225 = vpop.f32.mrf.mxu0
    %226 = vmatprep.mubr.f32.mxu0 %v105
    %227 = vmatmul.mubr.f32.gmra.mxu0 %v104
    %v228 = vpop.f32.mrf.mxu0
    %v229 = vadd.f32 %v155, %v228
    %v230 = vpop.f32.mrf.mxu0
    %231 = vmatprep.mubr.f32.mxu0 %v107
    %232 = vmatmul.mubr.f32.gmra.mxu0 %v106
    %v233 = vpop.f32.mrf.mxu0
    %v234 = vadd.f32 %v155, %v233
    %v235 = vpop.f32.mrf.mxu0
    %236 = vmatprep.mubr.f32.mxu0 %v109
    %237 = vmatmul.mubr.f32.gmra.mxu0 %v108
    %v238 = vpop.f32.mrf.mxu0
    %v239 = vadd.f32 %v155, %v238
    %v240 = vpop.f32.mrf.mxu0
    %241 = vmatprep.mubr.f32.mxu0 %v111
    %242 = vmatmul.mubr.f32.gmra.mxu0 %v110
    %v243 = vpop.f32.mrf.mxu0
    %v244 = vadd.f32 %v155, %v243
    %v245 = vpop.f32.mrf.mxu0
    %246 = vmatprep.mubr.f32.mxu0 %v113
    %247 = vmatmul.mubr.f32.gmra.mxu0 %v112
    %v248 = vpop.f32.mrf.mxu0
    %v249 = vadd.f32 %v155, %v248
    %v250 = vpop.f32.mrf.mxu0
    %251 = vmatprep.mubr.f32.mxu0 %v115
    %252 = vmatmul.mubr.f32.gmra.mxu0 %v114
    %v253 = vpop.f32.mrf.mxu0
    %v254 = vadd.f32 %v155, %v253
    %v255 = vpop.f32.mrf.mxu0
    %256 = vmatprep.mubr.f32.mxu0 %v117
    %257 = vmatmul.mubr.f32.gmra.mxu0 %v116
    %v258 = vpop.f32.mrf.mxu0
    %v259 = vadd.f32 %v155, %v258
    %v260 = vpop.f32.mrf.mxu0
    %261 = vdwg.mxu0
    %v262 = vmax.f32 %v224, 0.0
    %v263 = vmax.f32 %v229, 0.0
    %v264 = vmax.f32 %v234, 0.0
    %v265 = vmax.f32 %v239, 0.0
    %v266 = vmax.f32 %v244, 0.0
    %v267 = vmax.f32 %v249, 0.0
    %v268 = vmax.f32 %v254, 0.0
    %v269 = vmax.f32 %v259, 0.0
    %v270 = vld [vmem:[%s5] sm:$0xff]
    %v271 = vld [vmem:[%s5 + $0x8] sm:$0xff]
    %v272 = vld [vmem:[%s5 + $0x10] sm:$0xff]
    %v273 = vld [vmem:[%s5 + $0x18] sm:$0xff]
    %v274 = vld [vmem:[%s5 + $0x20] sm:$0xff]
    %v275 = vld [vmem:[%s5 + $0x28] sm:$0xff]
    %v276 = vld [vmem:[%s5 + $0x30] sm:$0xff]
    %v277 = vld [vmem:[%s5 + $0x38] sm:$0xff]
    %v278 = vld [vmem:[%s5 + $0x40] sm:$0xff]
    %v279 = vld [vmem:[%s5 + $0x48] sm:$0xff]
    %v280 = vld [vmem:[%s5 + $0x50] sm:$0xff]
    %v281 = vld [vmem:[%s5 + $0x58] sm:$0xff]
    %v282 = vld [vmem:[%s5 + $0x60] sm:$0xff]
    %v283 = vld [vmem:[%s5 + $0x68] sm:$0xff]
    %v284 = vld [vmem:[%s5 + $0x70] sm:$0xff]
    %v285 = vld [vmem:[%s5 + $0x78] sm:$0xff]
    %v286 = vld [vmem:[%s5 + $0x80] sm:$0xff]
    %v287 = vld [vmem:[%s5 + $0x88] sm:$0xff]
    %v288 = vld [vmem:[%s5 + $0x90] sm:$0xff]
    %v289 = vld [vmem:[%s5 + $0x98] sm:$0xff]
    %v290 = vld [vmem:[%s5 + $0xa0] sm:$0xff]
    %v291 = vld [vmem:[%s5 + $0xa8] sm:$0xff]
    %v292 = vld [vmem:[%s5 + $0xb0] sm:$0xff]
    %v293 = vld [vmem:[%s5 + $0xb8] sm:$0xff]
    %v294 = vld [vmem:[%s5 + $0xc0] sm:$0xff]
    %v295 = vld [vmem:[%s5 + $0xc8] sm:$0xff]
    %v296 = vld [vmem:[%s5 + $0xd0] sm:$0xff]
    %v297 = vld [vmem:[%s5 + $0xd8] sm:$0xff]
    %v298 = vld [vmem:[%s5 + $0xe0] sm:$0xff]
    %v299 = vld [vmem:[%s5 + $0xe8] sm:$0xff]
    %v300 = vld [vmem:[%s5 + $0xf0] sm:$0xff]
    %v301 = vld [vmem:[%s5 + $0xf8] sm:$0xff]
    %v302 = vld [vmem:[%s5 + $0x100] sm:$0xff]
    %v303 = vld [vmem:[%s5 + $0x108] sm:$0xff]
    %v304 = vld [vmem:[%s5 + $0x110] sm:$0xff]
    %v305 = vld [vmem:[%s5 + $0x118] sm:$0xff]
    %v306 = vld [vmem:[%s5 + $0x120] sm:$0xff]
    %v307 = vld [vmem:[%s5 + $0x128] sm:$0xff]
    %v308 = vld [vmem:[%s5 + $0x130] sm:$0xff]
    %v309 = vld [vmem:[%s5 + $0x138] sm:$0xff]
    %v310 = vld [vmem:[%s5 + $0x140] sm:$0xff]
    %v311 = vld [vmem:[%s5 + $0x148] sm:$0xff]
    %v312 = vld [vmem:[%s5 + $0x150] sm:$0xff]
    %v313 = vld [vmem:[%s5 + $0x158] sm:$0xff]
    %v314 = vld [vmem:[%s5 + $0x160] sm:$0xff]
    %v315 = vld [vmem:[%s5 + $0x168] sm:$0xff]
    %v316 = vld [vmem:[%s5 + $0x170] sm:$0xff]
    %v317 = vld [vmem:[%s5 + $0x178] sm:$0xff]
    %v318 = vld [vmem:[%s5 + $0x180] sm:$0xff]
    %v319 = vld [vmem:[%s5 + $0x188] sm:$0xff]
    %v320 = vld [vmem:[%s5 + $0x190] sm:$0xff]
    %v321 = vld [vmem:[%s5 + $0x198] sm:$0xff]
    %v322 = vld [vmem:[%s5 + $0x1a0] sm:$0xff]
    %v323 = vld [vmem:[%s5 + $0x1a8] sm:$0xff]
    %v324 = vld [vmem:[%s5 + $0x1b0] sm:$0xff]
    %v325 = vld [vmem:[%s5 + $0x1b8] sm:$0xff]
    %v326 = vld [vmem:[%s5 + $0x1c0] sm:$0xff]
    %v327 = vld [vmem:[%s5 + $0x1c8] sm:$0xff]
    %v328 = vld [vmem:[%s5 + $0x1d0] sm:$0xff]
    %v329 = vld [vmem:[%s5 + $0x1d8] sm:$0xff]
    %v330 = vld [vmem:[%s5 + $0x1e0] sm:$0xff]
    %v331 = vld [vmem:[%s5 + $0x1e8] sm:$0xff]
    %v332 = vld [vmem:[%s5 + $0x1f0] sm:$0xff]
    %v333 = vld [vmem:[%s5 + $0x1f8] sm:$0xff]
    %v334 = vld [vmem:[%s3] sm:$0xff]
    %v335 = vld [vmem:[%s3 + $0x8] sm:$0xff]
    %v336 = vld [vmem:[%s3 + $0x10] sm:$0xff]
    %v337 = vld [vmem:[%s3 + $0x18] sm:$0xff]
    %v338 = vld [vmem:[%s3 + $0x20] sm:$0xff]
    %v339 = vld [vmem:[%s3 + $0x28] sm:$0xff]
    %v340 = vld [vmem:[%s3 + $0x30] sm:$0xff]
    %v341 = vld [vmem:[%s3 + $0x38] sm:$0xff]
    %v342 = vld [vmem:[%s3 + $0x40] sm:$0xff]
    %v343 = vld [vmem:[%s3 + $0x48] sm:$0xff]
    %v344 = vld [vmem:[%s3 + $0x50] sm:$0xff]
    %v345 = vld [vmem:[%s3 + $0x58] sm:$0xff]
    %v346 = vld [vmem:[%s3 + $0x60] sm:$0xff]
    %v347 = vld [vmem:[%s3 + $0x68] sm:$0xff]
    %v348 = vld [vmem:[%s3 + $0x70] sm:$0xff]
    %v349 = vld [vmem:[%s3 + $0x78] sm:$0xff]
    %v350 = vld [vmem:[%s3 + $0x80] sm:$0xff]
    %v351 = vld [vmem:[%s3 + $0x88] sm:$0xff]
    %v352 = vld [vmem:[%s3 + $0x90] sm:$0xff]
    %v353 = vld [vmem:[%s3 + $0x98] sm:$0xff]
    %v354 = vld [vmem:[%s3 + $0xa0] sm:$0xff]
    %v355 = vld [vmem:[%s3 + $0xa8] sm:$0xff]
    %v356 = vld [vmem:[%s3 + $0xb0] sm:$0xff]
    %v357 = vld [vmem:[%s3 + $0xb8] sm:$0xff]
    %v358 = vld [vmem:[%s3 + $0xc0] sm:$0xff]
    %v359 = vld [vmem:[%s3 + $0xc8] sm:$0xff]
    %v360 = vld [vmem:[%s3 + $0xd0] sm:$0xff]
    %v361 = vld [vmem:[%s3 + $0xd8] sm:$0xff]
    %v362 = vld [vmem:[%s3 + $0xe0] sm:$0xff]
    %v363 = vld [vmem:[%s3 + $0xe8] sm:$0xff]
    %v364 = vld [vmem:[%s3 + $0xf0] sm:$0xff]
    %v365 = vld [vmem:[%s3 + $0xf8] sm:$0xff]
    %v366 = vld [vmem:[%s3 + $0x100] sm:$0xff]
    %v367 = vld [vmem:[%s3 + $0x108] sm:$0xff]
    %v368 = vld [vmem:[%s3 + $0x110] sm:$0xff]
    %v369 = vld [vmem:[%s3 + $0x118] sm:$0xff]
    %v370 = vld [vmem:[%s3 + $0x120] sm:$0xff]
    %v371 = vld [vmem:[%s3 + $0x128] sm:$0xff]
    %v372 = vld [vmem:[%s3 + $0x130] sm:$0xff]
    %v373 = vld [vmem:[%s3 + $0x138] sm:$0xff]
    %v374 = vld [vmem:[%s3 + $0x140] sm:$0xff]
    %v375 = vld [vmem:[%s3 + $0x148] sm:$0xff]
    %v376 = vld [vmem:[%s3 + $0x150] sm:$0xff]
    %v377 = vld [vmem:[%s3 + $0x158] sm:$0xff]
    %v378 = vld [vmem:[%s3 + $0x160] sm:$0xff]
    %v379 = vld [vmem:[%s3 + $0x168] sm:$0xff]
    %v380 = vld [vmem:[%s3 + $0x170] sm:$0xff]
    %v381 = vld [vmem:[%s3 + $0x178] sm:$0xff]
    %v382 = vld [vmem:[%s3 + $0x180] sm:$0xff]
    %v383 = vld [vmem:[%s3 + $0x188] sm:$0xff]
    %v384 = vld [vmem:[%s3 + $0x190] sm:$0xff]
    %v385 = vld [vmem:[%s3 + $0x198] sm:$0xff]
    %v386 = vld [vmem:[%s3 + $0x1a0] sm:$0xff]
    %v387 = vld [vmem:[%s3 + $0x1a8] sm:$0xff]
    %v388 = vld [vmem:[%s3 + $0x1b0] sm:$0xff]
    %v389 = vld [vmem:[%s3 + $0x1b8] sm:$0xff]
    %v390 = vld [vmem:[%s3 + $0x1c0] sm:$0xff]
    %v391 = vld [vmem:[%s3 + $0x1c8] sm:$0xff]
    %v392 = vld [vmem:[%s3 + $0x1d0] sm:$0xff]
    %v393 = vld [vmem:[%s3 + $0x1d8] sm:$0xff]
    %v394 = vld [vmem:[%s3 + $0x1e0] sm:$0xff]
    %v395 = vld [vmem:[%s3 + $0x1e8] sm:$0xff]
    %v396 = vld [vmem:[%s3 + $0x1f0] sm:$0xff]
    %v397 = vld [vmem:[%s3 + $0x1f8] sm:$0xff]
    %v398 = vld [vmem:[%s6] sm:$0xf]
    %v400 = vlaneseq
    %v401 = vshrl.u32 %v400, 7
    %v402 = vsub.s32 0, %v401
    %v403 = vrot.slane %v398, %v402
    %v404 = vlaneseq
    %v405 = vshrl.u32 %v404, 7
    %v406 = vsub.s32 1, %v405
    %v407 = vrot.slane %v398, %v406
    %v408 = vlaneseq
    %v409 = vshrl.u32 %v408, 7
    %v410 = vsub.s32 2, %v409
    %v411 = vrot.slane %v398, %v410
    %v412 = vlaneseq
    %v413 = vshrl.u32 %v412, 7
    %v414 = vsub.s32 3, %v413
    %v415 = vrot.slane %v398, %v414
    %420 = vmatprep.subr.mxu0 %v395
    %421 = vmatpush1.msra.mxu0 %v394
    %422 = vmatprep.subr.mxu0 %v391
    %423 = vmatpush1.msra.mxu0 %v390
    %424 = vmatprep.subr.mxu0 %v387
    %425 = vmatpush1.msra.mxu0 %v386
    %426 = vmatprep.subr.mxu0 %v383
    %427 = vmatpush1.msra.mxu0 %v382
    %428 = vmatprep.subr.mxu0 %v379
    %429 = vmatpush1.msra.mxu0 %v378
    %430 = vmatprep.subr.mxu0 %v375
    %431 = vmatpush1.msra.mxu0 %v374
    %432 = vmatprep.subr.mxu0 %v371
    %433 = vmatpush1.msra.mxu0 %v370
    %434 = vmatprep.subr.mxu0 %v367
    %435 = vmatpush1.msra.mxu0 %v366
    %436 = vmatprep.subr.mxu0 %v363
    %437 = vmatpush1.msra.mxu0 %v362
    %438 = vmatprep.subr.mxu0 %v359
    %439 = vmatpush1.msra.mxu0 %v358
    %440 = vmatprep.subr.mxu0 %v355
    %441 = vmatpush1.msra.mxu0 %v354
    %442 = vmatprep.subr.mxu0 %v351
    %443 = vmatpush1.msra.mxu0 %v350
    %444 = vmatprep.subr.mxu0 %v347
    %445 = vmatpush1.msra.mxu0 %v346
    %446 = vmatprep.subr.mxu0 %v343
    %447 = vmatpush1.msra.mxu0 %v342
    %448 = vmatprep.subr.mxu0 %v339
    %449 = vmatpush1.msra.mxu0 %v338
    %450 = vmatprep.subr.mxu0 %v335
    %451 = vmatpush1.msra.mxu0 %v334
    %452 = vmatprep.subr.mxu0 0.0
    %453 = vmatpush2.msra.mxu0 0.0
    %454 = vmatprep.subr.mxu0 0.0
    %455 = vmatpush2.msra.mxu0 0.0
    %456 = vmatprep.subr.mxu0 0.0
    %457 = vmatpush2.msra.mxu0 0.0
    %458 = vmatprep.subr.mxu0 0.0
    %459 = vmatpush2.msra.mxu0 0.0
    %460 = vmatprep.subr.mxu0 0.0
    %461 = vmatpush2.msra.mxu0 0.0
    %462 = vmatprep.subr.mxu0 0.0
    %463 = vmatpush2.msra.mxu0 0.0
    %464 = vmatprep.subr.mxu0 0.0
    %465 = vmatpush2.msra.mxu0 0.0
    %466 = vmatprep.subr.mxu0 0.0
    %467 = vmatpush2.msra.mxu0 0.0
    %468 = vmatprep.subr.mxu0 0.0
    %469 = vmatpush2.msra.mxu0 0.0
    %470 = vmatprep.subr.mxu0 0.0
    %471 = vmatpush2.msra.mxu0 0.0
    %472 = vmatprep.subr.mxu0 0.0
    %473 = vmatpush2.msra.mxu0 0.0
    %474 = vmatprep.subr.mxu0 0.0
    %475 = vmatpush2.msra.mxu0 0.0
    %476 = vmatprep.subr.mxu0 0.0
    %477 = vmatpush2.msra.mxu0 0.0
    %478 = vmatprep.subr.mxu0 0.0
    %479 = vmatpush2.msra.mxu0 0.0
    %480 = vmatprep.subr.mxu0 0.0
    %481 = vmatpush2.msra.mxu0 0.0
    %482 = vmatprep.subr.mxu0 0.0
    %483 = vmatpush2.msra.mxu0 0.0
    %484 = vmatprep.mubr.f32.mxu0 0.0
    %485 = vmatmul.mubr.f32.gmra.mxu0 %v262
    %v486 = vpop.f32.mrf.mxu0
    %v487 = vadd.f32 %v403, %v486
    %v488 = vpop.f32.mrf.mxu0
    %v489 = vadd.f32 %v407, %v488
    %490 = vmatprep.mubr.f32.mxu0 0.0
    %491 = vmatmul.mubr.f32.gmra.mxu0 %v263
    %v492 = vpop.f32.mrf.mxu0
    %v493 = vadd.f32 %v403, %v492
    %v494 = vpop.f32.mrf.mxu0
    %v495 = vadd.f32 %v407, %v494
    %496 = vmatprep.mubr.f32.mxu0 0.0
    %497 = vmatmul.mubr.f32.gmra.mxu0 %v264
    %v498 = vpop.f32.mrf.mxu0
    %v499 = vadd.f32 %v403, %v498
    %v500 = vpop.f32.mrf.mxu0
    %v501 = vadd.f32 %v407, %v500
    %502 = vmatprep.mubr.f32.mxu0 0.0
    %503 = vmatmul.mubr.f32.gmra.mxu0 %v265
    %v504 = vpop.f32.mrf.mxu0
    %v505 = vadd.f32 %v403, %v504
    %v506 = vpop.f32.mrf.mxu0
    %v507 = vadd.f32 %v407, %v506
    %508 = vmatprep.mubr.f32.mxu0 0.0
    %509 = vmatmul.mubr.f32.gmra.mxu0 %v266
    %v510 = vpop.f32.mrf.mxu0
    %v511 = vadd.f32 %v403, %v510
    %v512 = vpop.f32.mrf.mxu0
    %v513 = vadd.f32 %v407, %v512
    %514 = vmatprep.mubr.f32.mxu0 0.0
    %515 = vmatmul.mubr.f32.gmra.mxu0 %v267
    %v516 = vpop.f32.mrf.mxu0
    %v517 = vadd.f32 %v403, %v516
    %v518 = vpop.f32.mrf.mxu0
    %v519 = vadd.f32 %v407, %v518
    %520 = vmatprep.mubr.f32.mxu0 0.0
    %521 = vmatmul.mubr.f32.gmra.mxu0 %v268
    %v522 = vpop.f32.mrf.mxu0
    %v523 = vadd.f32 %v403, %v522
    %v524 = vpop.f32.mrf.mxu0
    %v525 = vadd.f32 %v407, %v524
    %526 = vmatprep.mubr.f32.mxu0 0.0
    %527 = vmatmul.mubr.f32.gmra.mxu0 %v269
    %v528 = vpop.f32.mrf.mxu0
    %v529 = vadd.f32 %v403, %v528
    %v530 = vpop.f32.mrf.mxu0
    %v531 = vadd.f32 %v407, %v530
    %532 = vdwg.mxu0
    %533 = vmatprep.subr.mxu0 %v397
    %534 = vmatpush1.msra.mxu0 %v396
    %535 = vmatprep.subr.mxu0 %v393
    %536 = vmatpush1.msra.mxu0 %v392
    %537 = vmatprep.subr.mxu0 %v389
    %538 = vmatpush1.msra.mxu0 %v388
    %539 = vmatprep.subr.mxu0 %v385
    %540 = vmatpush1.msra.mxu0 %v384
    %541 = vmatprep.subr.mxu0 %v381
    %542 = vmatpush1.msra.mxu0 %v380
    %543 = vmatprep.subr.mxu0 %v377
    %544 = vmatpush1.msra.mxu0 %v376
    %545 = vmatprep.subr.mxu0 %v373
    %546 = vmatpush1.msra.mxu0 %v372
    %547 = vmatprep.subr.mxu0 %v369
    %548 = vmatpush1.msra.mxu0 %v368
    %549 = vmatprep.subr.mxu0 %v365
    %550 = vmatpush1.msra.mxu0 %v364
    %551 = vmatprep.subr.mxu0 %v361
    %552 = vmatpush1.msra.mxu0 %v360
    %553 = vmatprep.subr.mxu0 %v357
    %554 = vmatpush1.msra.mxu0 %v356
    %555 = vmatprep.subr.mxu0 %v353
    %556 = vmatpush1.msra.mxu0 %v352
    %557 = vmatprep.subr.mxu0 %v349
    %558 = vmatpush1.msra.mxu0 %v348
    %559 = vmatprep.subr.mxu0 %v345
    %560 = vmatpush1.msra.mxu0 %v344
    %561 = vmatprep.subr.mxu0 %v341
    %562 = vmatpush1.msra.mxu0 %v340
    %563 = vmatprep.subr.mxu0 %v337
    %564 = vmatpush1.msra.mxu0 %v336
    %565 = vmatprep.subr.mxu0 0.0
    %566 = vmatpush2.msra.mxu0 0.0
    %567 = vmatprep.subr.mxu0 0.0
    %568 = vmatpush2.msra.mxu0 0.0
    %569 = vmatprep.subr.mxu0 0.0
    %570 = vmatpush2.msra.mxu0 0.0
    %571 = vmatprep.subr.mxu0 0.0
    %572 = vmatpush2.msra.mxu0 0.0
    %573 = vmatprep.subr.mxu0 0.0
    %574 = vmatpush2.msra.mxu0 0.0
    %575 = vmatprep.subr.mxu0 0.0
    %576 = vmatpush2.msra.mxu0 0.0
    %577 = vmatprep.subr.mxu0 0.0
    %578 = vmatpush2.msra.mxu0 0.0
    %579 = vmatprep.subr.mxu0 0.0
    %580 = vmatpush2.msra.mxu0 0.0
    %581 = vmatprep.subr.mxu0 0.0
    %582 = vmatpush2.msra.mxu0 0.0
    %583 = vmatprep.subr.mxu0 0.0
    %584 = vmatpush2.msra.mxu0 0.0
    %585 = vmatprep.subr.mxu0 0.0
    %586 = vmatpush2.msra.mxu0 0.0
    %587 = vmatprep.subr.mxu0 0.0
    %588 = vmatpush2.msra.mxu0 0.0
    %589 = vmatprep.subr.mxu0 0.0
    %590 = vmatpush2.msra.mxu0 0.0
    %591 = vmatprep.subr.mxu0 0.0
    %592 = vmatpush2.msra.mxu0 0.0
    %593 = vmatprep.subr.mxu0 0.0
    %594 = vmatpush2.msra.mxu0 0.0
    %595 = vmatprep.subr.mxu0 0.0
    %596 = vmatpush2.msra.mxu0 0.0
    %597 = vmatprep.mubr.f32.mxu0 0.0
    %598 = vmatmul.mubr.f32.gmra.mxu0 %v262
    %v599 = vpop.f32.mrf.mxu0
    %v600 = vadd.f32 %v411, %v599
    %v601 = vpop.f32.mrf.mxu0
    %v602 = vadd.f32 %v415, %v601
    %603 = vmatprep.mubr.f32.mxu0 0.0
    %604 = vmatmul.mubr.f32.gmra.mxu0 %v263
    %v605 = vpop.f32.mrf.mxu0
    %v606 = vadd.f32 %v411, %v605
    %v607 = vpop.f32.mrf.mxu0
    %v608 = vadd.f32 %v415, %v607
    %609 = vmatprep.mubr.f32.mxu0 0.0
    %610 = vmatmul.mubr.f32.gmra.mxu0 %v264
    %v611 = vpop.f32.mrf.mxu0
    %v612 = vadd.f32 %v411, %v611
    %v613 = vpop.f32.mrf.mxu0
    %v614 = vadd.f32 %v415, %v613
    %615 = vmatprep.mubr.f32.mxu0 0.0
    %616 = vmatmul.mubr.f32.gmra.mxu0 %v265
    %v617 = vpop.f32.mrf.mxu0
    %v618 = vadd.f32 %v411, %v617
    %v619 = vpop.f32.mrf.mxu0
    %v620 = vadd.f32 %v415, %v619
    %621 = vmatprep.mubr.f32.mxu0 0.0
    %622 = vmatmul.mubr.f32.gmra.mxu0 %v266
    %v623 = vpop.f32.mrf.mxu0
    %v624 = vadd.f32 %v411, %v623
    %v625 = vpop.f32.mrf.mxu0
    %v626 = vadd.f32 %v415, %v625
    %627 = vmatprep.mubr.f32.mxu0 0.0
    %628 = vmatmul.mubr.f32.gmra.mxu0 %v267
    %v629 = vpop.f32.mrf.mxu0
    %v630 = vadd.f32 %v411, %v629
    %v631 = vpop.f32.mrf.mxu0
    %v632 = vadd.f32 %v415, %v631
    %633 = vmatprep.mubr.f32.mxu0 0.0
    %634 = vmatmul.mubr.f32.gmra.mxu0 %v268
    %v635 = vpop.f32.mrf.mxu0
    %v636 = vadd.f32 %v411, %v635
    %v637 = vpop.f32.mrf.mxu0
    %v638 = vadd.f32 %v415, %v637
    %639 = vmatprep.mubr.f32.mxu0 0.0
    %640 = vmatmul.mubr.f32.gmra.mxu0 %v269
    %v641 = vpop.f32.mrf.mxu0
    %v642 = vadd.f32 %v411, %v641
    %v643 = vpop.f32.mrf.mxu0
    %v644 = vadd.f32 %v415, %v643
    %645 = vdwg.mxu0
    %v646 = vld [vmem:[%s4] sm:$0xff]
    %v647 = vld [vmem:[%s4 + $0x8] sm:$0xff]
    %v648 = vld [vmem:[%s4 + $0x10] sm:$0xff]
    %v649 = vld [vmem:[%s4 + $0x18] sm:$0xff]
    %v650 = vld [vmem:[%s4 + $0x20] sm:$0xff]
    %v651 = vld [vmem:[%s4 + $0x28] sm:$0xff]
    %v652 = vld [vmem:[%s4 + $0x30] sm:$0xff]
    %v653 = vld [vmem:[%s4 + $0x38] sm:$0xff]
    %v654 = vld [vmem:[%s4 + $0x40] sm:$0xff]
    %v655 = vld [vmem:[%s4 + $0x48] sm:$0xff]
    %v656 = vld [vmem:[%s4 + $0x50] sm:$0xff]
    %v657 = vld [vmem:[%s4 + $0x58] sm:$0xff]
    %v658 = vld [vmem:[%s4 + $0x60] sm:$0xff]
    %v659 = vld [vmem:[%s4 + $0x68] sm:$0xff]
    %v660 = vld [vmem:[%s4 + $0x70] sm:$0xff]
    %v661 = vld [vmem:[%s4 + $0x78] sm:$0xff]
    %v662 = vld [vmem:[%s4 + $0x80] sm:$0xff]
    %v663 = vld [vmem:[%s4 + $0x88] sm:$0xff]
    %v664 = vld [vmem:[%s4 + $0x90] sm:$0xff]
    %v665 = vld [vmem:[%s4 + $0x98] sm:$0xff]
    %v666 = vld [vmem:[%s4 + $0xa0] sm:$0xff]
    %v667 = vld [vmem:[%s4 + $0xa8] sm:$0xff]
    %v668 = vld [vmem:[%s4 + $0xb0] sm:$0xff]
    %v669 = vld [vmem:[%s4 + $0xb8] sm:$0xff]
    %v670 = vld [vmem:[%s4 + $0xc0] sm:$0xff]
    %v671 = vld [vmem:[%s4 + $0xc8] sm:$0xff]
    %v672 = vld [vmem:[%s4 + $0xd0] sm:$0xff]
    %v673 = vld [vmem:[%s4 + $0xd8] sm:$0xff]
    %v674 = vld [vmem:[%s4 + $0xe0] sm:$0xff]
    %v675 = vld [vmem:[%s4 + $0xe8] sm:$0xff]
    %v676 = vld [vmem:[%s4 + $0xf0] sm:$0xff]
    %v677 = vld [vmem:[%s4 + $0xf8] sm:$0xff]
    %v678 = vld [vmem:[%s4 + $0x100] sm:$0xff]
    %v679 = vld [vmem:[%s4 + $0x108] sm:$0xff]
    %v680 = vld [vmem:[%s4 + $0x110] sm:$0xff]
    %v681 = vld [vmem:[%s4 + $0x118] sm:$0xff]
    %v682 = vld [vmem:[%s4 + $0x120] sm:$0xff]
    %v683 = vld [vmem:[%s4 + $0x128] sm:$0xff]
    %v684 = vld [vmem:[%s4 + $0x130] sm:$0xff]
    %v685 = vld [vmem:[%s4 + $0x138] sm:$0xff]
    %v686 = vld [vmem:[%s4 + $0x140] sm:$0xff]
    %v687 = vld [vmem:[%s4 + $0x148] sm:$0xff]
    %v688 = vld [vmem:[%s4 + $0x150] sm:$0xff]
    %v689 = vld [vmem:[%s4 + $0x158] sm:$0xff]
    %v690 = vld [vmem:[%s4 + $0x160] sm:$0xff]
    %v691 = vld [vmem:[%s4 + $0x168] sm:$0xff]
    %v692 = vld [vmem:[%s4 + $0x170] sm:$0xff]
    %v693 = vld [vmem:[%s4 + $0x178] sm:$0xff]
    %v694 = vld [vmem:[%s4 + $0x180] sm:$0xff]
    %v695 = vld [vmem:[%s4 + $0x188] sm:$0xff]
    %v696 = vld [vmem:[%s4 + $0x190] sm:$0xff]
    %v697 = vld [vmem:[%s4 + $0x198] sm:$0xff]
    %v698 = vld [vmem:[%s4 + $0x1a0] sm:$0xff]
    %v699 = vld [vmem:[%s4 + $0x1a8] sm:$0xff]
    %v700 = vld [vmem:[%s4 + $0x1b0] sm:$0xff]
    %v701 = vld [vmem:[%s4 + $0x1b8] sm:$0xff]
    %v702 = vld [vmem:[%s4 + $0x1c0] sm:$0xff]
    %v703 = vld [vmem:[%s4 + $0x1c8] sm:$0xff]
    %v704 = vld [vmem:[%s4 + $0x1d0] sm:$0xff]
    %v705 = vld [vmem:[%s4 + $0x1d8] sm:$0xff]
    %v706 = vld [vmem:[%s4 + $0x1e0] sm:$0xff]
    %v707 = vld [vmem:[%s4 + $0x1e8] sm:$0xff]
    %v708 = vld [vmem:[%s4 + $0x1f0] sm:$0xff]
    %v709 = vld [vmem:[%s4 + $0x1f8] sm:$0xff]
    %710 = vmatprep.subr.mxu0 %v707
    %711 = vmatpush1.msra.mxu0 %v706
    %712 = vmatprep.subr.mxu0 %v703
    %713 = vmatpush1.msra.mxu0 %v702
    %714 = vmatprep.subr.mxu0 %v699
    %715 = vmatpush1.msra.mxu0 %v698
    %716 = vmatprep.subr.mxu0 %v695
    %717 = vmatpush1.msra.mxu0 %v694
    %718 = vmatprep.subr.mxu0 %v691
    %719 = vmatpush1.msra.mxu0 %v690
    %720 = vmatprep.subr.mxu0 %v687
    %721 = vmatpush1.msra.mxu0 %v686
    %722 = vmatprep.subr.mxu0 %v683
    %723 = vmatpush1.msra.mxu0 %v682
    %724 = vmatprep.subr.mxu0 %v679
    %725 = vmatpush1.msra.mxu0 %v678
    %726 = vmatprep.subr.mxu0 %v675
    %727 = vmatpush1.msra.mxu0 %v674
    %728 = vmatprep.subr.mxu0 %v671
    %729 = vmatpush1.msra.mxu0 %v670
    %730 = vmatprep.subr.mxu0 %v667
    %731 = vmatpush1.msra.mxu0 %v666
    %732 = vmatprep.subr.mxu0 %v663
    %733 = vmatpush1.msra.mxu0 %v662
    %734 = vmatprep.subr.mxu0 %v659
    %735 = vmatpush1.msra.mxu0 %v658
    %736 = vmatprep.subr.mxu0 %v655
    %737 = vmatpush1.msra.mxu0 %v654
    %738 = vmatprep.subr.mxu0 %v651
    %739 = vmatpush1.msra.mxu0 %v650
    %740 = vmatprep.subr.mxu0 %v647
    %741 = vmatpush1.msra.mxu0 %v646
    %742 = vmatprep.subr.mxu0 0.0
    %743 = vmatpush2.msra.mxu0 0.0
    %744 = vmatprep.subr.mxu0 0.0
    %745 = vmatpush2.msra.mxu0 0.0
    %746 = vmatprep.subr.mxu0 0.0
    %747 = vmatpush2.msra.mxu0 0.0
    %748 = vmatprep.subr.mxu0 0.0
    %749 = vmatpush2.msra.mxu0 0.0
    %750 = vmatprep.subr.mxu0 0.0
    %751 = vmatpush2.msra.mxu0 0.0
    %752 = vmatprep.subr.mxu0 0.0
    %753 = vmatpush2.msra.mxu0 0.0
    %754 = vmatprep.subr.mxu0 0.0
    %755 = vmatpush2.msra.mxu0 0.0
    %756 = vmatprep.subr.mxu0 0.0
    %757 = vmatpush2.msra.mxu0 0.0
    %758 = vmatprep.subr.mxu0 0.0
    %759 = vmatpush2.msra.mxu0 0.0
    %760 = vmatprep.subr.mxu0 0.0
    %761 = vmatpush2.msra.mxu0 0.0
    %762 = vmatprep.subr.mxu0 0.0
    %763 = vmatpush2.msra.mxu0 0.0
    %764 = vmatprep.subr.mxu0 0.0
    %765 = vmatpush2.msra.mxu0 0.0
    %766 = vmatprep.subr.mxu0 0.0
    %767 = vmatpush2.msra.mxu0 0.0
    %768 = vmatprep.subr.mxu0 0.0
    %769 = vmatpush2.msra.mxu0 0.0
    %770 = vmatprep.subr.mxu0 0.0
    %771 = vmatpush2.msra.mxu0 0.0
    %772 = vmatprep.subr.mxu0 0.0
    %773 = vmatpush2.msra.mxu0 0.0
    %774 = vmatprep.mubr.f32.mxu0 0.0
    %775 = vmatmul.mubr.f32.gmra.mxu0 %v262
    %v776 = vpop.f32.mrf.mxu0
    %v777 = vadd.f32 0.0, %v776
    %v778 = vpop.f32.mrf.mxu0
    %v779 = vadd.f32 0.0, %v778
    %780 = vmatprep.mubr.f32.mxu0 0.0
    %781 = vmatmul.mubr.f32.gmra.mxu0 %v263
    %v782 = vpop.f32.mrf.mxu0
    %v783 = vadd.f32 0.0, %v782
    %v784 = vpop.f32.mrf.mxu0
    %v785 = vadd.f32 0.0, %v784
    %786 = vmatprep.mubr.f32.mxu0 0.0
    %787 = vmatmul.mubr.f32.gmra.mxu0 %v264
    %v788 = vpop.f32.mrf.mxu0
    %v789 = vadd.f32 0.0, %v788
    %v790 = vpop.f32.mrf.mxu0
    %v791 = vadd.f32 0.0, %v790
    %792 = vmatprep.mubr.f32.mxu0 0.0
    %793 = vmatmul.mubr.f32.gmra.mxu0 %v265
    %v794 = vpop.f32.mrf.mxu0
    %v795 = vadd.f32 0.0, %v794
    %v796 = vpop.f32.mrf.mxu0
    %v797 = vadd.f32 0.0, %v796
    %798 = vmatprep.mubr.f32.mxu0 0.0
    %799 = vmatmul.mubr.f32.gmra.mxu0 %v266
    %v800 = vpop.f32.mrf.mxu0
    %v801 = vadd.f32 0.0, %v800
    %v802 = vpop.f32.mrf.mxu0
    %v803 = vadd.f32 0.0, %v802
    %804 = vmatprep.mubr.f32.mxu0 0.0
    %805 = vmatmul.mubr.f32.gmra.mxu0 %v267
    %v806 = vpop.f32.mrf.mxu0
    %v807 = vadd.f32 0.0, %v806
    %v808 = vpop.f32.mrf.mxu0
    %v809 = vadd.f32 0.0, %v808
    %810 = vmatprep.mubr.f32.mxu0 0.0
    %811 = vmatmul.mubr.f32.gmra.mxu0 %v268
    %v812 = vpop.f32.mrf.mxu0
    %v813 = vadd.f32 0.0, %v812
    %v814 = vpop.f32.mrf.mxu0
    %v815 = vadd.f32 0.0, %v814
    %816 = vmatprep.mubr.f32.mxu0 0.0
    %817 = vmatmul.mubr.f32.gmra.mxu0 %v269
    %v818 = vpop.f32.mrf.mxu0
    %v819 = vadd.f32 0.0, %v818
    %v820 = vpop.f32.mrf.mxu0
    %v821 = vadd.f32 0.0, %v820
    %822 = vdwg.mxu0
    %823 = vmatprep.subr.mxu0 %v709
    %824 = vmatpush1.msra.mxu0 %v708
    %825 = vmatprep.subr.mxu0 %v705
    %826 = vmatpush1.msra.mxu0 %v704
    %827 = vmatprep.subr.mxu0 %v701
    %828 = vmatpush1.msra.mxu0 %v700
    %829 = vmatprep.subr.mxu0 %v697
    %830 = vmatpush1.msra.mxu0 %v696
    %831 = vmatprep.subr.mxu0 %v693
    %832 = vmatpush1.msra.mxu0 %v692
    %833 = vmatprep.subr.mxu0 %v689
    %834 = vmatpush1.msra.mxu0 %v688
    %835 = vmatprep.subr.mxu0 %v685
    %836 = vmatpush1.msra.mxu0 %v684
    %837 = vmatprep.subr.mxu0 %v681
    %838 = vmatpush1.msra.mxu0 %v680
    %839 = vmatprep.subr.mxu0 %v677
    %840 = vmatpush1.msra.mxu0 %v676
    %841 = vmatprep.subr.mxu0 %v673
    %842 = vmatpush1.msra.mxu0 %v672
    %843 = vmatprep.subr.mxu0 %v669
    %844 = vmatpush1.msra.mxu0 %v668
    %845 = vmatprep.subr.mxu0 %v665
    %846 = vmatpush1.msra.mxu0 %v664
    %847 = vmatprep.subr.mxu0 %v661
    %848 = vmatpush1.msra.mxu0 %v660
    %849 = vmatprep.subr.mxu0 %v657
    %850 = vmatpush1.msra.mxu0 %v656
    %851 = vmatprep.subr.mxu0 %v653
    %852 = vmatpush1.msra.mxu0 %v652
    %853 = vmatprep.subr.mxu0 %v649
    %854 = vmatpush1.msra.mxu0 %v648
    %855 = vmatprep.subr.mxu0 0.0
    %856 = vmatpush2.msra.mxu0 0.0
    %857 = vmatprep.subr.mxu0 0.0
    %858 = vmatpush2.msra.mxu0 0.0
    %859 = vmatprep.subr.mxu0 0.0
    %860 = vmatpush2.msra.mxu0 0.0
    %861 = vmatprep.subr.mxu0 0.0
    %862 = vmatpush2.msra.mxu0 0.0
    %863 = vmatprep.subr.mxu0 0.0
    %864 = vmatpush2.msra.mxu0 0.0
    %865 = vmatprep.subr.mxu0 0.0
    %866 = vmatpush2.msra.mxu0 0.0
    %867 = vmatprep.subr.mxu0 0.0
    %868 = vmatpush2.msra.mxu0 0.0
    %869 = vmatprep.subr.mxu0 0.0
    %870 = vmatpush2.msra.mxu0 0.0
    %871 = vmatprep.subr.mxu0 0.0
    %872 = vmatpush2.msra.mxu0 0.0
    %873 = vmatprep.subr.mxu0 0.0
    %874 = vmatpush2.msra.mxu0 0.0
    %875 = vmatprep.subr.mxu0 0.0
    %876 = vmatpush2.msra.mxu0 0.0
    %877 = vmatprep.subr.mxu0 0.0
    %878 = vmatpush2.msra.mxu0 0.0
    %879 = vmatprep.subr.mxu0 0.0
    %880 = vmatpush2.msra.mxu0 0.0
    %881 = vmatprep.subr.mxu0 0.0
    %882 = vmatpush2.msra.mxu0 0.0
    %883 = vmatprep.subr.mxu0 0.0
    %884 = vmatpush2.msra.mxu0 0.0
    %885 = vmatprep.subr.mxu0 0.0
    %886 = vmatpush2.msra.mxu0 0.0
    %887 = vmatprep.mubr.f32.mxu0 0.0
    %888 = vmatmul.mubr.f32.gmra.mxu0 %v262
    %v889 = vpop.f32.mrf.mxu0
    %v890 = vadd.f32 0.0, %v889
    %v891 = vpop.f32.mrf.mxu0
    %v892 = vadd.f32 0.0, %v891
    %893 = vmatprep.mubr.f32.mxu0 0.0
    %894 = vmatmul.mubr.f32.gmra.mxu0 %v263
    %v895 = vpop.f32.mrf.mxu0
    %v896 = vadd.f32 0.0, %v895
    %v897 = vpop.f32.mrf.mxu0
    %v898 = vadd.f32 0.0, %v897
    %899 = vmatprep.mubr.f32.mxu0 0.0
    %900 = vmatmul.mubr.f32.gmra.mxu0 %v264
    %v901 = vpop.f32.mrf.mxu0
    %v902 = vadd.f32 0.0, %v901
    %v903 = vpop.f32.mrf.mxu0
    %v904 = vadd.f32 0.0, %v903
    %905 = vmatprep.mubr.f32.mxu0 0.0
    %906 = vmatmul.mubr.f32.gmra.mxu0 %v265
    %v907 = vpop.f32.mrf.mxu0
    %v908 = vadd.f32 0.0, %v907
    %v909 = vpop.f32.mrf.mxu0
    %v910 = vadd.f32 0.0, %v909
    %911 = vmatprep.mubr.f32.mxu0 0.0
    %912 = vmatmul.mubr.f32.gmra.mxu0 %v266
    %v913 = vpop.f32.mrf.mxu0
    %v914 = vadd.f32 0.0, %v913
    %v915 = vpop.f32.mrf.mxu0
    %v916 = vadd.f32 0.0, %v915
    %917 = vmatprep.mubr.f32.mxu0 0.0
    %918 = vmatmul.mubr.f32.gmra.mxu0 %v267
    %v919 = vpop.f32.mrf.mxu0
    %v920 = vadd.f32 0.0, %v919
    %v921 = vpop.f32.mrf.mxu0
    %v922 = vadd.f32 0.0, %v921
    %923 = vmatprep.mubr.f32.mxu0 0.0
    %924 = vmatmul.mubr.f32.gmra.mxu0 %v268
    %v925 = vpop.f32.mrf.mxu0
    %v926 = vadd.f32 0.0, %v925
    %v927 = vpop.f32.mrf.mxu0
    %v928 = vadd.f32 0.0, %v927
    %929 = vmatprep.mubr.f32.mxu0 0.0
    %930 = vmatmul.mubr.f32.gmra.mxu0 %v269
    %v931 = vpop.f32.mrf.mxu0
    %v932 = vadd.f32 0.0, %v931
    %v933 = vpop.f32.mrf.mxu0
    %v934 = vadd.f32 0.0, %v933
    %935 = vdwg.mxu0
    %v936 = vadd.f32 %v487, %v819
    %v937 = vadd.f32 %v489, %v821
    %v938 = vadd.f32 %v600, %v932
    %v939 = vadd.f32 %v602, %v934
    %940 = vmatprep.subr.mxu0 %v331
    %941 = vmatpush1.msra.mxu0 %v330
    %942 = vmatprep.subr.mxu0 %v327
    %943 = vmatpush1.msra.mxu0 %v326
    %944 = vmatprep.subr.mxu0 %v323
    %945 = vmatpush1.msra.mxu0 %v322
    %946 = vmatprep.subr.mxu0 %v319
    %947 = vmatpush1.msra.mxu0 %v318
    %948 = vmatprep.subr.mxu0 %v315
    %949 = vmatpush1.msra.mxu0 %v314
    %950 = vmatprep.subr.mxu0 %v311
    %951 = vmatpush1.msra.mxu0 %v310
    %952 = vmatprep.subr.mxu0 %v307
    %953 = vmatpush1.msra.mxu0 %v306
    %954 = vmatprep.subr.mxu0 %v303
    %955 = vmatpush1.msra.mxu0 %v302
    %956 = vmatprep.subr.mxu0 %v299
    %957 = vmatpush1.msra.mxu0 %v298
    %958 = vmatprep.subr.mxu0 %v295
    %959 = vmatpush1.msra.mxu0 %v294
    %960 = vmatprep.subr.mxu0 %v291
    %961 = vmatpush1.msra.mxu0 %v290
    %962 = vmatprep.subr.mxu0 %v287
    %963 = vmatpush1.msra.mxu0 %v286
    %964 = vmatprep.subr.mxu0 %v283
    %965 = vmatpush1.msra.mxu0 %v282
    %966 = vmatprep.subr.mxu0 %v279
    %967 = vmatpush1.msra.mxu0 %v278
    %968 = vmatprep.subr.mxu0 %v275
    %969 = vmatpush1.msra.mxu0 %v274
    %970 = vmatprep.subr.mxu0 %v271
    %971 = vmatpush1.msra.mxu0 %v270
    %972 = vmatprep.subr.mxu0 0.0
    %973 = vmatpush2.msra.mxu0 0.0
    %974 = vmatprep.subr.mxu0 0.0
    %975 = vmatpush2.msra.mxu0 0.0
    %976 = vmatprep.subr.mxu0 0.0
    %977 = vmatpush2.msra.mxu0 0.0
    %978 = vmatprep.subr.mxu0 0.0
    %979 = vmatpush2.msra.mxu0 0.0
    %980 = vmatprep.subr.mxu0 0.0
    %981 = vmatpush2.msra.mxu0 0.0
    %982 = vmatprep.subr.mxu0 0.0
    %983 = vmatpush2.msra.mxu0 0.0
    %984 = vmatprep.subr.mxu0 0.0
    %985 = vmatpush2.msra.mxu0 0.0
    %986 = vmatprep.subr.mxu0 0.0
    %987 = vmatpush2.msra.mxu0 0.0
    %988 = vmatprep.subr.mxu0 0.0
    %989 = vmatpush2.msra.mxu0 0.0
    %990 = vmatprep.subr.mxu0 0.0
    %991 = vmatpush2.msra.mxu0 0.0
    %992 = vmatprep.subr.mxu0 0.0
    %993 = vmatpush2.msra.mxu0 0.0
    %994 = vmatprep.subr.mxu0 0.0
    %995 = vmatpush2.msra.mxu0 0.0
    %996 = vmatprep.subr.mxu0 0.0
    %997 = vmatpush2.msra.mxu0 0.0
    %998 = vmatprep.subr.mxu0 0.0
    %999 = vmatpush2.msra.mxu0 0.0
    %1000 = vmatprep.subr.mxu0 0.0
    %1001 = vmatpush2.msra.mxu0 0.0
    %1002 = vmatprep.subr.mxu0 0.0
    %1003 = vmatpush2.msra.mxu0 0.0
    %1004 = vmatprep.mubr.f32.mxu0 0.0
    %1005 = vmatmul.mubr.f32.gmra.mxu0 0.0
    %v1006 = vpop.f32.mrf.mxu0
    %v1007 = vadd.f32 0.0, %v1006
    %v1008 = vpop.f32.mrf.mxu0
    %v1009 = vadd.f32 0.0, %v1008
    %1010 = vdwg.mxu0
    %1011 = vmatprep.subr.mxu0 %v333
    %1012 = vmatpush1.msra.mxu0 %v332
    %1013 = vmatprep.subr.mxu0 %v329
    %1014 = vmatpush1.msra.mxu0 %v328
    %1015 = vmatprep.subr.mxu0 %v325
    %1016 = vmatpush1.msra.mxu0 %v324
    %1017 = vmatprep.subr.mxu0 %v321
    %1018 = vmatpush1.msra.mxu0 %v320
    %1019 = vmatprep.subr.mxu0 %v317
    %1020 = vmatpush1.msra.mxu0 %v316
    %1021 = vmatprep.subr.mxu0 %v313
    %1022 = vmatpush1.msra.mxu0 %v312
    %1023 = vmatprep.subr.mxu0 %v309
    %1024 = vmatpush1.msra.mxu0 %v308
    %1025 = vmatprep.subr.mxu0 %v305
    %1026 = vmatpush1.msra.mxu0 %v304
    %1027 = vmatprep.subr.mxu0 %v301
    %1028 = vmatpush1.msra.mxu0 %v300
    %1029 = vmatprep.subr.mxu0 %v297
    %1030 = vmatpush1.msra.mxu0 %v296
    %1031 = vmatprep.subr.mxu0 %v293
    %1032 = vmatpush1.msra.mxu0 %v292
    %1033 = vmatprep.subr.mxu0 %v289
    %1034 = vmatpush1.msra.mxu0 %v288
    %1035 = vmatprep.subr.mxu0 %v285
    %1036 = vmatpush1.msra.mxu0 %v284
    %1037 = vmatprep.subr.mxu0 %v281
    %1038 = vmatpush1.msra.mxu0 %v280
    %1039 = vmatprep.subr.mxu0 %v277
    %1040 = vmatpush1.msra.mxu0 %v276
    %1041 = vmatprep.subr.mxu0 %v273
    %1042 = vmatpush1.msra.mxu0 %v272
    %1043 = vmatprep.subr.mxu0 0.0
    %1044 = vmatpush2.msra.mxu0 0.0
    %1045 = vmatprep.subr.mxu0 0.0
    %1046 = vmatpush2.msra.mxu0 0.0
    %1047 = vmatprep.subr.mxu0 0.0
    %1048 = vmatpush2.msra.mxu0 0.0
    %1049 = vmatprep.subr.mxu0 0.0
    %1050 = vmatpush2.msra.mxu0 0.0
    %1051 = vmatprep.subr.mxu0 0.0
    %1052 = vmatpush2.msra.mxu0 0.0
    %1053 = vmatprep.subr.mxu0 0.0
    %1054 = vmatpush2.msra.mxu0 0.0
    %1055 = vmatprep.subr.mxu0 0.0
    %1056 = vmatpush2.msra.mxu0 0.0
    %1057 = vmatprep.subr.mxu0 0.0
    %1058 = vmatpush2.msra.mxu0 0.0
    %1059 = vmatprep.subr.mxu0 0.0
    %1060 = vmatpush2.msra.mxu0 0.0
    %1061 = vmatprep.subr.mxu0 0.0
    %1062 = vmatpush2.msra.mxu0 0.0
    %1063 = vmatprep.subr.mxu0 0.0
    %1064 = vmatpush2.msra.mxu0 0.0
    %1065 = vmatprep.subr.mxu0 0.0
    %1066 = vmatpush2.msra.mxu0 0.0
    %1067 = vmatprep.subr.mxu0 0.0
    %1068 = vmatpush2.msra.mxu0 0.0
    %1069 = vmatprep.subr.mxu0 0.0
    %1070 = vmatpush2.msra.mxu0 0.0
    %1071 = vmatprep.subr.mxu0 0.0
    %1072 = vmatpush2.msra.mxu0 0.0
    %1073 = vmatprep.subr.mxu0 0.0
    %1074 = vmatpush2.msra.mxu0 0.0
    %1075 = vmatprep.mubr.f32.mxu0 0.0
    %1076 = vmatmul.mubr.f32.gmra.mxu0 0.0
    %v1077 = vpop.f32.mrf.mxu0
    %v1078 = vadd.f32 0.0, %v1077
    %v1079 = vpop.f32.mrf.mxu0
    %v1080 = vadd.f32 0.0, %v1079
    %1081 = vdwg.mxu0
    %v1082 = vadd.f32 %v936, %v1007
    %v1083 = vadd.f32 %v937, %v1009
    %v1084 = vadd.f32 %v938, %v1078
    %v1085 = vadd.f32 %v939, %v1080
    %v1086 = vmul.f32 %v1082, 0.5
    %v1087 = vmul.f32 %v1083, 0.5
    %v1088 = vmul.f32 %v1084, 0.5
    %v1089 = vmul.f32 %v1085, 0.5
    %v1090 = vtanh.pop %v1086
    %v1091 = vtanh.pop %v1087
    %v1092 = vtanh.pop %v1088
    %v1093 = vtanh.pop %v1089
    %v1094 = vmul.f32 %v1090, 0.5
    %v1095 = vadd.f32 %v1094, 0.5
    %v1096 = vmul.f32 %v1091, 0.5
    %v1097 = vadd.f32 %v1096, 0.5
    %v1098 = vmul.f32 %v1092, 0.5
    %v1099 = vadd.f32 %v1098, 0.5
    %v1100 = vmul.f32 %v1097, 0.0
    %v1101 = vmul.f32 %v1095, %v1093
    %v1102 = vadd.f32 %v1100, %v1101
    %v1103 = vtanh.pop %v1102
    %v1104 = vmul.f32 %v1099, %v1103
    %v1105 = vadd.f32 %v493, %v813
    %v1106 = vadd.f32 %v495, %v815
    %v1107 = vadd.f32 %v606, %v926
    %v1108 = vadd.f32 %v608, %v928
    %1109 = vmatprep.subr.mxu0 %v331
    %1110 = vmatpush1.msra.mxu0 %v330
    %1111 = vmatprep.subr.mxu0 %v327
    %1112 = vmatpush1.msra.mxu0 %v326
    %1113 = vmatprep.subr.mxu0 %v323
    %1114 = vmatpush1.msra.mxu0 %v322
    %1115 = vmatprep.subr.mxu0 %v319
    %1116 = vmatpush1.msra.mxu0 %v318
    %1117 = vmatprep.subr.mxu0 %v315
    %1118 = vmatpush1.msra.mxu0 %v314
    %1119 = vmatprep.subr.mxu0 %v311
    %1120 = vmatpush1.msra.mxu0 %v310
    %1121 = vmatprep.subr.mxu0 %v307
    %1122 = vmatpush1.msra.mxu0 %v306
    %1123 = vmatprep.subr.mxu0 %v303
    %1124 = vmatpush1.msra.mxu0 %v302
    %1125 = vmatprep.subr.mxu0 %v299
    %1126 = vmatpush1.msra.mxu0 %v298
    %1127 = vmatprep.subr.mxu0 %v295
    %1128 = vmatpush1.msra.mxu0 %v294
    %1129 = vmatprep.subr.mxu0 %v291
    %1130 = vmatpush1.msra.mxu0 %v290
    %1131 = vmatprep.subr.mxu0 %v287
    %1132 = vmatpush1.msra.mxu0 %v286
    %1133 = vmatprep.subr.mxu0 %v283
    %1134 = vmatpush1.msra.mxu0 %v282
    %1135 = vmatprep.subr.mxu0 %v279
    %1136 = vmatpush1.msra.mxu0 %v278
    %1137 = vmatprep.subr.mxu0 %v275
    %1138 = vmatpush1.msra.mxu0 %v274
    %1139 = vmatprep.subr.mxu0 %v271
    %1140 = vmatpush1.msra.mxu0 %v270
    %1141 = vmatprep.subr.mxu0 0.0
    %1142 = vmatpush2.msra.mxu0 0.0
    %1143 = vmatprep.subr.mxu0 0.0
    %1144 = vmatpush2.msra.mxu0 0.0
    %1145 = vmatprep.subr.mxu0 0.0
    %1146 = vmatpush2.msra.mxu0 0.0
    %1147 = vmatprep.subr.mxu0 0.0
    %1148 = vmatpush2.msra.mxu0 0.0
    %1149 = vmatprep.subr.mxu0 0.0
    %1150 = vmatpush2.msra.mxu0 0.0
    %1151 = vmatprep.subr.mxu0 0.0
    %1152 = vmatpush2.msra.mxu0 0.0
    %1153 = vmatprep.subr.mxu0 0.0
    %1154 = vmatpush2.msra.mxu0 0.0
    %1155 = vmatprep.subr.mxu0 0.0
    %1156 = vmatpush2.msra.mxu0 0.0
    %1157 = vmatprep.subr.mxu0 0.0
    %1158 = vmatpush2.msra.mxu0 0.0
    %1159 = vmatprep.subr.mxu0 0.0
    %1160 = vmatpush2.msra.mxu0 0.0
    %1161 = vmatprep.subr.mxu0 0.0
    %1162 = vmatpush2.msra.mxu0 0.0
    %1163 = vmatprep.subr.mxu0 0.0
    %1164 = vmatpush2.msra.mxu0 0.0
    %1165 = vmatprep.subr.mxu0 0.0
    %1166 = vmatpush2.msra.mxu0 0.0
    %1167 = vmatprep.subr.mxu0 0.0
    %1168 = vmatpush2.msra.mxu0 0.0
    %1169 = vmatprep.subr.mxu0 0.0
    %1170 = vmatpush2.msra.mxu0 0.0
    %1171 = vmatprep.subr.mxu0 0.0
    %1172 = vmatpush2.msra.mxu0 0.0
    %1173 = vmatprep.mubr.f32.mxu0 0.0
    %1174 = vmatmul.mubr.f32.gmra.mxu0 %v1104
    %v1175 = vpop.f32.mrf.mxu0
    %v1176 = vadd.f32 0.0, %v1175
    %v1177 = vpop.f32.mrf.mxu0
    %v1178 = vadd.f32 0.0, %v1177
    %1179 = vdwg.mxu0
    %1180 = vmatprep.subr.mxu0 %v333
    %1181 = vmatpush1.msra.mxu0 %v332
    %1182 = vmatprep.subr.mxu0 %v329
    %1183 = vmatpush1.msra.mxu0 %v328
    %1184 = vmatprep.subr.mxu0 %v325
    %1185 = vmatpush1.msra.mxu0 %v324
    %1186 = vmatprep.subr.mxu0 %v321
    %1187 = vmatpush1.msra.mxu0 %v320
    %1188 = vmatprep.subr.mxu0 %v317
    %1189 = vmatpush1.msra.mxu0 %v316
    %1190 = vmatprep.subr.mxu0 %v313
    %1191 = vmatpush1.msra.mxu0 %v312
    %1192 = vmatprep.subr.mxu0 %v309
    %1193 = vmatpush1.msra.mxu0 %v308
    %1194 = vmatprep.subr.mxu0 %v305
    %1195 = vmatpush1.msra.mxu0 %v304
    %1196 = vmatprep.subr.mxu0 %v301
    %1197 = vmatpush1.msra.mxu0 %v300
    %1198 = vmatprep.subr.mxu0 %v297
    %1199 = vmatpush1.msra.mxu0 %v296
    %1200 = vmatprep.subr.mxu0 %v293
    %1201 = vmatpush1.msra.mxu0 %v292
    %1202 = vmatprep.subr.mxu0 %v289
    %1203 = vmatpush1.msra.mxu0 %v288
    %1204 = vmatprep.subr.mxu0 %v285
    %1205 = vmatpush1.msra.mxu0 %v284
    %1206 = vmatprep.subr.mxu0 %v281
    %1207 = vmatpush1.msra.mxu0 %v280
    %1208 = vmatprep.subr.mxu0 %v277
    %1209 = vmatpush1.msra.mxu0 %v276
    %1210 = vmatprep.subr.mxu0 %v273
    %1211 = vmatpush1.msra.mxu0 %v272
    %1212 = vmatprep.subr.mxu0 0.0
    %1213 = vmatpush2.msra.mxu0 0.0
    %1214 = vmatprep.subr.mxu0 0.0
    %1215 = vmatpush2.msra.mxu0 0.0
    %1216 = vmatprep.subr.mxu0 0.0
    %1217 = vmatpush2.msra.mxu0 0.0
    %1218 = vmatprep.subr.mxu0 0.0
    %1219 = vmatpush2.msra.mxu0 0.0
    %1220 = vmatprep.subr.mxu0 0.0
    %1221 = vmatpush2.msra.mxu0 0.0
    %1222 = vmatprep.subr.mxu0 0.0
    %1223 = vmatpush2.msra.mxu0 0.0
    %1224 = vmatprep.subr.mxu0 0.0
    %1225 = vmatpush2.msra.mxu0 0.0
    %1226 = vmatprep.subr.mxu0 0.0
    %1227 = vmatpush2.msra.mxu0 0.0
    %1228 = vmatprep.subr.mxu0 0.0
    %1229 = vmatpush2.msra.mxu0 0.0
    %1230 = vmatprep.subr.mxu0 0.0
    %1231 = vmatpush2.msra.mxu0 0.0
    %1232 = vmatprep.subr.mxu0 0.0
    %1233 = vmatpush2.msra.mxu0 0.0
    %1234 = vmatprep.subr.mxu0 0.0
    %1235 = vmatpush2.msra.mxu0 0.0
    %1236 = vmatprep.subr.mxu0 0.0
    %1237 = vmatpush2.msra.mxu0 0.0
    %1238 = vmatprep.subr.mxu0 0.0
    %1239 = vmatpush2.msra.mxu0 0.0
    %1240 = vmatprep.subr.mxu0 0.0
    %1241 = vmatpush2.msra.mxu0 0.0
    %1242 = vmatprep.subr.mxu0 0.0
    %1243 = vmatpush2.msra.mxu0 0.0
    %1244 = vmatprep.mubr.f32.mxu0 0.0
    %1245 = vmatmul.mubr.f32.gmra.mxu0 %v1104
    %v1246 = vpop.f32.mrf.mxu0
    %v1247 = vadd.f32 0.0, %v1246
    %v1248 = vpop.f32.mrf.mxu0
    %v1249 = vadd.f32 0.0, %v1248
    %1250 = vdwg.mxu0
    %v1251 = vadd.f32 %v1105, %v1176
    %v1252 = vadd.f32 %v1106, %v1178
    %v1253 = vadd.f32 %v1107, %v1247
    %v1254 = vadd.f32 %v1108, %v1249
    %v1255 = vmul.f32 %v1251, 0.5
    %v1256 = vmul.f32 %v1252, 0.5
    %v1257 = vmul.f32 %v1253, 0.5
    %v1258 = vmul.f32 %v1254, 0.5
    %v1259 = vtanh.pop %v1255
    %v1260 = vtanh.pop %v1256
    %v1261 = vtanh.pop %v1257
    %v1262 = vtanh.pop %v1258
    %v1263 = vmul.f32 %v1259, 0.5
    %v1264 = vadd.f32 %v1263, 0.5
    %v1265 = vmul.f32 %v1260, 0.5
    %v1266 = vadd.f32 %v1265, 0.5
    %v1267 = vmul.f32 %v1261, 0.5
    %v1268 = vadd.f32 %v1267, 0.5
    %v1269 = vmul.f32 %v1266, %v1102
    %v1270 = vmul.f32 %v1264, %v1262
    %v1271 = vadd.f32 %v1269, %v1270
    %v1272 = vtanh.pop %v1271
    %v1273 = vmul.f32 %v1268, %v1272
    %v1274 = vadd.f32 %v499, %v807
    %v1275 = vadd.f32 %v501, %v809
    %v1276 = vadd.f32 %v612, %v920
    %v1277 = vadd.f32 %v614, %v922
    %1278 = vmatprep.subr.mxu0 %v331
    %1279 = vmatpush1.msra.mxu0 %v330
    %1280 = vmatprep.subr.mxu0 %v327
    %1281 = vmatpush1.msra.mxu0 %v326
    %1282 = vmatprep.subr.mxu0 %v323
    %1283 = vmatpush1.msra.mxu0 %v322
    %1284 = vmatprep.subr.mxu0 %v319
    %1285 = vmatpush1.msra.mxu0 %v318
    %1286 = vmatprep.subr.mxu0 %v315
    %1287 = vmatpush1.msra.mxu0 %v314
    %1288 = vmatprep.subr.mxu0 %v311
    %1289 = vmatpush1.msra.mxu0 %v310
    %1290 = vmatprep.subr.mxu0 %v307
    %1291 = vmatpush1.msra.mxu0 %v306
    %1292 = vmatprep.subr.mxu0 %v303
    %1293 = vmatpush1.msra.mxu0 %v302
    %1294 = vmatprep.subr.mxu0 %v299
    %1295 = vmatpush1.msra.mxu0 %v298
    %1296 = vmatprep.subr.mxu0 %v295
    %1297 = vmatpush1.msra.mxu0 %v294
    %1298 = vmatprep.subr.mxu0 %v291
    %1299 = vmatpush1.msra.mxu0 %v290
    %1300 = vmatprep.subr.mxu0 %v287
    %1301 = vmatpush1.msra.mxu0 %v286
    %1302 = vmatprep.subr.mxu0 %v283
    %1303 = vmatpush1.msra.mxu0 %v282
    %1304 = vmatprep.subr.mxu0 %v279
    %1305 = vmatpush1.msra.mxu0 %v278
    %1306 = vmatprep.subr.mxu0 %v275
    %1307 = vmatpush1.msra.mxu0 %v274
    %1308 = vmatprep.subr.mxu0 %v271
    %1309 = vmatpush1.msra.mxu0 %v270
    %1310 = vmatprep.subr.mxu0 0.0
    %1311 = vmatpush2.msra.mxu0 0.0
    %1312 = vmatprep.subr.mxu0 0.0
    %1313 = vmatpush2.msra.mxu0 0.0
    %1314 = vmatprep.subr.mxu0 0.0
    %1315 = vmatpush2.msra.mxu0 0.0
    %1316 = vmatprep.subr.mxu0 0.0
    %1317 = vmatpush2.msra.mxu0 0.0
    %1318 = vmatprep.subr.mxu0 0.0
    %1319 = vmatpush2.msra.mxu0 0.0
    %1320 = vmatprep.subr.mxu0 0.0
    %1321 = vmatpush2.msra.mxu0 0.0
    %1322 = vmatprep.subr.mxu0 0.0
    %1323 = vmatpush2.msra.mxu0 0.0
    %1324 = vmatprep.subr.mxu0 0.0
    %1325 = vmatpush2.msra.mxu0 0.0
    %1326 = vmatprep.subr.mxu0 0.0
    %1327 = vmatpush2.msra.mxu0 0.0
    %1328 = vmatprep.subr.mxu0 0.0
    %1329 = vmatpush2.msra.mxu0 0.0
    %1330 = vmatprep.subr.mxu0 0.0
    %1331 = vmatpush2.msra.mxu0 0.0
    %1332 = vmatprep.subr.mxu0 0.0
    %1333 = vmatpush2.msra.mxu0 0.0
    %1334 = vmatprep.subr.mxu0 0.0
    %1335 = vmatpush2.msra.mxu0 0.0
    %1336 = vmatprep.subr.mxu0 0.0
    %1337 = vmatpush2.msra.mxu0 0.0
    %1338 = vmatprep.subr.mxu0 0.0
    %1339 = vmatpush2.msra.mxu0 0.0
    %1340 = vmatprep.subr.mxu0 0.0
    %1341 = vmatpush2.msra.mxu0 0.0
    %1342 = vmatprep.mubr.f32.mxu0 0.0
    %1343 = vmatmul.mubr.f32.gmra.mxu0 %v1273
    %v1344 = vpop.f32.mrf.mxu0
    %v1345 = vadd.f32 0.0, %v1344
    %v1346 = vpop.f32.mrf.mxu0
    %v1347 = vadd.f32 0.0, %v1346
    %1348 = vdwg.mxu0
    %1349 = vmatprep.subr.mxu0 %v333
    %1350 = vmatpush1.msra.mxu0 %v332
    %1351 = vmatprep.subr.mxu0 %v329
    %1352 = vmatpush1.msra.mxu0 %v328
    %1353 = vmatprep.subr.mxu0 %v325
    %1354 = vmatpush1.msra.mxu0 %v324
    %1355 = vmatprep.subr.mxu0 %v321
    %1356 = vmatpush1.msra.mxu0 %v320
    %1357 = vmatprep.subr.mxu0 %v317
    %1358 = vmatpush1.msra.mxu0 %v316
    %1359 = vmatprep.subr.mxu0 %v313
    %1360 = vmatpush1.msra.mxu0 %v312
    %1361 = vmatprep.subr.mxu0 %v309
    %1362 = vmatpush1.msra.mxu0 %v308
    %1363 = vmatprep.subr.mxu0 %v305
    %1364 = vmatpush1.msra.mxu0 %v304
    %1365 = vmatprep.subr.mxu0 %v301
    %1366 = vmatpush1.msra.mxu0 %v300
    %1367 = vmatprep.subr.mxu0 %v297
    %1368 = vmatpush1.msra.mxu0 %v296
    %1369 = vmatprep.subr.mxu0 %v293
    %1370 = vmatpush1.msra.mxu0 %v292
    %1371 = vmatprep.subr.mxu0 %v289
    %1372 = vmatpush1.msra.mxu0 %v288
    %1373 = vmatprep.subr.mxu0 %v285
    %1374 = vmatpush1.msra.mxu0 %v284
    %1375 = vmatprep.subr.mxu0 %v281
    %1376 = vmatpush1.msra.mxu0 %v280
    %1377 = vmatprep.subr.mxu0 %v277
    %1378 = vmatpush1.msra.mxu0 %v276
    %1379 = vmatprep.subr.mxu0 %v273
    %1380 = vmatpush1.msra.mxu0 %v272
    %1381 = vmatprep.subr.mxu0 0.0
    %1382 = vmatpush2.msra.mxu0 0.0
    %1383 = vmatprep.subr.mxu0 0.0
    %1384 = vmatpush2.msra.mxu0 0.0
    %1385 = vmatprep.subr.mxu0 0.0
    %1386 = vmatpush2.msra.mxu0 0.0
    %1387 = vmatprep.subr.mxu0 0.0
    %1388 = vmatpush2.msra.mxu0 0.0
    %1389 = vmatprep.subr.mxu0 0.0
    %1390 = vmatpush2.msra.mxu0 0.0
    %1391 = vmatprep.subr.mxu0 0.0
    %1392 = vmatpush2.msra.mxu0 0.0
    %1393 = vmatprep.subr.mxu0 0.0
    %1394 = vmatpush2.msra.mxu0 0.0
    %1395 = vmatprep.subr.mxu0 0.0
    %1396 = vmatpush2.msra.mxu0 0.0
    %1397 = vmatprep.subr.mxu0 0.0
    %1398 = vmatpush2.msra.mxu0 0.0
    %1399 = vmatprep.subr.mxu0 0.0
    %1400 = vmatpush2.msra.mxu0 0.0
    %1401 = vmatprep.subr.mxu0 0.0
    %1402 = vmatpush2.msra.mxu0 0.0
    %1403 = vmatprep.subr.mxu0 0.0
    %1404 = vmatpush2.msra.mxu0 0.0
    %1405 = vmatprep.subr.mxu0 0.0
    %1406 = vmatpush2.msra.mxu0 0.0
    %1407 = vmatprep.subr.mxu0 0.0
    %1408 = vmatpush2.msra.mxu0 0.0
    %1409 = vmatprep.subr.mxu0 0.0
    %1410 = vmatpush2.msra.mxu0 0.0
    %1411 = vmatprep.subr.mxu0 0.0
    %1412 = vmatpush2.msra.mxu0 0.0
    %1413 = vmatprep.mubr.f32.mxu0 0.0
    %1414 = vmatmul.mubr.f32.gmra.mxu0 %v1273
    %v1415 = vpop.f32.mrf.mxu0
    %v1416 = vadd.f32 0.0, %v1415
    %v1417 = vpop.f32.mrf.mxu0
    %v1418 = vadd.f32 0.0, %v1417
    %1419 = vdwg.mxu0
    %v1420 = vadd.f32 %v1274, %v1345
    %v1421 = vadd.f32 %v1275, %v1347
    %v1422 = vadd.f32 %v1276, %v1416
    %v1423 = vadd.f32 %v1277, %v1418
    %v1424 = vmul.f32 %v1420, 0.5
    %v1425 = vmul.f32 %v1421, 0.5
    %v1426 = vmul.f32 %v1422, 0.5
    %v1427 = vmul.f32 %v1423, 0.5
    %v1428 = vtanh.pop %v1424
    %v1429 = vtanh.pop %v1425
    %v1430 = vtanh.pop %v1426
    %v1431 = vtanh.pop %v1427
    %v1432 = vmul.f32 %v1428, 0.5
    %v1433 = vadd.f32 %v1432, 0.5
    %v1434 = vmul.f32 %v1429, 0.5
    %v1435 = vadd.f32 %v1434, 0.5
    %v1436 = vmul.f32 %v1430, 0.5
    %v1437 = vadd.f32 %v1436, 0.5
    %v1438 = vmul.f32 %v1435, %v1271
    %v1439 = vmul.f32 %v1433, %v1431
    %v1440 = vadd.f32 %v1438, %v1439
    %v1441 = vtanh.pop %v1440
    %v1442 = vmul.f32 %v1437, %v1441
    %v1443 = vadd.f32 %v505, %v801
    %v1444 = vadd.f32 %v507, %v803
    %v1445 = vadd.f32 %v618, %v914
    %v1446 = vadd.f32 %v620, %v916
    %1447 = vmatprep.subr.mxu0 %v331
    %1448 = vmatpush1.msra.mxu0 %v330
    %1449 = vmatprep.subr.mxu0 %v327
    %1450 = vmatpush1.msra.mxu0 %v326
    %1451 = vmatprep.subr.mxu0 %v323
    %1452 = vmatpush1.msra.mxu0 %v322
    %1453 = vmatprep.subr.mxu0 %v319
    %1454 = vmatpush1.msra.mxu0 %v318
    %1455 = vmatprep.subr.mxu0 %v315
    %1456 = vmatpush1.msra.mxu0 %v314
    %1457 = vmatprep.subr.mxu0 %v311
    %1458 = vmatpush1.msra.mxu0 %v310
    %1459 = vmatprep.subr.mxu0 %v307
    %1460 = vmatpush1.msra.mxu0 %v306
    %1461 = vmatprep.subr.mxu0 %v303
    %1462 = vmatpush1.msra.mxu0 %v302
    %1463 = vmatprep.subr.mxu0 %v299
    %1464 = vmatpush1.msra.mxu0 %v298
    %1465 = vmatprep.subr.mxu0 %v295
    %1466 = vmatpush1.msra.mxu0 %v294
    %1467 = vmatprep.subr.mxu0 %v291
    %1468 = vmatpush1.msra.mxu0 %v290
    %1469 = vmatprep.subr.mxu0 %v287
    %1470 = vmatpush1.msra.mxu0 %v286
    %1471 = vmatprep.subr.mxu0 %v283
    %1472 = vmatpush1.msra.mxu0 %v282
    %1473 = vmatprep.subr.mxu0 %v279
    %1474 = vmatpush1.msra.mxu0 %v278
    %1475 = vmatprep.subr.mxu0 %v275
    %1476 = vmatpush1.msra.mxu0 %v274
    %1477 = vmatprep.subr.mxu0 %v271
    %1478 = vmatpush1.msra.mxu0 %v270
    %1479 = vmatprep.subr.mxu0 0.0
    %1480 = vmatpush2.msra.mxu0 0.0
    %1481 = vmatprep.subr.mxu0 0.0
    %1482 = vmatpush2.msra.mxu0 0.0
    %1483 = vmatprep.subr.mxu0 0.0
    %1484 = vmatpush2.msra.mxu0 0.0
    %1485 = vmatprep.subr.mxu0 0.0
    %1486 = vmatpush2.msra.mxu0 0.0
    %1487 = vmatprep.subr.mxu0 0.0
    %1488 = vmatpush2.msra.mxu0 0.0
    %1489 = vmatprep.subr.mxu0 0.0
    %1490 = vmatpush2.msra.mxu0 0.0
    %1491 = vmatprep.subr.mxu0 0.0
    %1492 = vmatpush2.msra.mxu0 0.0
    %1493 = vmatprep.subr.mxu0 0.0
    %1494 = vmatpush2.msra.mxu0 0.0
    %1495 = vmatprep.subr.mxu0 0.0
    %1496 = vmatpush2.msra.mxu0 0.0
    %1497 = vmatprep.subr.mxu0 0.0
    %1498 = vmatpush2.msra.mxu0 0.0
    %1499 = vmatprep.subr.mxu0 0.0
    %1500 = vmatpush2.msra.mxu0 0.0
    %1501 = vmatprep.subr.mxu0 0.0
    %1502 = vmatpush2.msra.mxu0 0.0
    %1503 = vmatprep.subr.mxu0 0.0
    %1504 = vmatpush2.msra.mxu0 0.0
    %1505 = vmatprep.subr.mxu0 0.0
    %1506 = vmatpush2.msra.mxu0 0.0
    %1507 = vmatprep.subr.mxu0 0.0
    %1508 = vmatpush2.msra.mxu0 0.0
    %1509 = vmatprep.subr.mxu0 0.0
    %1510 = vmatpush2.msra.mxu0 0.0
    %1511 = vmatprep.mubr.f32.mxu0 0.0
    %1512 = vmatmul.mubr.f32.gmra.mxu0 %v1442
    %v1513 = vpop.f32.mrf.mxu0
    %v1514 = vadd.f32 0.0, %v1513
    %v1515 = vpop.f32.mrf.mxu0
    %v1516 = vadd.f32 0.0, %v1515
    %1517 = vdwg.mxu0
    %1518 = vmatprep.subr.mxu0 %v333
    %1519 = vmatpush1.msra.mxu0 %v332
    %1520 = vmatprep.subr.mxu0 %v329
    %1521 = vmatpush1.msra.mxu0 %v328
    %1522 = vmatprep.subr.mxu0 %v325
    %1523 = vmatpush1.msra.mxu0 %v324
    %1524 = vmatprep.subr.mxu0 %v321
    %1525 = vmatpush1.msra.mxu0 %v320
    %1526 = vmatprep.subr.mxu0 %v317
    %1527 = vmatpush1.msra.mxu0 %v316
    %1528 = vmatprep.subr.mxu0 %v313
    %1529 = vmatpush1.msra.mxu0 %v312
    %1530 = vmatprep.subr.mxu0 %v309
    %1531 = vmatpush1.msra.mxu0 %v308
    %1532 = vmatprep.subr.mxu0 %v305
    %1533 = vmatpush1.msra.mxu0 %v304
    %1534 = vmatprep.subr.mxu0 %v301
    %1535 = vmatpush1.msra.mxu0 %v300
    %1536 = vmatprep.subr.mxu0 %v297
    %1537 = vmatpush1.msra.mxu0 %v296
    %1538 = vmatprep.subr.mxu0 %v293
    %1539 = vmatpush1.msra.mxu0 %v292
    %1540 = vmatprep.subr.mxu0 %v289
    %1541 = vmatpush1.msra.mxu0 %v288
    %1542 = vmatprep.subr.mxu0 %v285
    %1543 = vmatpush1.msra.mxu0 %v284
    %1544 = vmatprep.subr.mxu0 %v281
    %1545 = vmatpush1.msra.mxu0 %v280
    %1546 = vmatprep.subr.mxu0 %v277
    %1547 = vmatpush1.msra.mxu0 %v276
    %1548 = vmatprep.subr.mxu0 %v273
    %1549 = vmatpush1.msra.mxu0 %v272
    %1550 = vmatprep.subr.mxu0 0.0
    %1551 = vmatpush2.msra.mxu0 0.0
    %1552 = vmatprep.subr.mxu0 0.0
    %1553 = vmatpush2.msra.mxu0 0.0
    %1554 = vmatprep.subr.mxu0 0.0
    %1555 = vmatpush2.msra.mxu0 0.0
    %1556 = vmatprep.subr.mxu0 0.0
    %1557 = vmatpush2.msra.mxu0 0.0
    %1558 = vmatprep.subr.mxu0 0.0
    %1559 = vmatpush2.msra.mxu0 0.0
    %1560 = vmatprep.subr.mxu0 0.0
    %1561 = vmatpush2.msra.mxu0 0.0
    %1562 = vmatprep.subr.mxu0 0.0
    %1563 = vmatpush2.msra.mxu0 0.0
    %1564 = vmatprep.subr.mxu0 0.0
    %1565 = vmatpush2.msra.mxu0 0.0
    %1566 = vmatprep.subr.mxu0 0.0
    %1567 = vmatpush2.msra.mxu0 0.0
    %1568 = vmatprep.subr.mxu0 0.0
    %1569 = vmatpush2.msra.mxu0 0.0
    %1570 = vmatprep.subr.mxu0 0.0
    %1571 = vmatpush2.msra.mxu0 0.0
    %1572 = vmatprep.subr.mxu0 0.0
    %1573 = vmatpush2.msra.mxu0 0.0
    %1574 = vmatprep.subr.mxu0 0.0
    %1575 = vmatpush2.msra.mxu0 0.0
    %1576 = vmatprep.subr.mxu0 0.0
    %1577 = vmatpush2.msra.mxu0 0.0
    %1578 = vmatprep.subr.mxu0 0.0
    %1579 = vmatpush2.msra.mxu0 0.0
    %1580 = vmatprep.subr.mxu0 0.0
    %1581 = vmatpush2.msra.mxu0 0.0
    %1582 = vmatprep.mubr.f32.mxu0 0.0
    %1583 = vmatmul.mubr.f32.gmra.mxu0 %v1442
    %v1584 = vpop.f32.mrf.mxu0
    %v1585 = vadd.f32 0.0, %v1584
    %v1586 = vpop.f32.mrf.mxu0
    %v1587 = vadd.f32 0.0, %v1586
    %1588 = vdwg.mxu0
    %v1589 = vadd.f32 %v1443, %v1514
    %v1590 = vadd.f32 %v1444, %v1516
    %v1591 = vadd.f32 %v1445, %v1585
    %v1592 = vadd.f32 %v1446, %v1587
    %v1593 = vmul.f32 %v1589, 0.5
    %v1594 = vmul.f32 %v1590, 0.5
    %v1595 = vmul.f32 %v1591, 0.5
    %v1596 = vmul.f32 %v1592, 0.5
    %v1597 = vtanh.pop %v1593
    %v1598 = vtanh.pop %v1594
    %v1599 = vtanh.pop %v1595
    %v1600 = vtanh.pop %v1596
    %v1601 = vmul.f32 %v1597, 0.5
    %v1602 = vadd.f32 %v1601, 0.5
    %v1603 = vmul.f32 %v1598, 0.5
    %v1604 = vadd.f32 %v1603, 0.5
    %v1605 = vmul.f32 %v1599, 0.5
    %v1606 = vadd.f32 %v1605, 0.5
    %v1607 = vmul.f32 %v1604, %v1440
    %v1608 = vmul.f32 %v1602, %v1600
    %v1609 = vadd.f32 %v1607, %v1608
    %v1610 = vtanh.pop %v1609
    %v1611 = vmul.f32 %v1606, %v1610
    %v1612 = vadd.f32 %v511, %v795
    %v1613 = vadd.f32 %v513, %v797
    %v1614 = vadd.f32 %v624, %v908
    %v1615 = vadd.f32 %v626, %v910
    %1616 = vmatprep.subr.mxu0 %v331
    %1617 = vmatpush1.msra.mxu0 %v330
    %1618 = vmatprep.subr.mxu0 %v327
    %1619 = vmatpush1.msra.mxu0 %v326
    %1620 = vmatprep.subr.mxu0 %v323
    %1621 = vmatpush1.msra.mxu0 %v322
    %1622 = vmatprep.subr.mxu0 %v319
    %1623 = vmatpush1.msra.mxu0 %v318
    %1624 = vmatprep.subr.mxu0 %v315
    %1625 = vmatpush1.msra.mxu0 %v314
    %1626 = vmatprep.subr.mxu0 %v311
    %1627 = vmatpush1.msra.mxu0 %v310
    %1628 = vmatprep.subr.mxu0 %v307
    %1629 = vmatpush1.msra.mxu0 %v306
    %1630 = vmatprep.subr.mxu0 %v303
    %1631 = vmatpush1.msra.mxu0 %v302
    %1632 = vmatprep.subr.mxu0 %v299
    %1633 = vmatpush1.msra.mxu0 %v298
    %1634 = vmatprep.subr.mxu0 %v295
    %1635 = vmatpush1.msra.mxu0 %v294
    %1636 = vmatprep.subr.mxu0 %v291
    %1637 = vmatpush1.msra.mxu0 %v290
    %1638 = vmatprep.subr.mxu0 %v287
    %1639 = vmatpush1.msra.mxu0 %v286
    %1640 = vmatprep.subr.mxu0 %v283
    %1641 = vmatpush1.msra.mxu0 %v282
    %1642 = vmatprep.subr.mxu0 %v279
    %1643 = vmatpush1.msra.mxu0 %v278
    %1644 = vmatprep.subr.mxu0 %v275
    %1645 = vmatpush1.msra.mxu0 %v274
    %1646 = vmatprep.subr.mxu0 %v271
    %1647 = vmatpush1.msra.mxu0 %v270
    %1648 = vmatprep.subr.mxu0 0.0
    %1649 = vmatpush2.msra.mxu0 0.0
    %1650 = vmatprep.subr.mxu0 0.0
    %1651 = vmatpush2.msra.mxu0 0.0
    %1652 = vmatprep.subr.mxu0 0.0
    %1653 = vmatpush2.msra.mxu0 0.0
    %1654 = vmatprep.subr.mxu0 0.0
    %1655 = vmatpush2.msra.mxu0 0.0
    %1656 = vmatprep.subr.mxu0 0.0
    %1657 = vmatpush2.msra.mxu0 0.0
    %1658 = vmatprep.subr.mxu0 0.0
    %1659 = vmatpush2.msra.mxu0 0.0
    %1660 = vmatprep.subr.mxu0 0.0
    %1661 = vmatpush2.msra.mxu0 0.0
    %1662 = vmatprep.subr.mxu0 0.0
    %1663 = vmatpush2.msra.mxu0 0.0
    %1664 = vmatprep.subr.mxu0 0.0
    %1665 = vmatpush2.msra.mxu0 0.0
    %1666 = vmatprep.subr.mxu0 0.0
    %1667 = vmatpush2.msra.mxu0 0.0
    %1668 = vmatprep.subr.mxu0 0.0
    %1669 = vmatpush2.msra.mxu0 0.0
    %1670 = vmatprep.subr.mxu0 0.0
    %1671 = vmatpush2.msra.mxu0 0.0
    %1672 = vmatprep.subr.mxu0 0.0
    %1673 = vmatpush2.msra.mxu0 0.0
    %1674 = vmatprep.subr.mxu0 0.0
    %1675 = vmatpush2.msra.mxu0 0.0
    %1676 = vmatprep.subr.mxu0 0.0
    %1677 = vmatpush2.msra.mxu0 0.0
    %1678 = vmatprep.subr.mxu0 0.0
    %1679 = vmatpush2.msra.mxu0 0.0
    %1680 = vmatprep.mubr.f32.mxu0 0.0
    %1681 = vmatmul.mubr.f32.gmra.mxu0 %v1611
    %v1682 = vpop.f32.mrf.mxu0
    %v1683 = vadd.f32 0.0, %v1682
    %v1684 = vpop.f32.mrf.mxu0
    %v1685 = vadd.f32 0.0, %v1684
    %1686 = vdwg.mxu0
    %1687 = vmatprep.subr.mxu0 %v333
    %1688 = vmatpush1.msra.mxu0 %v332
    %1689 = vmatprep.subr.mxu0 %v329
    %1690 = vmatpush1.msra.mxu0 %v328
    %1691 = vmatprep.subr.mxu0 %v325
    %1692 = vmatpush1.msra.mxu0 %v324
    %1693 = vmatprep.subr.mxu0 %v321
    %1694 = vmatpush1.msra.mxu0 %v320
    %1695 = vmatprep.subr.mxu0 %v317
    %1696 = vmatpush1.msra.mxu0 %v316
    %1697 = vmatprep.subr.mxu0 %v313
    %1698 = vmatpush1.msra.mxu0 %v312
    %1699 = vmatprep.subr.mxu0 %v309
    %1700 = vmatpush1.msra.mxu0 %v308
    %1701 = vmatprep.subr.mxu0 %v305
    %1702 = vmatpush1.msra.mxu0 %v304
    %1703 = vmatprep.subr.mxu0 %v301
    %1704 = vmatpush1.msra.mxu0 %v300
    %1705 = vmatprep.subr.mxu0 %v297
    %1706 = vmatpush1.msra.mxu0 %v296
    %1707 = vmatprep.subr.mxu0 %v293
    %1708 = vmatpush1.msra.mxu0 %v292
    %1709 = vmatprep.subr.mxu0 %v289
    %1710 = vmatpush1.msra.mxu0 %v288
    %1711 = vmatprep.subr.mxu0 %v285
    %1712 = vmatpush1.msra.mxu0 %v284
    %1713 = vmatprep.subr.mxu0 %v281
    %1714 = vmatpush1.msra.mxu0 %v280
    %1715 = vmatprep.subr.mxu0 %v277
    %1716 = vmatpush1.msra.mxu0 %v276
    %1717 = vmatprep.subr.mxu0 %v273
    %1718 = vmatpush1.msra.mxu0 %v272
    %1719 = vmatprep.subr.mxu0 0.0
    %1720 = vmatpush2.msra.mxu0 0.0
    %1721 = vmatprep.subr.mxu0 0.0
    %1722 = vmatpush2.msra.mxu0 0.0
    %1723 = vmatprep.subr.mxu0 0.0
    %1724 = vmatpush2.msra.mxu0 0.0
    %1725 = vmatprep.subr.mxu0 0.0
    %1726 = vmatpush2.msra.mxu0 0.0
    %1727 = vmatprep.subr.mxu0 0.0
    %1728 = vmatpush2.msra.mxu0 0.0
    %1729 = vmatprep.subr.mxu0 0.0
    %1730 = vmatpush2.msra.mxu0 0.0
    %1731 = vmatprep.subr.mxu0 0.0
    %1732 = vmatpush2.msra.mxu0 0.0
    %1733 = vmatprep.subr.mxu0 0.0
    %1734 = vmatpush2.msra.mxu0 0.0
    %1735 = vmatprep.subr.mxu0 0.0
    %1736 = vmatpush2.msra.mxu0 0.0
    %1737 = vmatprep.subr.mxu0 0.0
    %1738 = vmatpush2.msra.mxu0 0.0
    %1739 = vmatprep.subr.mxu0 0.0
    %1740 = vmatpush2.msra.mxu0 0.0
    %1741 = vmatprep.subr.mxu0 0.0
    %1742 = vmatpush2.msra.mxu0 0.0
    %1743 = vmatprep.subr.mxu0 0.0
    %1744 = vmatpush2.msra.mxu0 0.0
    %1745 = vmatprep.subr.mxu0 0.0
    %1746 = vmatpush2.msra.mxu0 0.0
    %1747 = vmatprep.subr.mxu0 0.0
    %1748 = vmatpush2.msra.mxu0 0.0
    %1749 = vmatprep.subr.mxu0 0.0
    %1750 = vmatpush2.msra.mxu0 0.0
    %1751 = vmatprep.mubr.f32.mxu0 0.0
    %1752 = vmatmul.mubr.f32.gmra.mxu0 %v1611
    %v1753 = vpop.f32.mrf.mxu0
    %v1754 = vadd.f32 0.0, %v1753
    %v1755 = vpop.f32.mrf.mxu0
    %v1756 = vadd.f32 0.0, %v1755
    %1757 = vdwg.mxu0
    %v1758 = vadd.f32 %v1612, %v1683
    %v1759 = vadd.f32 %v1613, %v1685
    %v1760 = vadd.f32 %v1614, %v1754
    %v1761 = vadd.f32 %v1615, %v1756
    %v1762 = vmul.f32 %v1758, 0.5
    %v1763 = vmul.f32 %v1759, 0.5
    %v1764 = vmul.f32 %v1760, 0.5
    %v1765 = vmul.f32 %v1761, 0.5
    %v1766 = vtanh.pop %v1762
    %v1767 = vtanh.pop %v1763
    %v1768 = vtanh.pop %v1764
    %v1769 = vtanh.pop %v1765
    %v1770 = vmul.f32 %v1766, 0.5
    %v1771 = vadd.f32 %v1770, 0.5
    %v1772 = vmul.f32 %v1767, 0.5
    %v1773 = vadd.f32 %v1772, 0.5
    %v1774 = vmul.f32 %v1768, 0.5
    %v1775 = vadd.f32 %v1774, 0.5
    %v1776 = vmul.f32 %v1773, %v1609
    %v1777 = vmul.f32 %v1771, %v1769
    %v1778 = vadd.f32 %v1776, %v1777
    %v1779 = vtanh.pop %v1778
    %v1780 = vmul.f32 %v1775, %v1779
    %v1781 = vadd.f32 %v517, %v789
    %v1782 = vadd.f32 %v519, %v791
    %v1783 = vadd.f32 %v630, %v902
    %v1784 = vadd.f32 %v632, %v904
    %1785 = vmatprep.subr.mxu0 %v331
    %1786 = vmatpush1.msra.mxu0 %v330
    %1787 = vmatprep.subr.mxu0 %v327
    %1788 = vmatpush1.msra.mxu0 %v326
    %1789 = vmatprep.subr.mxu0 %v323
    %1790 = vmatpush1.msra.mxu0 %v322
    %1791 = vmatprep.subr.mxu0 %v319
    %1792 = vmatpush1.msra.mxu0 %v318
    %1793 = vmatprep.subr.mxu0 %v315
    %1794 = vmatpush1.msra.mxu0 %v314
    %1795 = vmatprep.subr.mxu0 %v311
    %1796 = vmatpush1.msra.mxu0 %v310
    %1797 = vmatprep.subr.mxu0 %v307
    %1798 = vmatpush1.msra.mxu0 %v306
    %1799 = vmatprep.subr.mxu0 %v303
    %1800 = vmatpush1.msra.mxu0 %v302
    %1801 = vmatprep.subr.mxu0 %v299
    %1802 = vmatpush1.msra.mxu0 %v298
    %1803 = vmatprep.subr.mxu0 %v295
    %1804 = vmatpush1.msra.mxu0 %v294
    %1805 = vmatprep.subr.mxu0 %v291
    %1806 = vmatpush1.msra.mxu0 %v290
    %1807 = vmatprep.subr.mxu0 %v287
    %1808 = vmatpush1.msra.mxu0 %v286
    %1809 = vmatprep.subr.mxu0 %v283
    %1810 = vmatpush1.msra.mxu0 %v282
    %1811 = vmatprep.subr.mxu0 %v279
    %1812 = vmatpush1.msra.mxu0 %v278
    %1813 = vmatprep.subr.mxu0 %v275
    %1814 = vmatpush1.msra.mxu0 %v274
    %1815 = vmatprep.subr.mxu0 %v271
    %1816 = vmatpush1.msra.mxu0 %v270
    %1817 = vmatprep.subr.mxu0 0.0
    %1818 = vmatpush2.msra.mxu0 0.0
    %1819 = vmatprep.subr.mxu0 0.0
    %1820 = vmatpush2.msra.mxu0 0.0
    %1821 = vmatprep.subr.mxu0 0.0
    %1822 = vmatpush2.msra.mxu0 0.0
    %1823 = vmatprep.subr.mxu0 0.0
    %1824 = vmatpush2.msra.mxu0 0.0
    %1825 = vmatprep.subr.mxu0 0.0
    %1826 = vmatpush2.msra.mxu0 0.0
    %1827 = vmatprep.subr.mxu0 0.0
    %1828 = vmatpush2.msra.mxu0 0.0
    %1829 = vmatprep.subr.mxu0 0.0
    %1830 = vmatpush2.msra.mxu0 0.0
    %1831 = vmatprep.subr.mxu0 0.0
    %1832 = vmatpush2.msra.mxu0 0.0
    %1833 = vmatprep.subr.mxu0 0.0
    %1834 = vmatpush2.msra.mxu0 0.0
    %1835 = vmatprep.subr.mxu0 0.0
    %1836 = vmatpush2.msra.mxu0 0.0
    %1837 = vmatprep.subr.mxu0 0.0
    %1838 = vmatpush2.msra.mxu0 0.0
    %1839 = vmatprep.subr.mxu0 0.0
    %1840 = vmatpush2.msra.mxu0 0.0
    %1841 = vmatprep.subr.mxu0 0.0
    %1842 = vmatpush2.msra.mxu0 0.0
    %1843 = vmatprep.subr.mxu0 0.0
    %1844 = vmatpush2.msra.mxu0 0.0
    %1845 = vmatprep.subr.mxu0 0.0
    %1846 = vmatpush2.msra.mxu0 0.0
    %1847 = vmatprep.subr.mxu0 0.0
    %1848 = vmatpush2.msra.mxu0 0.0
    %1849 = vmatprep.mubr.f32.mxu0 0.0
    %1850 = vmatmul.mubr.f32.gmra.mxu0 %v1780
    %v1851 = vpop.f32.mrf.mxu0
    %v1852 = vadd.f32 0.0, %v1851
    %v1853 = vpop.f32.mrf.mxu0
    %v1854 = vadd.f32 0.0, %v1853
    %1855 = vdwg.mxu0
    %1856 = vmatprep.subr.mxu0 %v333
    %1857 = vmatpush1.msra.mxu0 %v332
    %1858 = vmatprep.subr.mxu0 %v329
    %1859 = vmatpush1.msra.mxu0 %v328
    %1860 = vmatprep.subr.mxu0 %v325
    %1861 = vmatpush1.msra.mxu0 %v324
    %1862 = vmatprep.subr.mxu0 %v321
    %1863 = vmatpush1.msra.mxu0 %v320
    %1864 = vmatprep.subr.mxu0 %v317
    %1865 = vmatpush1.msra.mxu0 %v316
    %1866 = vmatprep.subr.mxu0 %v313
    %1867 = vmatpush1.msra.mxu0 %v312
    %1868 = vmatprep.subr.mxu0 %v309
    %1869 = vmatpush1.msra.mxu0 %v308
    %1870 = vmatprep.subr.mxu0 %v305
    %1871 = vmatpush1.msra.mxu0 %v304
    %1872 = vmatprep.subr.mxu0 %v301
    %1873 = vmatpush1.msra.mxu0 %v300
    %1874 = vmatprep.subr.mxu0 %v297
    %1875 = vmatpush1.msra.mxu0 %v296
    %1876 = vmatprep.subr.mxu0 %v293
    %1877 = vmatpush1.msra.mxu0 %v292
    %1878 = vmatprep.subr.mxu0 %v289
    %1879 = vmatpush1.msra.mxu0 %v288
    %1880 = vmatprep.subr.mxu0 %v285
    %1881 = vmatpush1.msra.mxu0 %v284
    %1882 = vmatprep.subr.mxu0 %v281
    %1883 = vmatpush1.msra.mxu0 %v280
    %1884 = vmatprep.subr.mxu0 %v277
    %1885 = vmatpush1.msra.mxu0 %v276
    %1886 = vmatprep.subr.mxu0 %v273
    %1887 = vmatpush1.msra.mxu0 %v272
    %1888 = vmatprep.subr.mxu0 0.0
    %1889 = vmatpush2.msra.mxu0 0.0
    %1890 = vmatprep.subr.mxu0 0.0
    %1891 = vmatpush2.msra.mxu0 0.0
    %1892 = vmatprep.subr.mxu0 0.0
    %1893 = vmatpush2.msra.mxu0 0.0
    %1894 = vmatprep.subr.mxu0 0.0
    %1895 = vmatpush2.msra.mxu0 0.0
    %1896 = vmatprep.subr.mxu0 0.0
    %1897 = vmatpush2.msra.mxu0 0.0
    %1898 = vmatprep.subr.mxu0 0.0
    %1899 = vmatpush2.msra.mxu0 0.0
    %1900 = vmatprep.subr.mxu0 0.0
    %1901 = vmatpush2.msra.mxu0 0.0
    %1902 = vmatprep.subr.mxu0 0.0
    %1903 = vmatpush2.msra.mxu0 0.0
    %1904 = vmatprep.subr.mxu0 0.0
    %1905 = vmatpush2.msra.mxu0 0.0
    %1906 = vmatprep.subr.mxu0 0.0
    %1907 = vmatpush2.msra.mxu0 0.0
    %1908 = vmatprep.subr.mxu0 0.0
    %1909 = vmatpush2.msra.mxu0 0.0
    %1910 = vmatprep.subr.mxu0 0.0
    %1911 = vmatpush2.msra.mxu0 0.0
    %1912 = vmatprep.subr.mxu0 0.0
    %1913 = vmatpush2.msra.mxu0 0.0
    %1914 = vmatprep.subr.mxu0 0.0
    %1915 = vmatpush2.msra.mxu0 0.0
    %1916 = vmatprep.subr.mxu0 0.0
    %1917 = vmatpush2.msra.mxu0 0.0
    %1918 = vmatprep.subr.mxu0 0.0
    %1919 = vmatpush2.msra.mxu0 0.0
    %1920 = vmatprep.mubr.f32.mxu0 0.0
    %1921 = vmatmul.mubr.f32.gmra.mxu0 %v1780
    %v1922 = vpop.f32.mrf.mxu0
    %v1923 = vadd.f32 0.0, %v1922
    %v1924 = vpop.f32.mrf.mxu0
    %v1925 = vadd.f32 0.0, %v1924
    %1926 = vdwg.mxu0
    %v1927 = vadd.f32 %v1781, %v1852
    %v1928 = vadd.f32 %v1782, %v1854
    %v1929 = vadd.f32 %v1783, %v1923
    %v1930 = vadd.f32 %v1784, %v1925
    %v1931 = vmul.f32 %v1927, 0.5
    %v1932 = vmul.f32 %v1928, 0.5
    %v1933 = vmul.f32 %v1929, 0.5
    %v1934 = vmul.f32 %v1930, 0.5
    %v1935 = vtanh.pop %v1931
    %v1936 = vtanh.pop %v1932
    %v1937 = vtanh.pop %v1933
    %v1938 = vtanh.pop %v1934
    %v1939 = vmul.f32 %v1935, 0.5
    %v1940 = vadd.f32 %v1939, 0.5
    %v1941 = vmul.f32 %v1936, 0.5
    %v1942 = vadd.f32 %v1941, 0.5
    %v1943 = vmul.f32 %v1937, 0.5
    %v1944 = vadd.f32 %v1943, 0.5
    %v1945 = vmul.f32 %v1942, %v1778
    %v1946 = vmul.f32 %v1940, %v1938
    %v1947 = vadd.f32 %v1945, %v1946
    %v1948 = vtanh.pop %v1947
    %v1949 = vmul.f32 %v1944, %v1948
    %v1950 = vadd.f32 %v523, %v783
    %v1951 = vadd.f32 %v525, %v785
    %v1952 = vadd.f32 %v636, %v896
    %v1953 = vadd.f32 %v638, %v898
    %1954 = vmatprep.subr.mxu0 %v331
    %1955 = vmatpush1.msra.mxu0 %v330
    %1956 = vmatprep.subr.mxu0 %v327
    %1957 = vmatpush1.msra.mxu0 %v326
    %1958 = vmatprep.subr.mxu0 %v323
    %1959 = vmatpush1.msra.mxu0 %v322
    %1960 = vmatprep.subr.mxu0 %v319
    %1961 = vmatpush1.msra.mxu0 %v318
    %1962 = vmatprep.subr.mxu0 %v315
    %1963 = vmatpush1.msra.mxu0 %v314
    %1964 = vmatprep.subr.mxu0 %v311
    %1965 = vmatpush1.msra.mxu0 %v310
    %1966 = vmatprep.subr.mxu0 %v307
    %1967 = vmatpush1.msra.mxu0 %v306
    %1968 = vmatprep.subr.mxu0 %v303
    %1969 = vmatpush1.msra.mxu0 %v302
    %1970 = vmatprep.subr.mxu0 %v299
    %1971 = vmatpush1.msra.mxu0 %v298
    %1972 = vmatprep.subr.mxu0 %v295
    %1973 = vmatpush1.msra.mxu0 %v294
    %1974 = vmatprep.subr.mxu0 %v291
    %1975 = vmatpush1.msra.mxu0 %v290
    %1976 = vmatprep.subr.mxu0 %v287
    %1977 = vmatpush1.msra.mxu0 %v286
    %1978 = vmatprep.subr.mxu0 %v283
    %1979 = vmatpush1.msra.mxu0 %v282
    %1980 = vmatprep.subr.mxu0 %v279
    %1981 = vmatpush1.msra.mxu0 %v278
    %1982 = vmatprep.subr.mxu0 %v275
    %1983 = vmatpush1.msra.mxu0 %v274
    %1984 = vmatprep.subr.mxu0 %v271
    %1985 = vmatpush1.msra.mxu0 %v270
    %1986 = vmatprep.subr.mxu0 0.0
    %1987 = vmatpush2.msra.mxu0 0.0
    %1988 = vmatprep.subr.mxu0 0.0
    %1989 = vmatpush2.msra.mxu0 0.0
    %1990 = vmatprep.subr.mxu0 0.0
    %1991 = vmatpush2.msra.mxu0 0.0
    %1992 = vmatprep.subr.mxu0 0.0
    %1993 = vmatpush2.msra.mxu0 0.0
    %1994 = vmatprep.subr.mxu0 0.0
    %1995 = vmatpush2.msra.mxu0 0.0
    %1996 = vmatprep.subr.mxu0 0.0
    %1997 = vmatpush2.msra.mxu0 0.0
    %1998 = vmatprep.subr.mxu0 0.0
    %1999 = vmatpush2.msra.mxu0 0.0
    %2000 = vmatprep.subr.mxu0 0.0
    %2001 = vmatpush2.msra.mxu0 0.0
    %2002 = vmatprep.subr.mxu0 0.0
    %2003 = vmatpush2.msra.mxu0 0.0
    %2004 = vmatprep.subr.mxu0 0.0
    %2005 = vmatpush2.msra.mxu0 0.0
    %2006 = vmatprep.subr.mxu0 0.0
    %2007 = vmatpush2.msra.mxu0 0.0
    %2008 = vmatprep.subr.mxu0 0.0
    %2009 = vmatpush2.msra.mxu0 0.0
    %2010 = vmatprep.subr.mxu0 0.0
    %2011 = vmatpush2.msra.mxu0 0.0
    %2012 = vmatprep.subr.mxu0 0.0
    %2013 = vmatpush2.msra.mxu0 0.0
    %2014 = vmatprep.subr.mxu0 0.0
    %2015 = vmatpush2.msra.mxu0 0.0
    %2016 = vmatprep.subr.mxu0 0.0
    %2017 = vmatpush2.msra.mxu0 0.0
    %2018 = vmatprep.mubr.f32.mxu0 0.0
    %2019 = vmatmul.mubr.f32.gmra.mxu0 %v1949
    %v2020 = vpop.f32.mrf.mxu0
    %v2021 = vadd.f32 0.0, %v2020
    %v2022 = vpop.f32.mrf.mxu0
    %v2023 = vadd.f32 0.0, %v2022
    %2024 = vdwg.mxu0
    %2025 = vmatprep.subr.mxu0 %v333
    %2026 = vmatpush1.msra.mxu0 %v332
    %2027 = vmatprep.subr.mxu0 %v329
    %2028 = vmatpush1.msra.mxu0 %v328
    %2029 = vmatprep.subr.mxu0 %v325
    %2030 = vmatpush1.msra.mxu0 %v324
    %2031 = vmatprep.subr.mxu0 %v321
    %2032 = vmatpush1.msra.mxu0 %v320
    %2033 = vmatprep.subr.mxu0 %v317
    %2034 = vmatpush1.msra.mxu0 %v316
    %2035 = vmatprep.subr.mxu0 %v313
    %2036 = vmatpush1.msra.mxu0 %v312
    %2037 = vmatprep.subr.mxu0 %v309
    %2038 = vmatpush1.msra.mxu0 %v308
    %2039 = vmatprep.subr.mxu0 %v305
    %2040 = vmatpush1.msra.mxu0 %v304
    %2041 = vmatprep.subr.mxu0 %v301
    %2042 = vmatpush1.msra.mxu0 %v300
    %2043 = vmatprep.subr.mxu0 %v297
    %2044 = vmatpush1.msra.mxu0 %v296
    %2045 = vmatprep.subr.mxu0 %v293
    %2046 = vmatpush1.msra.mxu0 %v292
    %2047 = vmatprep.subr.mxu0 %v289
    %2048 = vmatpush1.msra.mxu0 %v288
    %2049 = vmatprep.subr.mxu0 %v285
    %2050 = vmatpush1.msra.mxu0 %v284
    %2051 = vmatprep.subr.mxu0 %v281
    %2052 = vmatpush1.msra.mxu0 %v280
    %2053 = vmatprep.subr.mxu0 %v277
    %2054 = vmatpush1.msra.mxu0 %v276
    %2055 = vmatprep.subr.mxu0 %v273
    %2056 = vmatpush1.msra.mxu0 %v272
    %2057 = vmatprep.subr.mxu0 0.0
    %2058 = vmatpush2.msra.mxu0 0.0
    %2059 = vmatprep.subr.mxu0 0.0
    %2060 = vmatpush2.msra.mxu0 0.0
    %2061 = vmatprep.subr.mxu0 0.0
    %2062 = vmatpush2.msra.mxu0 0.0
    %2063 = vmatprep.subr.mxu0 0.0
    %2064 = vmatpush2.msra.mxu0 0.0
    %2065 = vmatprep.subr.mxu0 0.0
    %2066 = vmatpush2.msra.mxu0 0.0
    %2067 = vmatprep.subr.mxu0 0.0
    %2068 = vmatpush2.msra.mxu0 0.0
    %2069 = vmatprep.subr.mxu0 0.0
    %2070 = vmatpush2.msra.mxu0 0.0
    %2071 = vmatprep.subr.mxu0 0.0
    %2072 = vmatpush2.msra.mxu0 0.0
    %2073 = vmatprep.subr.mxu0 0.0
    %2074 = vmatpush2.msra.mxu0 0.0
    %2075 = vmatprep.subr.mxu0 0.0
    %2076 = vmatpush2.msra.mxu0 0.0
    %2077 = vmatprep.subr.mxu0 0.0
    %2078 = vmatpush2.msra.mxu0 0.0
    %2079 = vmatprep.subr.mxu0 0.0
    %2080 = vmatpush2.msra.mxu0 0.0
    %2081 = vmatprep.subr.mxu0 0.0
    %2082 = vmatpush2.msra.mxu0 0.0
    %2083 = vmatprep.subr.mxu0 0.0
    %2084 = vmatpush2.msra.mxu0 0.0
    %2085 = vmatprep.subr.mxu0 0.0
    %2086 = vmatpush2.msra.mxu0 0.0
    %2087 = vmatprep.subr.mxu0 0.0
    %2088 = vmatpush2.msra.mxu0 0.0
    %2089 = vmatprep.mubr.f32.mxu0 0.0
    %2090 = vmatmul.mubr.f32.gmra.mxu0 %v1949
    %v2091 = vpop.f32.mrf.mxu0
    %v2092 = vadd.f32 0.0, %v2091
    %v2093 = vpop.f32.mrf.mxu0
    %v2094 = vadd.f32 0.0, %v2093
    %2095 = vdwg.mxu0
    %v2096 = vadd.f32 %v1950, %v2021
    %v2097 = vadd.f32 %v1951, %v2023
    %v2098 = vadd.f32 %v1952, %v2092
    %v2099 = vadd.f32 %v1953, %v2094
    %v2100 = vmul.f32 %v2096, 0.5
    %v2101 = vmul.f32 %v2097, 0.5
    %v2102 = vmul.f32 %v2098, 0.5
    %v2103 = vmul.f32 %v2099, 0.5
    %v2104 = vtanh.pop %v2100
    %v2105 = vtanh.pop %v2101
    %v2106 = vtanh.pop %v2102
    %v2107 = vtanh.pop %v2103
    %v2108 = vmul.f32 %v2104, 0.5
    %v2109 = vadd.f32 %v2108, 0.5
    %v2110 = vmul.f32 %v2105, 0.5
    %v2111 = vadd.f32 %v2110, 0.5
    %v2112 = vmul.f32 %v2106, 0.5
    %v2113 = vadd.f32 %v2112, 0.5
    %v2114 = vmul.f32 %v2111, %v1947
    %v2115 = vmul.f32 %v2109, %v2107
    %v2116 = vadd.f32 %v2114, %v2115
    %v2117 = vtanh.pop %v2116
    %v2118 = vmul.f32 %v2113, %v2117
    %v2119 = vadd.f32 %v529, %v777
    %v2120 = vadd.f32 %v531, %v779
    %v2121 = vadd.f32 %v642, %v890
    %v2122 = vadd.f32 %v644, %v892
    %2123 = vmatprep.subr.mxu0 %v331
    %2124 = vmatpush1.msra.mxu0 %v330
    %2125 = vmatprep.subr.mxu0 %v327
    %2126 = vmatpush1.msra.mxu0 %v326
    %2127 = vmatprep.subr.mxu0 %v323
    %2128 = vmatpush1.msra.mxu0 %v322
    %2129 = vmatprep.subr.mxu0 %v319
    %2130 = vmatpush1.msra.mxu0 %v318
    %2131 = vmatprep.subr.mxu0 %v315
    %2132 = vmatpush1.msra.mxu0 %v314
    %2133 = vmatprep.subr.mxu0 %v311
    %2134 = vmatpush1.msra.mxu0 %v310
    %2135 = vmatprep.subr.mxu0 %v307
    %2136 = vmatpush1.msra.mxu0 %v306
    %2137 = vmatprep.subr.mxu0 %v303
    %2138 = vmatpush1.msra.mxu0 %v302
    %2139 = vmatprep.subr.mxu0 %v299
    %2140 = vmatpush1.msra.mxu0 %v298
    %2141 = vmatprep.subr.mxu0 %v295
    %2142 = vmatpush1.msra.mxu0 %v294
    %2143 = vmatprep.subr.mxu0 %v291
    %2144 = vmatpush1.msra.mxu0 %v290
    %2145 = vmatprep.subr.mxu0 %v287
    %2146 = vmatpush1.msra.mxu0 %v286
    %2147 = vmatprep.subr.mxu0 %v283
    %2148 = vmatpush1.msra.mxu0 %v282
    %2149 = vmatprep.subr.mxu0 %v279
    %2150 = vmatpush1.msra.mxu0 %v278
    %2151 = vmatprep.subr.mxu0 %v275
    %2152 = vmatpush1.msra.mxu0 %v274
    %2153 = vmatprep.subr.mxu0 %v271
    %2154 = vmatpush1.msra.mxu0 %v270
    %2155 = vmatprep.subr.mxu0 0.0
    %2156 = vmatpush2.msra.mxu0 0.0
    %2157 = vmatprep.subr.mxu0 0.0
    %2158 = vmatpush2.msra.mxu0 0.0
    %2159 = vmatprep.subr.mxu0 0.0
    %2160 = vmatpush2.msra.mxu0 0.0
    %2161 = vmatprep.subr.mxu0 0.0
    %2162 = vmatpush2.msra.mxu0 0.0
    %2163 = vmatprep.subr.mxu0 0.0
    %2164 = vmatpush2.msra.mxu0 0.0
    %2165 = vmatprep.subr.mxu0 0.0
    %2166 = vmatpush2.msra.mxu0 0.0
    %2167 = vmatprep.subr.mxu0 0.0
    %2168 = vmatpush2.msra.mxu0 0.0
    %2169 = vmatprep.subr.mxu0 0.0
    %2170 = vmatpush2.msra.mxu0 0.0
    %2171 = vmatprep.subr.mxu0 0.0
    %2172 = vmatpush2.msra.mxu0 0.0
    %2173 = vmatprep.subr.mxu0 0.0
    %2174 = vmatpush2.msra.mxu0 0.0
    %2175 = vmatprep.subr.mxu0 0.0
    %2176 = vmatpush2.msra.mxu0 0.0
    %2177 = vmatprep.subr.mxu0 0.0
    %2178 = vmatpush2.msra.mxu0 0.0
    %2179 = vmatprep.subr.mxu0 0.0
    %2180 = vmatpush2.msra.mxu0 0.0
    %2181 = vmatprep.subr.mxu0 0.0
    %2182 = vmatpush2.msra.mxu0 0.0
    %2183 = vmatprep.subr.mxu0 0.0
    %2184 = vmatpush2.msra.mxu0 0.0
    %2185 = vmatprep.subr.mxu0 0.0
    %2186 = vmatpush2.msra.mxu0 0.0
    %2187 = vmatprep.mubr.f32.mxu0 0.0
    %2188 = vmatmul.mubr.f32.gmra.mxu0 %v2118
    %v2189 = vpop.f32.mrf.mxu0
    %v2190 = vadd.f32 0.0, %v2189
    %v2191 = vpop.f32.mrf.mxu0
    %v2192 = vadd.f32 0.0, %v2191
    %2193 = vdwg.mxu0
    %2194 = vmatprep.subr.mxu0 %v333
    %2195 = vmatpush1.msra.mxu0 %v332
    %2196 = vmatprep.subr.mxu0 %v329
    %2197 = vmatpush1.msra.mxu0 %v328
    %2198 = vmatprep.subr.mxu0 %v325
    %2199 = vmatpush1.msra.mxu0 %v324
    %2200 = vmatprep.subr.mxu0 %v321
    %2201 = vmatpush1.msra.mxu0 %v320
    %2202 = vmatprep.subr.mxu0 %v317
    %2203 = vmatpush1.msra.mxu0 %v316
    %2204 = vmatprep.subr.mxu0 %v313
    %2205 = vmatpush1.msra.mxu0 %v312
    %2206 = vmatprep.subr.mxu0 %v309
    %2207 = vmatpush1.msra.mxu0 %v308
    %2208 = vmatprep.subr.mxu0 %v305
    %2209 = vmatpush1.msra.mxu0 %v304
    %2210 = vmatprep.subr.mxu0 %v301
    %2211 = vmatpush1.msra.mxu0 %v300
    %2212 = vmatprep.subr.mxu0 %v297
    %2213 = vmatpush1.msra.mxu0 %v296
    %2214 = vmatprep.subr.mxu0 %v293
    %2215 = vmatpush1.msra.mxu0 %v292
    %2216 = vmatprep.subr.mxu0 %v289
    %2217 = vmatpush1.msra.mxu0 %v288
    %2218 = vmatprep.subr.mxu0 %v285
    %2219 = vmatpush1.msra.mxu0 %v284
    %2220 = vmatprep.subr.mxu0 %v281
    %2221 = vmatpush1.msra.mxu0 %v280
    %2222 = vmatprep.subr.mxu0 %v277
    %2223 = vmatpush1.msra.mxu0 %v276
    %2224 = vmatprep.subr.mxu0 %v273
    %2225 = vmatpush1.msra.mxu0 %v272
    %2226 = vmatprep.subr.mxu0 0.0
    %2227 = vmatpush2.msra.mxu0 0.0
    %2228 = vmatprep.subr.mxu0 0.0
    %2229 = vmatpush2.msra.mxu0 0.0
    %2230 = vmatprep.subr.mxu0 0.0
    %2231 = vmatpush2.msra.mxu0 0.0
    %2232 = vmatprep.subr.mxu0 0.0
    %2233 = vmatpush2.msra.mxu0 0.0
    %2234 = vmatprep.subr.mxu0 0.0
    %2235 = vmatpush2.msra.mxu0 0.0
    %2236 = vmatprep.subr.mxu0 0.0
    %2237 = vmatpush2.msra.mxu0 0.0
    %2238 = vmatprep.subr.mxu0 0.0
    %2239 = vmatpush2.msra.mxu0 0.0
    %2240 = vmatprep.subr.mxu0 0.0
    %2241 = vmatpush2.msra.mxu0 0.0
    %2242 = vmatprep.subr.mxu0 0.0
    %2243 = vmatpush2.msra.mxu0 0.0
    %2244 = vmatprep.subr.mxu0 0.0
    %2245 = vmatpush2.msra.mxu0 0.0
    %2246 = vmatprep.subr.mxu0 0.0
    %2247 = vmatpush2.msra.mxu0 0.0
    %2248 = vmatprep.subr.mxu0 0.0
    %2249 = vmatpush2.msra.mxu0 0.0
    %2250 = vmatprep.subr.mxu0 0.0
    %2251 = vmatpush2.msra.mxu0 0.0
    %2252 = vmatprep.subr.mxu0 0.0
    %2253 = vmatpush2.msra.mxu0 0.0
    %2254 = vmatprep.subr.mxu0 0.0
    %2255 = vmatpush2.msra.mxu0 0.0
    %2256 = vmatprep.subr.mxu0 0.0
    %2257 = vmatpush2.msra.mxu0 0.0
    %2258 = vmatprep.mubr.f32.mxu0 0.0
    %2259 = vmatmul.mubr.f32.gmra.mxu0 %v2118
    %v2260 = vpop.f32.mrf.mxu0
    %v2261 = vadd.f32 0.0, %v2260
    %v2262 = vpop.f32.mrf.mxu0
    %v2263 = vadd.f32 0.0, %v2262
    %2264 = vdwg.mxu0
    %v2265 = vadd.f32 %v2119, %v2190
    %v2266 = vadd.f32 %v2120, %v2192
    %v2267 = vadd.f32 %v2121, %v2261
    %v2268 = vadd.f32 %v2122, %v2263
    %v2269 = vmul.f32 %v2265, 0.5
    %v2270 = vmul.f32 %v2266, 0.5
    %v2271 = vmul.f32 %v2267, 0.5
    %v2272 = vmul.f32 %v2268, 0.5
    %v2273 = vtanh.pop %v2269
    %v2274 = vtanh.pop %v2270
    %v2275 = vtanh.pop %v2271
    %v2276 = vtanh.pop %v2272
    %v2277 = vmul.f32 %v2273, 0.5
    %v2278 = vadd.f32 %v2277, 0.5
    %v2279 = vmul.f32 %v2274, 0.5
    %v2280 = vadd.f32 %v2279, 0.5
    %v2281 = vmul.f32 %v2275, 0.5
    %v2282 = vadd.f32 %v2281, 0.5
    %v2283 = vmul.f32 %v2280, %v2116
    %v2284 = vmul.f32 %v2278, %v2276
    %v2285 = vadd.f32 %v2283, %v2284
    %v2286 = vtanh.pop %v2285
    %v2287 = vmul.f32 %v2282, %v2286
    %v2288 = vld [vmem:[#allocation4] sm:$0xff]
    %v2289 = vld [vmem:[#allocation4 + $0x8] sm:$0xff]
    %v2290 = vld [vmem:[#allocation4 + $0x10] sm:$0xff]
    %v2291 = vld [vmem:[#allocation4 + $0x18] sm:$0xff]
    %v2292 = vld [vmem:[#allocation4 + $0x20] sm:$0xff]
    %v2293 = vld [vmem:[#allocation4 + $0x28] sm:$0xff]
    %v2294 = vld [vmem:[#allocation4 + $0x30] sm:$0xff]
    %v2295 = vld [vmem:[#allocation4 + $0x38] sm:$0xff]
    %v2296 = vld [vmem:[#allocation4 + $0x40] sm:$0xff]
    %v2297 = vld [vmem:[#allocation4 + $0x48] sm:$0xff]
    %v2298 = vld [vmem:[#allocation4 + $0x50] sm:$0xff]
    %v2299 = vld [vmem:[#allocation4 + $0x58] sm:$0xff]
    %v2300 = vld [vmem:[#allocation4 + $0x60] sm:$0xff]
    %v2301 = vld [vmem:[#allocation4 + $0x68] sm:$0xff]
    %v2302 = vld [vmem:[#allocation4 + $0x70] sm:$0xff]
    %v2303 = vld [vmem:[#allocation4 + $0x78] sm:$0xff]
    %v2304 = vld [vmem:[#allocation4 + $0x80] sm:$0xff]
    %v2305 = vld [vmem:[#allocation4 + $0x88] sm:$0xff]
    %v2306 = vld [vmem:[#allocation4 + $0x90] sm:$0xff]
    %v2307 = vld [vmem:[#allocation4 + $0x98] sm:$0xff]
    %v2308 = vld [vmem:[#allocation4 + $0xa0] sm:$0xff]
    %v2309 = vld [vmem:[#allocation4 + $0xa8] sm:$0xff]
    %v2310 = vld [vmem:[#allocation4 + $0xb0] sm:$0xff]
    %v2311 = vld [vmem:[#allocation4 + $0xb8] sm:$0xff]
    %v2312 = vld [vmem:[#allocation4 + $0xc0] sm:$0xff]
    %v2313 = vld [vmem:[#allocation4 + $0xc8] sm:$0xff]
    %v2314 = vld [vmem:[#allocation4 + $0xd0] sm:$0xff]
    %v2315 = vld [vmem:[#allocation4 + $0xd8] sm:$0xff]
    %v2316 = vld [vmem:[#allocation4 + $0xe0] sm:$0xff]
    %v2317 = vld [vmem:[#allocation4 + $0xe8] sm:$0xff]
    %v2318 = vld [vmem:[#allocation4 + $0xf0] sm:$0xff]
    %v2319 = vld [vmem:[#allocation4 + $0xf8] sm:$0xff]
    %v2320 = vld [vmem:[#allocation4 + $0x100] sm:$0xff]
    %v2321 = vld [vmem:[#allocation4 + $0x108] sm:$0xff]
    %v2322 = vld [vmem:[#allocation4 + $0x110] sm:$0xff]
    %v2323 = vld [vmem:[#allocation4 + $0x118] sm:$0xff]
    %v2324 = vld [vmem:[#allocation4 + $0x120] sm:$0xff]
    %v2325 = vld [vmem:[#allocation4 + $0x128] sm:$0xff]
    %v2326 = vld [vmem:[#allocation4 + $0x130] sm:$0xff]
    %v2327 = vld [vmem:[#allocation4 + $0x138] sm:$0xff]
    %v2328 = vld [vmem:[#allocation4 + $0x140] sm:$0xff]
    %v2329 = vld [vmem:[#allocation4 + $0x148] sm:$0xff]
    %v2330 = vld [vmem:[#allocation4 + $0x150] sm:$0xff]
    %v2331 = vld [vmem:[#allocation4 + $0x158] sm:$0xff]
    %v2332 = vld [vmem:[#allocation4 + $0x160] sm:$0xff]
    %v2333 = vld [vmem:[#allocation4 + $0x168] sm:$0xff]
    %v2334 = vld [vmem:[#allocation4 + $0x170] sm:$0xff]
    %v2335 = vld [vmem:[#allocation4 + $0x178] sm:$0xff]
    %v2336 = vld [vmem:[#allocation4 + $0x180] sm:$0xff]
    %v2337 = vld [vmem:[#allocation4 + $0x188] sm:$0xff]
    %v2338 = vld [vmem:[#allocation4 + $0x190] sm:$0xff]
    %v2339 = vld [vmem:[#allocation4 + $0x198] sm:$0xff]
    %v2340 = vld [vmem:[#allocation4 + $0x1a0] sm:$0xff]
    %v2341 = vld [vmem:[#allocation4 + $0x1a8] sm:$0xff]
    %v2342 = vld [vmem:[#allocation4 + $0x1b0] sm:$0xff]
    %v2343 = vld [vmem:[#allocation4 + $0x1b8] sm:$0xff]
    %v2344 = vld [vmem:[#allocation4 + $0x1c0] sm:$0xff]
    %v2345 = vld [vmem:[#allocation4 + $0x1c8] sm:$0xff]
    %v2346 = vld [vmem:[#allocation4 + $0x1d0] sm:$0xff]
    %v2347 = vld [vmem:[#allocation4 + $0x1d8] sm:$0xff]
    %v2348 = vld [vmem:[#allocation4 + $0x1e0] sm:$0xff]
    %v2349 = vld [vmem:[#allocation4 + $0x1e8] sm:$0xff]
    %v2350 = vld [vmem:[#allocation4 + $0x1f0] sm:$0xff]
    %v2351 = vld [vmem:[#allocation4 + $0x1f8] sm:$0xff]
    %v2352 = vld [vmem:[%s7] sm:$0xff]
    %v2353 = vld [vmem:[%s7 + $0x8] sm:$0xff]
    %v2354 = vld [vmem:[%s7 + $0x10] sm:$0xff]
    %v2355 = vld [vmem:[%s7 + $0x18] sm:$0xff]
    %v2356 = vld [vmem:[%s7 + $0x20] sm:$0xff]
    %v2357 = vld [vmem:[%s7 + $0x28] sm:$0xff]
    %v2358 = vld [vmem:[%s7 + $0x30] sm:$0xff]
    %v2359 = vld [vmem:[%s7 + $0x38] sm:$0xff]
    %v2360 = vld [vmem:[%s7 + $0x40] sm:$0xff]
    %v2361 = vld [vmem:[%s7 + $0x48] sm:$0xff]
    %v2362 = vld [vmem:[%s7 + $0x50] sm:$0xff]
    %v2363 = vld [vmem:[%s7 + $0x58] sm:$0xff]
    %v2364 = vld [vmem:[%s7 + $0x60] sm:$0xff]
    %v2365 = vld [vmem:[%s7 + $0x68] sm:$0xff]
    %v2366 = vld [vmem:[%s7 + $0x70] sm:$0xff]
    %v2367 = vld [vmem:[%s7 + $0x78] sm:$0xff]
    %v2368 = vld [vmem:[%s7 + $0x80] sm:$0xff]
    %v2369 = vld [vmem:[%s7 + $0x88] sm:$0xff]
    %v2370 = vld [vmem:[%s7 + $0x90] sm:$0xff]
    %v2371 = vld [vmem:[%s7 + $0x98] sm:$0xff]
    %v2372 = vld [vmem:[%s7 + $0xa0] sm:$0xff]
    %v2373 = vld [vmem:[%s7 + $0xa8] sm:$0xff]
    %v2374 = vld [vmem:[%s7 + $0xb0] sm:$0xff]
    %v2375 = vld [vmem:[%s7 + $0xb8] sm:$0xff]
    %v2376 = vld [vmem:[%s7 + $0xc0] sm:$0xff]
    %v2377 = vld [vmem:[%s7 + $0xc8] sm:$0xff]
    %v2378 = vld [vmem:[%s7 + $0xd0] sm:$0xff]
    %v2379 = vld [vmem:[%s7 + $0xd8] sm:$0xff]
    %v2380 = vld [vmem:[%s7 + $0xe0] sm:$0xff]
    %v2381 = vld [vmem:[%s7 + $0xe8] sm:$0xff]
    %v2382 = vld [vmem:[%s7 + $0xf0] sm:$0xff]
    %v2383 = vld [vmem:[%s7 + $0xf8] sm:$0xff]
    %v2384 = vld [vmem:[%s7 + $0x100] sm:$0xff]
    %v2385 = vld [vmem:[%s7 + $0x108] sm:$0xff]
    %v2386 = vld [vmem:[%s7 + $0x110] sm:$0xff]
    %v2387 = vld [vmem:[%s7 + $0x118] sm:$0xff]
    %v2388 = vld [vmem:[%s7 + $0x120] sm:$0xff]
    %v2389 = vld [vmem:[%s7 + $0x128] sm:$0xff]
    %v2390 = vld [vmem:[%s7 + $0x130] sm:$0xff]
    %v2391 = vld [vmem:[%s7 + $0x138] sm:$0xff]
    %v2392 = vld [vmem:[%s7 + $0x140] sm:$0xff]
    %v2393 = vld [vmem:[%s7 + $0x148] sm:$0xff]
    %v2394 = vld [vmem:[%s7 + $0x150] sm:$0xff]
    %v2395 = vld [vmem:[%s7 + $0x158] sm:$0xff]
    %v2396 = vld [vmem:[%s7 + $0x160] sm:$0xff]
    %v2397 = vld [vmem:[%s7 + $0x168] sm:$0xff]
    %v2398 = vld [vmem:[%s7 + $0x170] sm:$0xff]
    %v2399 = vld [vmem:[%s7 + $0x178] sm:$0xff]
    %v2400 = vld [vmem:[%s7 + $0x180] sm:$0xff]
    %v2401 = vld [vmem:[%s7 + $0x188] sm:$0xff]
    %v2402 = vld [vmem:[%s7 + $0x190] sm:$0xff]
    %v2403 = vld [vmem:[%s7 + $0x198] sm:$0xff]
    %v2404 = vld [vmem:[%s7 + $0x1a0] sm:$0xff]
    %v2405 = vld [vmem:[%s7 + $0x1a8] sm:$0xff]
    %v2406 = vld [vmem:[%s7 + $0x1b0] sm:$0xff]
    %v2407 = vld [vmem:[%s7 + $0x1b8] sm:$0xff]
    %v2408 = vld [vmem:[%s7 + $0x1c0] sm:$0xff]
    %v2409 = vld [vmem:[%s7 + $0x1c8] sm:$0xff]
    %v2410 = vld [vmem:[%s7 + $0x1d0] sm:$0xff]
    %v2411 = vld [vmem:[%s7 + $0x1d8] sm:$0xff]
    %v2412 = vld [vmem:[%s7 + $0x1e0] sm:$0xff]
    %v2413 = vld [vmem:[%s7 + $0x1e8] sm:$0xff]
    %v2414 = vld [vmem:[%s7 + $0x1f0] sm:$0xff]
    %v2415 = vld [vmem:[%s7 + $0x1f8] sm:$0xff]
    %v2416 = vld [vmem:[%s10] sm:$0xf]
    %v2418 = vlaneseq
    %v2419 = vshrl.u32 %v2418, 7
    %v2420 = vsub.s32 0, %v2419
    %v2421 = vrot.slane %v2416, %v2420
    %v2422 = vlaneseq
    %v2423 = vshrl.u32 %v2422, 7
    %v2424 = vsub.s32 1, %v2423
    %v2425 = vrot.slane %v2416, %v2424
    %v2426 = vlaneseq
    %v2427 = vshrl.u32 %v2426, 7
    %v2428 = vsub.s32 2, %v2427
    %v2429 = vrot.slane %v2416, %v2428
    %v2430 = vlaneseq
    %v2431 = vshrl.u32 %v2430, 7
    %v2432 = vsub.s32 3, %v2431
    %v2433 = vrot.slane %v2416, %v2432
    %2438 = vmatprep.subr.mxu0 %v2413
    %2439 = vmatpush1.msra.mxu0 %v2412
    %2440 = vmatprep.subr.mxu0 %v2409
    %2441 = vmatpush1.msra.mxu0 %v2408
    %2442 = vmatprep.subr.mxu0 %v2405
    %2443 = vmatpush1.msra.mxu0 %v2404
    %2444 = vmatprep.subr.mxu0 %v2401
    %2445 = vmatpush1.msra.mxu0 %v2400
    %2446 = vmatprep.subr.mxu0 %v2397
    %2447 = vmatpush1.msra.mxu0 %v2396
    %2448 = vmatprep.subr.mxu0 %v2393
    %2449 = vmatpush1.msra.mxu0 %v2392
    %2450 = vmatprep.subr.mxu0 %v2389
    %2451 = vmatpush1.msra.mxu0 %v2388
    %2452 = vmatprep.subr.mxu0 %v2385
    %2453 = vmatpush1.msra.mxu0 %v2384
    %2454 = vmatprep.subr.mxu0 %v2381
    %2455 = vmatpush1.msra.mxu0 %v2380
    %2456 = vmatprep.subr.mxu0 %v2377
    %2457 = vmatpush1.msra.mxu0 %v2376
    %2458 = vmatprep.subr.mxu0 %v2373
    %2459 = vmatpush1.msra.mxu0 %v2372
    %2460 = vmatprep.subr.mxu0 %v2369
    %2461 = vmatpush1.msra.mxu0 %v2368
    %2462 = vmatprep.subr.mxu0 %v2365
    %2463 = vmatpush1.msra.mxu0 %v2364
    %2464 = vmatprep.subr.mxu0 %v2361
    %2465 = vmatpush1.msra.mxu0 %v2360
    %2466 = vmatprep.subr.mxu0 %v2357
    %2467 = vmatpush1.msra.mxu0 %v2356
    %2468 = vmatprep.subr.mxu0 %v2353
    %2469 = vmatpush1.msra.mxu0 %v2352
    %2470 = vmatprep.subr.mxu0 0.0
    %2471 = vmatpush2.msra.mxu0 0.0
    %2472 = vmatprep.subr.mxu0 0.0
    %2473 = vmatpush2.msra.mxu0 0.0
    %2474 = vmatprep.subr.mxu0 0.0
    %2475 = vmatpush2.msra.mxu0 0.0
    %2476 = vmatprep.subr.mxu0 0.0
    %2477 = vmatpush2.msra.mxu0 0.0
    %2478 = vmatprep.subr.mxu0 0.0
    %2479 = vmatpush2.msra.mxu0 0.0
    %2480 = vmatprep.subr.mxu0 0.0
    %2481 = vmatpush2.msra.mxu0 0.0
    %2482 = vmatprep.subr.mxu0 0.0
    %2483 = vmatpush2.msra.mxu0 0.0
    %2484 = vmatprep.subr.mxu0 0.0
    %2485 = vmatpush2.msra.mxu0 0.0
    %2486 = vmatprep.subr.mxu0 0.0
    %2487 = vmatpush2.msra.mxu0 0.0
    %2488 = vmatprep.subr.mxu0 0.0
    %2489 = vmatpush2.msra.mxu0 0.0
    %2490 = vmatprep.subr.mxu0 0.0
    %2491 = vmatpush2.msra.mxu0 0.0
    %2492 = vmatprep.subr.mxu0 0.0
    %2493 = vmatpush2.msra.mxu0 0.0
    %2494 = vmatprep.subr.mxu0 0.0
    %2495 = vmatpush2.msra.mxu0 0.0
    %2496 = vmatprep.subr.mxu0 0.0
    %2497 = vmatpush2.msra.mxu0 0.0
    %2498 = vmatprep.subr.mxu0 0.0
    %2499 = vmatpush2.msra.mxu0 0.0
    %2500 = vmatprep.subr.mxu0 0.0
    %2501 = vmatpush2.msra.mxu0 0.0
    %2502 = vmatprep.mubr.f32.mxu0 0.0
    %2503 = vmatmul.mubr.f32.gmra.mxu0 %v1104
    %v2504 = vpop.f32.mrf.mxu0
    %v2505 = vadd.f32 %v2421, %v2504
    %v2506 = vpop.f32.mrf.mxu0
    %v2507 = vadd.f32 %v2425, %v2506
    %2508 = vmatprep.mubr.f32.mxu0 0.0
    %2509 = vmatmul.mubr.f32.gmra.mxu0 %v1273
    %v2510 = vpop.f32.mrf.mxu0
    %v2511 = vadd.f32 %v2421, %v2510
    %v2512 = vpop.f32.mrf.mxu0
    %v2513 = vadd.f32 %v2425, %v2512
    %2514 = vmatprep.mubr.f32.mxu0 0.0
    %2515 = vmatmul.mubr.f32.gmra.mxu0 %v1442
    %v2516 = vpop.f32.mrf.mxu0
    %v2517 = vadd.f32 %v2421, %v2516
    %v2518 = vpop.f32.mrf.mxu0
    %v2519 = vadd.f32 %v2425, %v2518
    %2520 = vmatprep.mubr.f32.mxu0 0.0
    %2521 = vmatmul.mubr.f32.gmra.mxu0 %v1611
    %v2522 = vpop.f32.mrf.mxu0
    %v2523 = vadd.f32 %v2421, %v2522
    %v2524 = vpop.f32.mrf.mxu0
    %v2525 = vadd.f32 %v2425, %v2524
    %2526 = vmatprep.mubr.f32.mxu0 0.0
    %2527 = vmatmul.mubr.f32.gmra.mxu0 %v1780
    %v2528 = vpop.f32.mrf.mxu0
    %v2529 = vadd.f32 %v2421, %v2528
    %v2530 = vpop.f32.mrf.mxu0
    %v2531 = vadd.f32 %v2425, %v2530
    %2532 = vmatprep.mubr.f32.mxu0 0.0
    %2533 = vmatmul.mubr.f32.gmra.mxu0 %v1949
    %v2534 = vpop.f32.mrf.mxu0
    %v2535 = vadd.f32 %v2421, %v2534
    %v2536 = vpop.f32.mrf.mxu0
    %v2537 = vadd.f32 %v2425, %v2536
    %2538 = vmatprep.mubr.f32.mxu0 0.0
    %2539 = vmatmul.mubr.f32.gmra.mxu0 %v2118
    %v2540 = vpop.f32.mrf.mxu0
    %v2541 = vadd.f32 %v2421, %v2540
    %v2542 = vpop.f32.mrf.mxu0
    %v2543 = vadd.f32 %v2425, %v2542
    %2544 = vmatprep.mubr.f32.mxu0 0.0
    %2545 = vmatmul.mubr.f32.gmra.mxu0 %v2287
    %v2546 = vpop.f32.mrf.mxu0
    %v2547 = vadd.f32 %v2421, %v2546
    %v2548 = vpop.f32.mrf.mxu0
    %v2549 = vadd.f32 %v2425, %v2548
    %2550 = vdwg.mxu0
    %2551 = vmatprep.subr.mxu0 %v2415
    %2552 = vmatpush1.msra.mxu0 %v2414
    %2553 = vmatprep.subr.mxu0 %v2411
    %2554 = vmatpush1.msra.mxu0 %v2410
    %2555 = vmatprep.subr.mxu0 %v2407
    %2556 = vmatpush1.msra.mxu0 %v2406
    %2557 = vmatprep.subr.mxu0 %v2403
    %2558 = vmatpush1.msra.mxu0 %v2402
    %2559 = vmatprep.subr.mxu0 %v2399
    %2560 = vmatpush1.msra.mxu0 %v2398
    %2561 = vmatprep.subr.mxu0 %v2395
    %2562 = vmatpush1.msra.mxu0 %v2394
    %2563 = vmatprep.subr.mxu0 %v2391
    %2564 = vmatpush1.msra.mxu0 %v2390
    %2565 = vmatprep.subr.mxu0 %v2387
    %2566 = vmatpush1.msra.mxu0 %v2386
    %2567 = vmatprep.subr.mxu0 %v2383
    %2568 = vmatpush1.msra.mxu0 %v2382
    %2569 = vmatprep.subr.mxu0 %v2379
    %2570 = vmatpush1.msra.mxu0 %v2378
    %2571 = vmatprep.subr.mxu0 %v2375
    %2572 = vmatpush1.msra.mxu0 %v2374
    %2573 = vmatprep.subr.mxu0 %v2371
    %2574 = vmatpush1.msra.mxu0 %v2370
    %2575 = vmatprep.subr.mxu0 %v2367
    %2576 = vmatpush1.msra.mxu0 %v2366
    %2577 = vmatprep.subr.mxu0 %v2363
    %2578 = vmatpush1.msra.mxu0 %v2362
    %2579 = vmatprep.subr.mxu0 %v2359
    %2580 = vmatpush1.msra.mxu0 %v2358
    %2581 = vmatprep.subr.mxu0 %v2355
    %2582 = vmatpush1.msra.mxu0 %v2354
    %2583 = vmatprep.subr.mxu0 0.0
    %2584 = vmatpush2.msra.mxu0 0.0
    %2585 = vmatprep.subr.mxu0 0.0
    %2586 = vmatpush2.msra.mxu0 0.0
    %2587 = vmatprep.subr.mxu0 0.0
    %2588 = vmatpush2.msra.mxu0 0.0
    %2589 = vmatprep.subr.mxu0 0.0
    %2590 = vmatpush2.msra.mxu0 0.0
    %2591 = vmatprep.subr.mxu0 0.0
    %2592 = vmatpush2.msra.mxu0 0.0
    %2593 = vmatprep.subr.mxu0 0.0
    %2594 = vmatpush2.msra.mxu0 0.0
    %2595 = vmatprep.subr.mxu0 0.0
    %2596 = vmatpush2.msra.mxu0 0.0
    %2597 = vmatprep.subr.mxu0 0.0
    %2598 = vmatpush2.msra.mxu0 0.0
    %2599 = vmatprep.subr.mxu0 0.0
    %2600 = vmatpush2.msra.mxu0 0.0
    %2601 = vmatprep.subr.mxu0 0.0
    %2602 = vmatpush2.msra.mxu0 0.0
    %2603 = vmatprep.subr.mxu0 0.0
    %2604 = vmatpush2.msra.mxu0 0.0
    %2605 = vmatprep.subr.mxu0 0.0
    %2606 = vmatpush2.msra.mxu0 0.0
    %2607 = vmatprep.subr.mxu0 0.0
    %2608 = vmatpush2.msra.mxu0 0.0
    %2609 = vmatprep.subr.mxu0 0.0
    %2610 = vmatpush2.msra.mxu0 0.0
    %2611 = vmatprep.subr.mxu0 0.0
    %2612 = vmatpush2.msra.mxu0 0.0
    %2613 = vmatprep.subr.mxu0 0.0
    %2614 = vmatpush2.msra.mxu0 0.0
    %2615 = vmatprep.mubr.f32.mxu0 0.0
    %2616 = vmatmul.mubr.f32.gmra.mxu0 %v1104
    %v2617 = vpop.f32.mrf.mxu0
    %v2618 = vadd.f32 %v2429, %v2617
    %v2619 = vpop.f32.mrf.mxu0
    %v2620 = vadd.f32 %v2433, %v2619
    %2621 = vmatprep.mubr.f32.mxu0 0.0
    %2622 = vmatmul.mubr.f32.gmra.mxu0 %v1273
    %v2623 = vpop.f32.mrf.mxu0
    %v2624 = vadd.f32 %v2429, %v2623
    %v2625 = vpop.f32.mrf.mxu0
    %v2626 = vadd.f32 %v2433, %v2625
    %2627 = vmatprep.mubr.f32.mxu0 0.0
    %2628 = vmatmul.mubr.f32.gmra.mxu0 %v1442
    %v2629 = vpop.f32.mrf.mxu0
    %v2630 = vadd.f32 %v2429, %v2629
    %v2631 = vpop.f32.mrf.mxu0
    %v2632 = vadd.f32 %v2433, %v2631
    %2633 = vmatprep.mubr.f32.mxu0 0.0
    %2634 = vmatmul.mubr.f32.gmra.mxu0 %v1611
    %v2635 = vpop.f32.mrf.mxu0
    %v2636 = vadd.f32 %v2429, %v2635
    %v2637 = vpop.f32.mrf.mxu0
    %v2638 = vadd.f32 %v2433, %v2637
    %2639 = vmatprep.mubr.f32.mxu0 0.0
    %2640 = vmatmul.mubr.f32.gmra.mxu0 %v1780
    %v2641 = vpop.f32.mrf.mxu0
    %v2642 = vadd.f32 %v2429, %v2641
    %v2643 = vpop.f32.mrf.mxu0
    %v2644 = vadd.f32 %v2433, %v2643
    %2645 = vmatprep.mubr.f32.mxu0 0.0
    %2646 = vmatmul.mubr.f32.gmra.mxu0 %v1949
    %v2647 = vpop.f32.mrf.mxu0
    %v2648 = vadd.f32 %v2429, %v2647
    %v2649 = vpop.f32.mrf.mxu0
    %v2650 = vadd.f32 %v2433, %v2649
    %2651 = vmatprep.mubr.f32.mxu0 0.0
    %2652 = vmatmul.mubr.f32.gmra.mxu0 %v2118
    %v2653 = vpop.f32.mrf.mxu0
    %v2654 = vadd.f32 %v2429, %v2653
    %v2655 = vpop.f32.mrf.mxu0
    %v2656 = vadd.f32 %v2433, %v2655
    %2657 = vmatprep.mubr.f32.mxu0 0.0
    %2658 = vmatmul.mubr.f32.gmra.mxu0 %v2287
    %v2659 = vpop.f32.mrf.mxu0
    %v2660 = vadd.f32 %v2429, %v2659
    %v2661 = vpop.f32.mrf.mxu0
    %v2662 = vadd.f32 %v2433, %v2661
    %2663 = vdwg.mxu0
    %v2664 = vld [vmem:[%s8] sm:$0xff]
    %v2665 = vld [vmem:[%s8 + $0x8] sm:$0xff]
    %v2666 = vld [vmem:[%s8 + $0x10] sm:$0xff]
    %v2667 = vld [vmem:[%s8 + $0x18] sm:$0xff]
    %v2668 = vld [vmem:[%s8 + $0x20] sm:$0xff]
    %v2669 = vld [vmem:[%s8 + $0x28] sm:$0xff]
    %v2670 = vld [vmem:[%s8 + $0x30] sm:$0xff]
    %v2671 = vld [vmem:[%s8 + $0x38] sm:$0xff]
    %v2672 = vld [vmem:[%s8 + $0x40] sm:$0xff]
    %v2673 = vld [vmem:[%s8 + $0x48] sm:$0xff]
    %v2674 = vld [vmem:[%s8 + $0x50] sm:$0xff]
    %v2675 = vld [vmem:[%s8 + $0x58] sm:$0xff]
    %v2676 = vld [vmem:[%s8 + $0x60] sm:$0xff]
    %v2677 = vld [vmem:[%s8 + $0x68] sm:$0xff]
    %v2678 = vld [vmem:[%s8 + $0x70] sm:$0xff]
    %v2679 = vld [vmem:[%s8 + $0x78] sm:$0xff]
    %v2680 = vld [vmem:[%s8 + $0x80] sm:$0xff]
    %v2681 = vld [vmem:[%s8 + $0x88] sm:$0xff]
    %v2682 = vld [vmem:[%s8 + $0x90] sm:$0xff]
    %v2683 = vld [vmem:[%s8 + $0x98] sm:$0xff]
    %v2684 = vld [vmem:[%s8 + $0xa0] sm:$0xff]
    %v2685 = vld [vmem:[%s8 + $0xa8] sm:$0xff]
    %v2686 = vld [vmem:[%s8 + $0xb0] sm:$0xff]
    %v2687 = vld [vmem:[%s8 + $0xb8] sm:$0xff]
    %v2688 = vld [vmem:[%s8 + $0xc0] sm:$0xff]
    %v2689 = vld [vmem:[%s8 + $0xc8] sm:$0xff]
    %v2690 = vld [vmem:[%s8 + $0xd0] sm:$0xff]
    %v2691 = vld [vmem:[%s8 + $0xd8] sm:$0xff]
    %v2692 = vld [vmem:[%s8 + $0xe0] sm:$0xff]
    %v2693 = vld [vmem:[%s8 + $0xe8] sm:$0xff]
    %v2694 = vld [vmem:[%s8 + $0xf0] sm:$0xff]
    %v2695 = vld [vmem:[%s8 + $0xf8] sm:$0xff]
    %v2696 = vld [vmem:[%s8 + $0x100] sm:$0xff]
    %v2697 = vld [vmem:[%s8 + $0x108] sm:$0xff]
    %v2698 = vld [vmem:[%s8 + $0x110] sm:$0xff]
    %v2699 = vld [vmem:[%s8 + $0x118] sm:$0xff]
    %v2700 = vld [vmem:[%s8 + $0x120] sm:$0xff]
    %v2701 = vld [vmem:[%s8 + $0x128] sm:$0xff]
    %v2702 = vld [vmem:[%s8 + $0x130] sm:$0xff]
    %v2703 = vld [vmem:[%s8 + $0x138] sm:$0xff]
    %v2704 = vld [vmem:[%s8 + $0x140] sm:$0xff]
    %v2705 = vld [vmem:[%s8 + $0x148] sm:$0xff]
    %v2706 = vld [vmem:[%s8 + $0x150] sm:$0xff]
    %v2707 = vld [vmem:[%s8 + $0x158] sm:$0xff]
    %v2708 = vld [vmem:[%s8 + $0x160] sm:$0xff]
    %v2709 = vld [vmem:[%s8 + $0x168] sm:$0xff]
    %v2710 = vld [vmem:[%s8 + $0x170] sm:$0xff]
    %v2711 = vld [vmem:[%s8 + $0x178] sm:$0xff]
    %v2712 = vld [vmem:[%s8 + $0x180] sm:$0xff]
    %v2713 = vld [vmem:[%s8 + $0x188] sm:$0xff]
    %v2714 = vld [vmem:[%s8 + $0x190] sm:$0xff]
    %v2715 = vld [vmem:[%s8 + $0x198] sm:$0xff]
    %v2716 = vld [vmem:[%s8 + $0x1a0] sm:$0xff]
    %v2717 = vld [vmem:[%s8 + $0x1a8] sm:$0xff]
    %v2718 = vld [vmem:[%s8 + $0x1b0] sm:$0xff]
    %v2719 = vld [vmem:[%s8 + $0x1b8] sm:$0xff]
    %v2720 = vld [vmem:[%s8 + $0x1c0] sm:$0xff]
    %v2721 = vld [vmem:[%s8 + $0x1c8] sm:$0xff]
    %v2722 = vld [vmem:[%s8 + $0x1d0] sm:$0xff]
    %v2723 = vld [vmem:[%s8 + $0x1d8] sm:$0xff]
    %v2724 = vld [vmem:[%s8 + $0x1e0] sm:$0xff]
    %v2725 = vld [vmem:[%s8 + $0x1e8] sm:$0xff]
    %v2726 = vld [vmem:[%s8 + $0x1f0] sm:$0xff]
    %v2727 = vld [vmem:[%s8 + $0x1f8] sm:$0xff]
    %2728 = vmatprep.subr.mxu0 %v2725
    %2729 = vmatpush1.msra.mxu0 %v2724
    %2730 = vmatprep.subr.mxu0 %v2721
    %2731 = vmatpush1.msra.mxu0 %v2720
    %2732 = vmatprep.subr.mxu0 %v2717
    %2733 = vmatpush1.msra.mxu0 %v2716
    %2734 = vmatprep.subr.mxu0 %v2713
    %2735 = vmatpush1.msra.mxu0 %v2712
    %2736 = vmatprep.subr.mxu0 %v2709
    %2737 = vmatpush1.msra.mxu0 %v2708
    %2738 = vmatprep.subr.mxu0 %v2705
    %2739 = vmatpush1.msra.mxu0 %v2704
    %2740 = vmatprep.subr.mxu0 %v2701
    %2741 = vmatpush1.msra.mxu0 %v2700
    %2742 = vmatprep.subr.mxu0 %v2697
    %2743 = vmatpush1.msra.mxu0 %v2696
    %2744 = vmatprep.subr.mxu0 %v2693
    %2745 = vmatpush1.msra.mxu0 %v2692
    %2746 = vmatprep.subr.mxu0 %v2689
    %2747 = vmatpush1.msra.mxu0 %v2688
    %2748 = vmatprep.subr.mxu0 %v2685
    %2749 = vmatpush1.msra.mxu0 %v2684
    %2750 = vmatprep.subr.mxu0 %v2681
    %2751 = vmatpush1.msra.mxu0 %v2680
    %2752 = vmatprep.subr.mxu0 %v2677
    %2753 = vmatpush1.msra.mxu0 %v2676
    %2754 = vmatprep.subr.mxu0 %v2673
    %2755 = vmatpush1.msra.mxu0 %v2672
    %2756 = vmatprep.subr.mxu0 %v2669
    %2757 = vmatpush1.msra.mxu0 %v2668
    %2758 = vmatprep.subr.mxu0 %v2665
    %2759 = vmatpush1.msra.mxu0 %v2664
    %2760 = vmatprep.subr.mxu0 0.0
    %2761 = vmatpush2.msra.mxu0 0.0
    %2762 = vmatprep.subr.mxu0 0.0
    %2763 = vmatpush2.msra.mxu0 0.0
    %2764 = vmatprep.subr.mxu0 0.0
    %2765 = vmatpush2.msra.mxu0 0.0
    %2766 = vmatprep.subr.mxu0 0.0
    %2767 = vmatpush2.msra.mxu0 0.0
    %2768 = vmatprep.subr.mxu0 0.0
    %2769 = vmatpush2.msra.mxu0 0.0
    %2770 = vmatprep.subr.mxu0 0.0
    %2771 = vmatpush2.msra.mxu0 0.0
    %2772 = vmatprep.subr.mxu0 0.0
    %2773 = vmatpush2.msra.mxu0 0.0
    %2774 = vmatprep.subr.mxu0 0.0
    %2775 = vmatpush2.msra.mxu0 0.0
    %2776 = vmatprep.subr.mxu0 0.0
    %2777 = vmatpush2.msra.mxu0 0.0
    %2778 = vmatprep.subr.mxu0 0.0
    %2779 = vmatpush2.msra.mxu0 0.0
    %2780 = vmatprep.subr.mxu0 0.0
    %2781 = vmatpush2.msra.mxu0 0.0
    %2782 = vmatprep.subr.mxu0 0.0
    %2783 = vmatpush2.msra.mxu0 0.0
    %2784 = vmatprep.subr.mxu0 0.0
    %2785 = vmatpush2.msra.mxu0 0.0
    %2786 = vmatprep.subr.mxu0 0.0
    %2787 = vmatpush2.msra.mxu0 0.0
    %2788 = vmatprep.subr.mxu0 0.0
    %2789 = vmatpush2.msra.mxu0 0.0
    %2790 = vmatprep.subr.mxu0 0.0
    %2791 = vmatpush2.msra.mxu0 0.0
    %2792 = vmatprep.mubr.f32.mxu0 0.0
    %2793 = vmatmul.mubr.f32.gmra.mxu0 %v1104
    %v2794 = vpop.f32.mrf.mxu0
    %v2795 = vadd.f32 0.0, %v2794
    %v2796 = vpop.f32.mrf.mxu0
    %v2797 = vadd.f32 0.0, %v2796
    %2798 = vmatprep.mubr.f32.mxu0 0.0
    %2799 = vmatmul.mubr.f32.gmra.mxu0 %v1273
    %v2800 = vpop.f32.mrf.mxu0
    %v2801 = vadd.f32 0.0, %v2800
    %v2802 = vpop.f32.mrf.mxu0
    %v2803 = vadd.f32 0.0, %v2802
    %2804 = vmatprep.mubr.f32.mxu0 0.0
    %2805 = vmatmul.mubr.f32.gmra.mxu0 %v1442
    %v2806 = vpop.f32.mrf.mxu0
    %v2807 = vadd.f32 0.0, %v2806
    %v2808 = vpop.f32.mrf.mxu0
    %v2809 = vadd.f32 0.0, %v2808
    %2810 = vmatprep.mubr.f32.mxu0 0.0
    %2811 = vmatmul.mubr.f32.gmra.mxu0 %v1611
    %v2812 = vpop.f32.mrf.mxu0
    %v2813 = vadd.f32 0.0, %v2812
    %v2814 = vpop.f32.mrf.mxu0
    %v2815 = vadd.f32 0.0, %v2814
    %2816 = vmatprep.mubr.f32.mxu0 0.0
    %2817 = vmatmul.mubr.f32.gmra.mxu0 %v1780
    %v2818 = vpop.f32.mrf.mxu0
    %v2819 = vadd.f32 0.0, %v2818
    %v2820 = vpop.f32.mrf.mxu0
    %v2821 = vadd.f32 0.0, %v2820
    %2822 = vmatprep.mubr.f32.mxu0 0.0
    %2823 = vmatmul.mubr.f32.gmra.mxu0 %v1949
    %v2824 = vpop.f32.mrf.mxu0
    %v2825 = vadd.f32 0.0, %v2824
    %v2826 = vpop.f32.mrf.mxu0
    %v2827 = vadd.f32 0.0, %v2826
    %2828 = vmatprep.mubr.f32.mxu0 0.0
    %2829 = vmatmul.mubr.f32.gmra.mxu0 %v2118
    %v2830 = vpop.f32.mrf.mxu0
    %v2831 = vadd.f32 0.0, %v2830
    %v2832 = vpop.f32.mrf.mxu0
    %v2833 = vadd.f32 0.0, %v2832
    %2834 = vmatprep.mubr.f32.mxu0 0.0
    %2835 = vmatmul.mubr.f32.gmra.mxu0 %v2287
    %v2836 = vpop.f32.mrf.mxu0
    %v2837 = vadd.f32 0.0, %v2836
    %v2838 = vpop.f32.mrf.mxu0
    %v2839 = vadd.f32 0.0, %v2838
    %2840 = vdwg.mxu0
    %2841 = vmatprep.subr.mxu0 %v2727
    %2842 = vmatpush1.msra.mxu0 %v2726
    %2843 = vmatprep.subr.mxu0 %v2723
    %2844 = vmatpush1.msra.mxu0 %v2722
    %2845 = vmatprep.subr.mxu0 %v2719
    %2846 = vmatpush1.msra.mxu0 %v2718
    %2847 = vmatprep.subr.mxu0 %v2715
    %2848 = vmatpush1.msra.mxu0 %v2714
    %2849 = vmatprep.subr.mxu0 %v2711
    %2850 = vmatpush1.msra.mxu0 %v2710
    %2851 = vmatprep.subr.mxu0 %v2707
    %2852 = vmatpush1.msra.mxu0 %v2706
    %2853 = vmatprep.subr.mxu0 %v2703
    %2854 = vmatpush1.msra.mxu0 %v2702
    %2855 = vmatprep.subr.mxu0 %v2699
    %2856 = vmatpush1.msra.mxu0 %v2698
    %2857 = vmatprep.subr.mxu0 %v2695
    %2858 = vmatpush1.msra.mxu0 %v2694
    %2859 = vmatprep.subr.mxu0 %v2691
    %2860 = vmatpush1.msra.mxu0 %v2690
    %2861 = vmatprep.subr.mxu0 %v2687
    %2862 = vmatpush1.msra.mxu0 %v2686
    %2863 = vmatprep.subr.mxu0 %v2683
    %2864 = vmatpush1.msra.mxu0 %v2682
    %2865 = vmatprep.subr.mxu0 %v2679
    %2866 = vmatpush1.msra.mxu0 %v2678
    %2867 = vmatprep.subr.mxu0 %v2675
    %2868 = vmatpush1.msra.mxu0 %v2674
    %2869 = vmatprep.subr.mxu0 %v2671
    %2870 = vmatpush1.msra.mxu0 %v2670
    %2871 = vmatprep.subr.mxu0 %v2667
    %2872 = vmatpush1.msra.mxu0 %v2666
    %2873 = vmatprep.subr.mxu0 0.0
    %2874 = vmatpush2.msra.mxu0 0.0
    %2875 = vmatprep.subr.mxu0 0.0
    %2876 = vmatpush2.msra.mxu0 0.0
    %2877 = vmatprep.subr.mxu0 0.0
    %2878 = vmatpush2.msra.mxu0 0.0
    %2879 = vmatprep.subr.mxu0 0.0
    %2880 = vmatpush2.msra.mxu0 0.0
    %2881 = vmatprep.subr.mxu0 0.0
    %2882 = vmatpush2.msra.mxu0 0.0
    %2883 = vmatprep.subr.mxu0 0.0
    %2884 = vmatpush2.msra.mxu0 0.0
    %2885 = vmatprep.subr.mxu0 0.0
    %2886 = vmatpush2.msra.mxu0 0.0
    %2887 = vmatprep.subr.mxu0 0.0
    %2888 = vmatpush2.msra.mxu0 0.0
    %2889 = vmatprep.subr.mxu0 0.0
    %2890 = vmatpush2.msra.mxu0 0.0
    %2891 = vmatprep.subr.mxu0 0.0
    %2892 = vmatpush2.msra.mxu0 0.0
    %2893 = vmatprep.subr.mxu0 0.0
    %2894 = vmatpush2.msra.mxu0 0.0
    %2895 = vmatprep.subr.mxu0 0.0
    %2896 = vmatpush2.msra.mxu0 0.0
    %2897 = vmatprep.subr.mxu0 0.0
    %2898 = vmatpush2.msra.mxu0 0.0
    %2899 = vmatprep.subr.mxu0 0.0
    %2900 = vmatpush2.msra.mxu0 0.0
    %2901 = vmatprep.subr.mxu0 0.0
    %2902 = vmatpush2.msra.mxu0 0.0
    %2903 = vmatprep.subr.mxu0 0.0
    %2904 = vmatpush2.msra.mxu0 0.0
    %2905 = vmatprep.mubr.f32.mxu0 0.0
    %2906 = vmatmul.mubr.f32.gmra.mxu0 %v1104
    %v2907 = vpop.f32.mrf.mxu0
    %v2908 = vadd.f32 0.0, %v2907
    %v2909 = vpop.f32.mrf.mxu0
    %v2910 = vadd.f32 0.0, %v2909
    %2911 = vmatprep.mubr.f32.mxu0 0.0
    %2912 = vmatmul.mubr.f32.gmra.mxu0 %v1273
    %v2913 = vpop.f32.mrf.mxu0
    %v2914 = vadd.f32 0.0, %v2913
    %v2915 = vpop.f32.mrf.mxu0
    %v2916 = vadd.f32 0.0, %v2915
    %2917 = vmatprep.mubr.f32.mxu0 0.0
    %2918 = vmatmul.mubr.f32.gmra.mxu0 %v1442
    %v2919 = vpop.f32.mrf.mxu0
    %v2920 = vadd.f32 0.0, %v2919
    %v2921 = vpop.f32.mrf.mxu0
    %v2922 = vadd.f32 0.0, %v2921
    %2923 = vmatprep.mubr.f32.mxu0 0.0
    %2924 = vmatmul.mubr.f32.gmra.mxu0 %v1611
    %v2925 = vpop.f32.mrf.mxu0
    %v2926 = vadd.f32 0.0, %v2925
    %v2927 = vpop.f32.mrf.mxu0
    %v2928 = vadd.f32 0.0, %v2927
    %2929 = vmatprep.mubr.f32.mxu0 0.0
    %2930 = vmatmul.mubr.f32.gmra.mxu0 %v1780
    %v2931 = vpop.f32.mrf.mxu0
    %v2932 = vadd.f32 0.0, %v2931
    %v2933 = vpop.f32.mrf.mxu0
    %v2934 = vadd.f32 0.0, %v2933
    %2935 = vmatprep.mubr.f32.mxu0 0.0
    %2936 = vmatmul.mubr.f32.gmra.mxu0 %v1949
    %v2937 = vpop.f32.mrf.mxu0
    %v2938 = vadd.f32 0.0, %v2937
    %v2939 = vpop.f32.mrf.mxu0
    %v2940 = vadd.f32 0.0, %v2939
    %2941 = vmatprep.mubr.f32.mxu0 0.0
    %2942 = vmatmul.mubr.f32.gmra.mxu0 %v2118
    %v2943 = vpop.f32.mrf.mxu0
    %v2944 = vadd.f32 0.0, %v2943
    %v2945 = vpop.f32.mrf.mxu0
    %v2946 = vadd.f32 0.0, %v2945
    %2947 = vmatprep.mubr.f32.mxu0 0.0
    %2948 = vmatmul.mubr.f32.gmra.mxu0 %v2287
    %v2949 = vpop.f32.mrf.mxu0
    %v2950 = vadd.f32 0.0, %v2949
    %v2951 = vpop.f32.mrf.mxu0
    %v2952 = vadd.f32 0.0, %v2951
    %2953 = vdwg.mxu0
    %v2954 = vadd.f32 %v2505, %v2837
    %v2955 = vadd.f32 %v2507, %v2839
    %v2956 = vadd.f32 %v2618, %v2950
    %v2957 = vadd.f32 %v2620, %v2952
    %2958 = vmatprep.subr.mxu0 %v2349
    %2959 = vmatpush1.msra.mxu0 %v2348
    %2960 = vmatprep.subr.mxu0 %v2345
    %2961 = vmatpush1.msra.mxu0 %v2344
    %2962 = vmatprep.subr.mxu0 %v2341
    %2963 = vmatpush1.msra.mxu0 %v2340
    %2964 = vmatprep.subr.mxu0 %v2337
    %2965 = vmatpush1.msra.mxu0 %v2336
    %2966 = vmatprep.subr.mxu0 %v2333
    %2967 = vmatpush1.msra.mxu0 %v2332
    %2968 = vmatprep.subr.mxu0 %v2329
    %2969 = vmatpush1.msra.mxu0 %v2328
    %2970 = vmatprep.subr.mxu0 %v2325
    %2971 = vmatpush1.msra.mxu0 %v2324
    %2972 = vmatprep.subr.mxu0 %v2321
    %2973 = vmatpush1.msra.mxu0 %v2320
    %2974 = vmatprep.subr.mxu0 %v2317
    %2975 = vmatpush1.msra.mxu0 %v2316
    %2976 = vmatprep.subr.mxu0 %v2313
    %2977 = vmatpush1.msra.mxu0 %v2312
    %2978 = vmatprep.subr.mxu0 %v2309
    %2979 = vmatpush1.msra.mxu0 %v2308
    %2980 = vmatprep.subr.mxu0 %v2305
    %2981 = vmatpush1.msra.mxu0 %v2304
    %2982 = vmatprep.subr.mxu0 %v2301
    %2983 = vmatpush1.msra.mxu0 %v2300
    %2984 = vmatprep.subr.mxu0 %v2297
    %2985 = vmatpush1.msra.mxu0 %v2296
    %2986 = vmatprep.subr.mxu0 %v2293
    %2987 = vmatpush1.msra.mxu0 %v2292
    %2988 = vmatprep.subr.mxu0 %v2289
    %2989 = vmatpush1.msra.mxu0 %v2288
    %2990 = vmatprep.subr.mxu0 0.0
    %2991 = vmatpush2.msra.mxu0 0.0
    %2992 = vmatprep.subr.mxu0 0.0
    %2993 = vmatpush2.msra.mxu0 0.0
    %2994 = vmatprep.subr.mxu0 0.0
    %2995 = vmatpush2.msra.mxu0 0.0
    %2996 = vmatprep.subr.mxu0 0.0
    %2997 = vmatpush2.msra.mxu0 0.0
    %2998 = vmatprep.subr.mxu0 0.0
    %2999 = vmatpush2.msra.mxu0 0.0
    %3000 = vmatprep.subr.mxu0 0.0
    %3001 = vmatpush2.msra.mxu0 0.0
    %3002 = vmatprep.subr.mxu0 0.0
    %3003 = vmatpush2.msra.mxu0 0.0
    %3004 = vmatprep.subr.mxu0 0.0
    %3005 = vmatpush2.msra.mxu0 0.0
    %3006 = vmatprep.subr.mxu0 0.0
    %3007 = vmatpush2.msra.mxu0 0.0
    %3008 = vmatprep.subr.mxu0 0.0
    %3009 = vmatpush2.msra.mxu0 0.0
    %3010 = vmatprep.subr.mxu0 0.0
    %3011 = vmatpush2.msra.mxu0 0.0
    %3012 = vmatprep.subr.mxu0 0.0
    %3013 = vmatpush2.msra.mxu0 0.0
    %3014 = vmatprep.subr.mxu0 0.0
    %3015 = vmatpush2.msra.mxu0 0.0
    %3016 = vmatprep.subr.mxu0 0.0
    %3017 = vmatpush2.msra.mxu0 0.0
    %3018 = vmatprep.subr.mxu0 0.0
    %3019 = vmatpush2.msra.mxu0 0.0
    %3020 = vmatprep.subr.mxu0 0.0
    %3021 = vmatpush2.msra.mxu0 0.0
    %3022 = vmatprep.mubr.f32.mxu0 0.0
    %3023 = vmatmul.mubr.f32.gmra.mxu0 0.0
    %v3024 = vpop.f32.mrf.mxu0
    %v3025 = vadd.f32 0.0, %v3024
    %v3026 = vpop.f32.mrf.mxu0
    %v3027 = vadd.f32 0.0, %v3026
    %3028 = vdwg.mxu0
    %3029 = vmatprep.subr.mxu0 %v2351
    %3030 = vmatpush1.msra.mxu0 %v2350
    %3031 = vmatprep.subr.mxu0 %v2347
    %3032 = vmatpush1.msra.mxu0 %v2346
    %3033 = vmatprep.subr.mxu0 %v2343
    %3034 = vmatpush1.msra.mxu0 %v2342
    %3035 = vmatprep.subr.mxu0 %v2339
    %3036 = vmatpush1.msra.mxu0 %v2338
    %3037 = vmatprep.subr.mxu0 %v2335
    %3038 = vmatpush1.msra.mxu0 %v2334
    %3039 = vmatprep.subr.mxu0 %v2331
    %3040 = vmatpush1.msra.mxu0 %v2330
    %3041 = vmatprep.subr.mxu0 %v2327
    %3042 = vmatpush1.msra.mxu0 %v2326
    %3043 = vmatprep.subr.mxu0 %v2323
    %3044 = vmatpush1.msra.mxu0 %v2322
    %3045 = vmatprep.subr.mxu0 %v2319
    %3046 = vmatpush1.msra.mxu0 %v2318
    %3047 = vmatprep.subr.mxu0 %v2315
    %3048 = vmatpush1.msra.mxu0 %v2314
    %3049 = vmatprep.subr.mxu0 %v2311
    %3050 = vmatpush1.msra.mxu0 %v2310
    %3051 = vmatprep.subr.mxu0 %v2307
    %3052 = vmatpush1.msra.mxu0 %v2306
    %3053 = vmatprep.subr.mxu0 %v2303
    %3054 = vmatpush1.msra.mxu0 %v2302
    %3055 = vmatprep.subr.mxu0 %v2299
    %3056 = vmatpush1.msra.mxu0 %v2298
    %3057 = vmatprep.subr.mxu0 %v2295
    %3058 = vmatpush1.msra.mxu0 %v2294
    %3059 = vmatprep.subr.mxu0 %v2291
    %3060 = vmatpush1.msra.mxu0 %v2290
    %3061 = vmatprep.subr.mxu0 0.0
    %3062 = vmatpush2.msra.mxu0 0.0
    %3063 = vmatprep.subr.mxu0 0.0
    %3064 = vmatpush2.msra.mxu0 0.0
    %3065 = vmatprep.subr.mxu0 0.0
    %3066 = vmatpush2.msra.mxu0 0.0
    %3067 = vmatprep.subr.mxu0 0.0
    %3068 = vmatpush2.msra.mxu0 0.0
    %3069 = vmatprep.subr.mxu0 0.0
    %3070 = vmatpush2.msra.mxu0 0.0
    %3071 = vmatprep.subr.mxu0 0.0
    %3072 = vmatpush2.msra.mxu0 0.0
    %3073 = vmatprep.subr.mxu0 0.0
    %3074 = vmatpush2.msra.mxu0 0.0
    %3075 = vmatprep.subr.mxu0 0.0
    %3076 = vmatpush2.msra.mxu0 0.0
    %3077 = vmatprep.subr.mxu0 0.0
    %3078 = vmatpush2.msra.mxu0 0.0
    %3079 = vmatprep.subr.mxu0 0.0
    %3080 = vmatpush2.msra.mxu0 0.0
    %3081 = vmatprep.subr.mxu0 0.0
    %3082 = vmatpush2.msra.mxu0 0.0
    %3083 = vmatprep.subr.mxu0 0.0
    %3084 = vmatpush2.msra.mxu0 0.0
    %3085 = vmatprep.subr.mxu0 0.0
    %3086 = vmatpush2.msra.mxu0 0.0
    %3087 = vmatprep.subr.mxu0 0.0
    %3088 = vmatpush2.msra.mxu0 0.0
    %3089 = vmatprep.subr.mxu0 0.0
    %3090 = vmatpush2.msra.mxu0 0.0
    %3091 = vmatprep.subr.mxu0 0.0
    %3092 = vmatpush2.msra.mxu0 0.0
    %3093 = vmatprep.mubr.f32.mxu0 0.0
    %3094 = vmatmul.mubr.f32.gmra.mxu0 0.0
    %v3095 = vpop.f32.mrf.mxu0
    %v3096 = vadd.f32 0.0, %v3095
    %v3097 = vpop.f32.mrf.mxu0
    %v3098 = vadd.f32 0.0, %v3097
    %3099 = vdwg.mxu0
    %v3100 = vadd.f32 %v2954, %v3025
    %v3101 = vadd.f32 %v2955, %v3027
    %v3102 = vadd.f32 %v2956, %v3096
    %v3103 = vadd.f32 %v2957, %v3098
    %v3104 = vmul.f32 %v3100, 0.5
    %v3105 = vmul.f32 %v3101, 0.5
    %v3106 = vmul.f32 %v3102, 0.5
    %v3107 = vmul.f32 %v3103, 0.5
    %v3108 = vtanh.pop %v3104
    %v3109 = vtanh.pop %v3105
    %v3110 = vtanh.pop %v3106
    %v3111 = vtanh.pop %v3107
    %v3112 = vmul.f32 %v3108, 0.5
    %v3113 = vadd.f32 %v3112, 0.5
    %v3114 = vmul.f32 %v3109, 0.5
    %v3115 = vadd.f32 %v3114, 0.5
    %v3116 = vmul.f32 %v3110, 0.5
    %v3117 = vadd.f32 %v3116, 0.5
    %v3118 = vmul.f32 %v3115, 0.0
    %v3119 = vmul.f32 %v3113, %v3111
    %v3120 = vadd.f32 %v3118, %v3119
    %v3121 = vtanh.pop %v3120
    %v3122 = vmul.f32 %v3117, %v3121
    %v3123 = vadd.f32 %v2511, %v2831
    %v3124 = vadd.f32 %v2513, %v2833
    %v3125 = vadd.f32 %v2624, %v2944
    %v3126 = vadd.f32 %v2626, %v2946
    %3127 = vmatprep.subr.mxu0 %v2349
    %3128 = vmatpush1.msra.mxu0 %v2348
    %3129 = vmatprep.subr.mxu0 %v2345
    %3130 = vmatpush1.msra.mxu0 %v2344
    %3131 = vmatprep.subr.mxu0 %v2341
    %3132 = vmatpush1.msra.mxu0 %v2340
    %3133 = vmatprep.subr.mxu0 %v2337
    %3134 = vmatpush1.msra.mxu0 %v2336
    %3135 = vmatprep.subr.mxu0 %v2333
    %3136 = vmatpush1.msra.mxu0 %v2332
    %3137 = vmatprep.subr.mxu0 %v2329
    %3138 = vmatpush1.msra.mxu0 %v2328
    %3139 = vmatprep.subr.mxu0 %v2325
    %3140 = vmatpush1.msra.mxu0 %v2324
    %3141 = vmatprep.subr.mxu0 %v2321
    %3142 = vmatpush1.msra.mxu0 %v2320
    %3143 = vmatprep.subr.mxu0 %v2317
    %3144 = vmatpush1.msra.mxu0 %v2316
    %3145 = vmatprep.subr.mxu0 %v2313
    %3146 = vmatpush1.msra.mxu0 %v2312
    %3147 = vmatprep.subr.mxu0 %v2309
    %3148 = vmatpush1.msra.mxu0 %v2308
    %3149 = vmatprep.subr.mxu0 %v2305
    %3150 = vmatpush1.msra.mxu0 %v2304
    %3151 = vmatprep.subr.mxu0 %v2301
    %3152 = vmatpush1.msra.mxu0 %v2300
    %3153 = vmatprep.subr.mxu0 %v2297
    %3154 = vmatpush1.msra.mxu0 %v2296
    %3155 = vmatprep.subr.mxu0 %v2293
    %3156 = vmatpush1.msra.mxu0 %v2292
    %3157 = vmatprep.subr.mxu0 %v2289
    %3158 = vmatpush1.msra.mxu0 %v2288
    %3159 = vmatprep.subr.mxu0 0.0
    %3160 = vmatpush2.msra.mxu0 0.0
    %3161 = vmatprep.subr.mxu0 0.0
    %3162 = vmatpush2.msra.mxu0 0.0
    %3163 = vmatprep.subr.mxu0 0.0
    %3164 = vmatpush2.msra.mxu0 0.0
    %3165 = vmatprep.subr.mxu0 0.0
    %3166 = vmatpush2.msra.mxu0 0.0
    %3167 = vmatprep.subr.mxu0 0.0
    %3168 = vmatpush2.msra.mxu0 0.0
    %3169 = vmatprep.subr.mxu0 0.0
    %3170 = vmatpush2.msra.mxu0 0.0
    %3171 = vmatprep.subr.mxu0 0.0
    %3172 = vmatpush2.msra.mxu0 0.0
    %3173 = vmatprep.subr.mxu0 0.0
    %3174 = vmatpush2.msra.mxu0 0.0
    %3175 = vmatprep.subr.mxu0 0.0
    %3176 = vmatpush2.msra.mxu0 0.0
    %3177 = vmatprep.subr.mxu0 0.0
    %3178 = vmatpush2.msra.mxu0 0.0
    %3179 = vmatprep.subr.mxu0 0.0
    %3180 = vmatpush2.msra.mxu0 0.0
    %3181 = vmatprep.subr.mxu0 0.0
    %3182 = vmatpush2.msra.mxu0 0.0
    %3183 = vmatprep.subr.mxu0 0.0
    %3184 = vmatpush2.msra.mxu0 0.0
    %3185 = vmatprep.subr.mxu0 0.0
    %3186 = vmatpush2.msra.mxu0 0.0
    %3187 = vmatprep.subr.mxu0 0.0
    %3188 = vmatpush2.msra.mxu0 0.0
    %3189 = vmatprep.subr.mxu0 0.0
    %3190 = vmatpush2.msra.mxu0 0.0
    %3191 = vmatprep.mubr.f32.mxu0 0.0
    %3192 = vmatmul.mubr.f32.gmra.mxu0 %v3122
    %v3193 = vpop.f32.mrf.mxu0
    %v3194 = vadd.f32 0.0, %v3193
    %v3195 = vpop.f32.mrf.mxu0
    %v3196 = vadd.f32 0.0, %v3195
    %3197 = vdwg.mxu0
    %3198 = vmatprep.subr.mxu0 %v2351
    %3199 = vmatpush1.msra.mxu0 %v2350
    %3200 = vmatprep.subr.mxu0 %v2347
    %3201 = vmatpush1.msra.mxu0 %v2346
    %3202 = vmatprep.subr.mxu0 %v2343
    %3203 = vmatpush1.msra.mxu0 %v2342
    %3204 = vmatprep.subr.mxu0 %v2339
    %3205 = vmatpush1.msra.mxu0 %v2338
    %3206 = vmatprep.subr.mxu0 %v2335
    %3207 = vmatpush1.msra.mxu0 %v2334
    %3208 = vmatprep.subr.mxu0 %v2331
    %3209 = vmatpush1.msra.mxu0 %v2330
    %3210 = vmatprep.subr.mxu0 %v2327
    %3211 = vmatpush1.msra.mxu0 %v2326
    %3212 = vmatprep.subr.mxu0 %v2323
    %3213 = vmatpush1.msra.mxu0 %v2322
    %3214 = vmatprep.subr.mxu0 %v2319
    %3215 = vmatpush1.msra.mxu0 %v2318
    %3216 = vmatprep.subr.mxu0 %v2315
    %3217 = vmatpush1.msra.mxu0 %v2314
    %3218 = vmatprep.subr.mxu0 %v2311
    %3219 = vmatpush1.msra.mxu0 %v2310
    %3220 = vmatprep.subr.mxu0 %v2307
    %3221 = vmatpush1.msra.mxu0 %v2306
    %3222 = vmatprep.subr.mxu0 %v2303
    %3223 = vmatpush1.msra.mxu0 %v2302
    %3224 = vmatprep.subr.mxu0 %v2299
    %3225 = vmatpush1.msra.mxu0 %v2298
    %3226 = vmatprep.subr.mxu0 %v2295
    %3227 = vmatpush1.msra.mxu0 %v2294
    %3228 = vmatprep.subr.mxu0 %v2291
    %3229 = vmatpush1.msra.mxu0 %v2290
    %3230 = vmatprep.subr.mxu0 0.0
    %3231 = vmatpush2.msra.mxu0 0.0
    %3232 = vmatprep.subr.mxu0 0.0
    %3233 = vmatpush2.msra.mxu0 0.0
    %3234 = vmatprep.subr.mxu0 0.0
    %3235 = vmatpush2.msra.mxu0 0.0
    %3236 = vmatprep.subr.mxu0 0.0
    %3237 = vmatpush2.msra.mxu0 0.0
    %3238 = vmatprep.subr.mxu0 0.0
    %3239 = vmatpush2.msra.mxu0 0.0
    %3240 = vmatprep.subr.mxu0 0.0
    %3241 = vmatpush2.msra.mxu0 0.0
    %3242 = vmatprep.subr.mxu0 0.0
    %3243 = vmatpush2.msra.mxu0 0.0
    %3244 = vmatprep.subr.mxu0 0.0
    %3245 = vmatpush2.msra.mxu0 0.0
    %3246 = vmatprep.subr.mxu0 0.0
    %3247 = vmatpush2.msra.mxu0 0.0
    %3248 = vmatprep.subr.mxu0 0.0
    %3249 = vmatpush2.msra.mxu0 0.0
    %3250 = vmatprep.subr.mxu0 0.0
    %3251 = vmatpush2.msra.mxu0 0.0
    %3252 = vmatprep.subr.mxu0 0.0
    %3253 = vmatpush2.msra.mxu0 0.0
    %3254 = vmatprep.subr.mxu0 0.0
    %3255 = vmatpush2.msra.mxu0 0.0
    %3256 = vmatprep.subr.mxu0 0.0
    %3257 = vmatpush2.msra.mxu0 0.0
    %3258 = vmatprep.subr.mxu0 0.0
    %3259 = vmatpush2.msra.mxu0 0.0
    %3260 = vmatprep.subr.mxu0 0.0
    %3261 = vmatpush2.msra.mxu0 0.0
    %3262 = vmatprep.mubr.f32.mxu0 0.0
    %3263 = vmatmul.mubr.f32.gmra.mxu0 %v3122
    %v3264 = vpop.f32.mrf.mxu0
    %v3265 = vadd.f32 0.0, %v3264
    %v3266 = vpop.f32.mrf.mxu0
    %v3267 = vadd.f32 0.0, %v3266
    %3268 = vdwg.mxu0
    %v3269 = vadd.f32 %v3123, %v3194
    %v3270 = vadd.f32 %v3124, %v3196
    %v3271 = vadd.f32 %v3125, %v3265
    %v3272 = vadd.f32 %v3126, %v3267
    %v3273 = vmul.f32 %v3269, 0.5
    %v3274 = vmul.f32 %v3270, 0.5
    %v3275 = vmul.f32 %v3271, 0.5
    %v3276 = vmul.f32 %v3272, 0.5
    %v3277 = vtanh.pop %v3273
    %v3278 = vtanh.pop %v3274
    %v3279 = vtanh.pop %v3275
    %v3280 = vtanh.pop %v3276
    %v3281 = vmul.f32 %v3277, 0.5
    %v3282 = vadd.f32 %v3281, 0.5
    %v3283 = vmul.f32 %v3278, 0.5
    %v3284 = vadd.f32 %v3283, 0.5
    %v3285 = vmul.f32 %v3279, 0.5
    %v3286 = vadd.f32 %v3285, 0.5
    %v3287 = vmul.f32 %v3284, %v3120
    %v3288 = vmul.f32 %v3282, %v3280
    %v3289 = vadd.f32 %v3287, %v3288
    %v3290 = vtanh.pop %v3289
    %v3291 = vmul.f32 %v3286, %v3290
    %v3292 = vadd.f32 %v2517, %v2825
    %v3293 = vadd.f32 %v2519, %v2827
    %v3294 = vadd.f32 %v2630, %v2938
    %v3295 = vadd.f32 %v2632, %v2940
    %3296 = vmatprep.subr.mxu0 %v2349
    %3297 = vmatpush1.msra.mxu0 %v2348
    %3298 = vmatprep.subr.mxu0 %v2345
    %3299 = vmatpush1.msra.mxu0 %v2344
    %3300 = vmatprep.subr.mxu0 %v2341
    %3301 = vmatpush1.msra.mxu0 %v2340
    %3302 = vmatprep.subr.mxu0 %v2337
    %3303 = vmatpush1.msra.mxu0 %v2336
    %3304 = vmatprep.subr.mxu0 %v2333
    %3305 = vmatpush1.msra.mxu0 %v2332
    %3306 = vmatprep.subr.mxu0 %v2329
    %3307 = vmatpush1.msra.mxu0 %v2328
    %3308 = vmatprep.subr.mxu0 %v2325
    %3309 = vmatpush1.msra.mxu0 %v2324
    %3310 = vmatprep.subr.mxu0 %v2321
    %3311 = vmatpush1.msra.mxu0 %v2320
    %3312 = vmatprep.subr.mxu0 %v2317
    %3313 = vmatpush1.msra.mxu0 %v2316
    %3314 = vmatprep.subr.mxu0 %v2313
    %3315 = vmatpush1.msra.mxu0 %v2312
    %3316 = vmatprep.subr.mxu0 %v2309
    %3317 = vmatpush1.msra.mxu0 %v2308
    %3318 = vmatprep.subr.mxu0 %v2305
    %3319 = vmatpush1.msra.mxu0 %v2304
    %3320 = vmatprep.subr.mxu0 %v2301
    %3321 = vmatpush1.msra.mxu0 %v2300
    %3322 = vmatprep.subr.mxu0 %v2297
    %3323 = vmatpush1.msra.mxu0 %v2296
    %3324 = vmatprep.subr.mxu0 %v2293
    %3325 = vmatpush1.msra.mxu0 %v2292
    %3326 = vmatprep.subr.mxu0 %v2289
    %3327 = vmatpush1.msra.mxu0 %v2288
    %3328 = vmatprep.subr.mxu0 0.0
    %3329 = vmatpush2.msra.mxu0 0.0
    %3330 = vmatprep.subr.mxu0 0.0
    %3331 = vmatpush2.msra.mxu0 0.0
    %3332 = vmatprep.subr.mxu0 0.0
    %3333 = vmatpush2.msra.mxu0 0.0
    %3334 = vmatprep.subr.mxu0 0.0
    %3335 = vmatpush2.msra.mxu0 0.0
    %3336 = vmatprep.subr.mxu0 0.0
    %3337 = vmatpush2.msra.mxu0 0.0
    %3338 = vmatprep.subr.mxu0 0.0
    %3339 = vmatpush2.msra.mxu0 0.0
    %3340 = vmatprep.subr.mxu0 0.0
    %3341 = vmatpush2.msra.mxu0 0.0
    %3342 = vmatprep.subr.mxu0 0.0
    %3343 = vmatpush2.msra.mxu0 0.0
    %3344 = vmatprep.subr.mxu0 0.0
    %3345 = vmatpush2.msra.mxu0 0.0
    %3346 = vmatprep.subr.mxu0 0.0
    %3347 = vmatpush2.msra.mxu0 0.0
    %3348 = vmatprep.subr.mxu0 0.0
    %3349 = vmatpush2.msra.mxu0 0.0
    %3350 = vmatprep.subr.mxu0 0.0
    %3351 = vmatpush2.msra.mxu0 0.0
    %3352 = vmatprep.subr.mxu0 0.0
    %3353 = vmatpush2.msra.mxu0 0.0
    %3354 = vmatprep.subr.mxu0 0.0
    %3355 = vmatpush2.msra.mxu0 0.0
    %3356 = vmatprep.subr.mxu0 0.0
    %3357 = vmatpush2.msra.mxu0 0.0
    %3358 = vmatprep.subr.mxu0 0.0
    %3359 = vmatpush2.msra.mxu0 0.0
    %3360 = vmatprep.mubr.f32.mxu0 0.0
    %3361 = vmatmul.mubr.f32.gmra.mxu0 %v3291
    %v3362 = vpop.f32.mrf.mxu0
    %v3363 = vadd.f32 0.0, %v3362
    %v3364 = vpop.f32.mrf.mxu0
    %v3365 = vadd.f32 0.0, %v3364
    %3366 = vdwg.mxu0
    %3367 = vmatprep.subr.mxu0 %v2351
    %3368 = vmatpush1.msra.mxu0 %v2350
    %3369 = vmatprep.subr.mxu0 %v2347
    %3370 = vmatpush1.msra.mxu0 %v2346
    %3371 = vmatprep.subr.mxu0 %v2343
    %3372 = vmatpush1.msra.mxu0 %v2342
    %3373 = vmatprep.subr.mxu0 %v2339
    %3374 = vmatpush1.msra.mxu0 %v2338
    %3375 = vmatprep.subr.mxu0 %v2335
    %3376 = vmatpush1.msra.mxu0 %v2334
    %3377 = vmatprep.subr.mxu0 %v2331
    %3378 = vmatpush1.msra.mxu0 %v2330
    %3379 = vmatprep.subr.mxu0 %v2327
    %3380 = vmatpush1.msra.mxu0 %v2326
    %3381 = vmatprep.subr.mxu0 %v2323
    %3382 = vmatpush1.msra.mxu0 %v2322
    %3383 = vmatprep.subr.mxu0 %v2319
    %3384 = vmatpush1.msra.mxu0 %v2318
    %3385 = vmatprep.subr.mxu0 %v2315
    %3386 = vmatpush1.msra.mxu0 %v2314
    %3387 = vmatprep.subr.mxu0 %v2311
    %3388 = vmatpush1.msra.mxu0 %v2310
    %3389 = vmatprep.subr.mxu0 %v2307
    %3390 = vmatpush1.msra.mxu0 %v2306
    %3391 = vmatprep.subr.mxu0 %v2303
    %3392 = vmatpush1.msra.mxu0 %v2302
    %3393 = vmatprep.subr.mxu0 %v2299
    %3394 = vmatpush1.msra.mxu0 %v2298
    %3395 = vmatprep.subr.mxu0 %v2295
    %3396 = vmatpush1.msra.mxu0 %v2294
    %3397 = vmatprep.subr.mxu0 %v2291
    %3398 = vmatpush1.msra.mxu0 %v2290
    %3399 = vmatprep.subr.mxu0 0.0
    %3400 = vmatpush2.msra.mxu0 0.0
    %3401 = vmatprep.subr.mxu0 0.0
    %3402 = vmatpush2.msra.mxu0 0.0
    %3403 = vmatprep.subr.mxu0 0.0
    %3404 = vmatpush2.msra.mxu0 0.0
    %3405 = vmatprep.subr.mxu0 0.0
    %3406 = vmatpush2.msra.mxu0 0.0
    %3407 = vmatprep.subr.mxu0 0.0
    %3408 = vmatpush2.msra.mxu0 0.0
    %3409 = vmatprep.subr.mxu0 0.0
    %3410 = vmatpush2.msra.mxu0 0.0
    %3411 = vmatprep.subr.mxu0 0.0
    %3412 = vmatpush2.msra.mxu0 0.0
    %3413 = vmatprep.subr.mxu0 0.0
    %3414 = vmatpush2.msra.mxu0 0.0
    %3415 = vmatprep.subr.mxu0 0.0
    %3416 = vmatpush2.msra.mxu0 0.0
    %3417 = vmatprep.subr.mxu0 0.0
    %3418 = vmatpush2.msra.mxu0 0.0
    %3419 = vmatprep.subr.mxu0 0.0
    %3420 = vmatpush2.msra.mxu0 0.0
    %3421 = vmatprep.subr.mxu0 0.0
    %3422 = vmatpush2.msra.mxu0 0.0
    %3423 = vmatprep.subr.mxu0 0.0
    %3424 = vmatpush2.msra.mxu0 0.0
    %3425 = vmatprep.subr.mxu0 0.0
    %3426 = vmatpush2.msra.mxu0 0.0
    %3427 = vmatprep.subr.mxu0 0.0
    %3428 = vmatpush2.msra.mxu0 0.0
    %3429 = vmatprep.subr.mxu0 0.0
    %3430 = vmatpush2.msra.mxu0 0.0
    %3431 = vmatprep.mubr.f32.mxu0 0.0
    %3432 = vmatmul.mubr.f32.gmra.mxu0 %v3291
    %v3433 = vpop.f32.mrf.mxu0
    %v3434 = vadd.f32 0.0, %v3433
    %v3435 = vpop.f32.mrf.mxu0
    %v3436 = vadd.f32 0.0, %v3435
    %3437 = vdwg.mxu0
    %v3438 = vadd.f32 %v3292, %v3363
    %v3439 = vadd.f32 %v3293, %v3365
    %v3440 = vadd.f32 %v3294, %v3434
    %v3441 = vadd.f32 %v3295, %v3436
    %v3442 = vmul.f32 %v3438, 0.5
    %v3443 = vmul.f32 %v3439, 0.5
    %v3444 = vmul.f32 %v3440, 0.5
    %v3445 = vmul.f32 %v3441, 0.5
    %v3446 = vtanh.pop %v3442
    %v3447 = vtanh.pop %v3443
    %v3448 = vtanh.pop %v3444
    %v3449 = vtanh.pop %v3445
    %v3450 = vmul.f32 %v3446, 0.5
    %v3451 = vadd.f32 %v3450, 0.5
    %v3452 = vmul.f32 %v3447, 0.5
    %v3453 = vadd.f32 %v3452, 0.5
    %v3454 = vmul.f32 %v3448, 0.5
    %v3455 = vadd.f32 %v3454, 0.5
    %v3456 = vmul.f32 %v3453, %v3289
    %v3457 = vmul.f32 %v3451, %v3449
    %v3458 = vadd.f32 %v3456, %v3457
    %v3459 = vtanh.pop %v3458
    %v3460 = vmul.f32 %v3455, %v3459
    %v3461 = vadd.f32 %v2523, %v2819
    %v3462 = vadd.f32 %v2525, %v2821
    %v3463 = vadd.f32 %v2636, %v2932
    %v3464 = vadd.f32 %v2638, %v2934
    %3465 = vmatprep.subr.mxu0 %v2349
    %3466 = vmatpush1.msra.mxu0 %v2348
    %3467 = vmatprep.subr.mxu0 %v2345
    %3468 = vmatpush1.msra.mxu0 %v2344
    %3469 = vmatprep.subr.mxu0 %v2341
    %3470 = vmatpush1.msra.mxu0 %v2340
    %3471 = vmatprep.subr.mxu0 %v2337
    %3472 = vmatpush1.msra.mxu0 %v2336
    %3473 = vmatprep.subr.mxu0 %v2333
    %3474 = vmatpush1.msra.mxu0 %v2332
    %3475 = vmatprep.subr.mxu0 %v2329
    %3476 = vmatpush1.msra.mxu0 %v2328
    %3477 = vmatprep.subr.mxu0 %v2325
    %3478 = vmatpush1.msra.mxu0 %v2324
    %3479 = vmatprep.subr.mxu0 %v2321
    %3480 = vmatpush1.msra.mxu0 %v2320
    %3481 = vmatprep.subr.mxu0 %v2317
    %3482 = vmatpush1.msra.mxu0 %v2316
    %3483 = vmatprep.subr.mxu0 %v2313
    %3484 = vmatpush1.msra.mxu0 %v2312
    %3485 = vmatprep.subr.mxu0 %v2309
    %3486 = vmatpush1.msra.mxu0 %v2308
    %3487 = vmatprep.subr.mxu0 %v2305
    %3488 = vmatpush1.msra.mxu0 %v2304
    %3489 = vmatprep.subr.mxu0 %v2301
    %3490 = vmatpush1.msra.mxu0 %v2300
    %3491 = vmatprep.subr.mxu0 %v2297
    %3492 = vmatpush1.msra.mxu0 %v2296
    %3493 = vmatprep.subr.mxu0 %v2293
    %3494 = vmatpush1.msra.mxu0 %v2292
    %3495 = vmatprep.subr.mxu0 %v2289
    %3496 = vmatpush1.msra.mxu0 %v2288
    %3497 = vmatprep.subr.mxu0 0.0
    %3498 = vmatpush2.msra.mxu0 0.0
    %3499 = vmatprep.subr.mxu0 0.0
    %3500 = vmatpush2.msra.mxu0 0.0
    %3501 = vmatprep.subr.mxu0 0.0
    %3502 = vmatpush2.msra.mxu0 0.0
    %3503 = vmatprep.subr.mxu0 0.0
    %3504 = vmatpush2.msra.mxu0 0.0
    %3505 = vmatprep.subr.mxu0 0.0
    %3506 = vmatpush2.msra.mxu0 0.0
    %3507 = vmatprep.subr.mxu0 0.0
    %3508 = vmatpush2.msra.mxu0 0.0
    %3509 = vmatprep.subr.mxu0 0.0
    %3510 = vmatpush2.msra.mxu0 0.0
    %3511 = vmatprep.subr.mxu0 0.0
    %3512 = vmatpush2.msra.mxu0 0.0
    %3513 = vmatprep.subr.mxu0 0.0
    %3514 = vmatpush2.msra.mxu0 0.0
    %3515 = vmatprep.subr.mxu0 0.0
    %3516 = vmatpush2.msra.mxu0 0.0
    %3517 = vmatprep.subr.mxu0 0.0
    %3518 = vmatpush2.msra.mxu0 0.0
    %3519 = vmatprep.subr.mxu0 0.0
    %3520 = vmatpush2.msra.mxu0 0.0
    %3521 = vmatprep.subr.mxu0 0.0
    %3522 = vmatpush2.msra.mxu0 0.0
    %3523 = vmatprep.subr.mxu0 0.0
    %3524 = vmatpush2.msra.mxu0 0.0
    %3525 = vmatprep.subr.mxu0 0.0
    %3526 = vmatpush2.msra.mxu0 0.0
    %3527 = vmatprep.subr.mxu0 0.0
    %3528 = vmatpush2.msra.mxu0 0.0
    %3529 = vmatprep.mubr.f32.mxu0 0.0
    %3530 = vmatmul.mubr.f32.gmra.mxu0 %v3460
    %v3531 = vpop.f32.mrf.mxu0
    %v3532 = vadd.f32 0.0, %v3531
    %v3533 = vpop.f32.mrf.mxu0
    %v3534 = vadd.f32 0.0, %v3533
    %3535 = vdwg.mxu0
    %3536 = vmatprep.subr.mxu0 %v2351
    %3537 = vmatpush1.msra.mxu0 %v2350
    %3538 = vmatprep.subr.mxu0 %v2347
    %3539 = vmatpush1.msra.mxu0 %v2346
    %3540 = vmatprep.subr.mxu0 %v2343
    %3541 = vmatpush1.msra.mxu0 %v2342
    %3542 = vmatprep.subr.mxu0 %v2339
    %3543 = vmatpush1.msra.mxu0 %v2338
    %3544 = vmatprep.subr.mxu0 %v2335
    %3545 = vmatpush1.msra.mxu0 %v2334
    %3546 = vmatprep.subr.mxu0 %v2331
    %3547 = vmatpush1.msra.mxu0 %v2330
    %3548 = vmatprep.subr.mxu0 %v2327
    %3549 = vmatpush1.msra.mxu0 %v2326
    %3550 = vmatprep.subr.mxu0 %v2323
    %3551 = vmatpush1.msra.mxu0 %v2322
    %3552 = vmatprep.subr.mxu0 %v2319
    %3553 = vmatpush1.msra.mxu0 %v2318
    %3554 = vmatprep.subr.mxu0 %v2315
    %3555 = vmatpush1.msra.mxu0 %v2314
    %3556 = vmatprep.subr.mxu0 %v2311
    %3557 = vmatpush1.msra.mxu0 %v2310
    %3558 = vmatprep.subr.mxu0 %v2307
    %3559 = vmatpush1.msra.mxu0 %v2306
    %3560 = vmatprep.subr.mxu0 %v2303
    %3561 = vmatpush1.msra.mxu0 %v2302
    %3562 = vmatprep.subr.mxu0 %v2299
    %3563 = vmatpush1.msra.mxu0 %v2298
    %3564 = vmatprep.subr.mxu0 %v2295
    %3565 = vmatpush1.msra.mxu0 %v2294
    %3566 = vmatprep.subr.mxu0 %v2291
    %3567 = vmatpush1.msra.mxu0 %v2290
    %3568 = vmatprep.subr.mxu0 0.0
    %3569 = vmatpush2.msra.mxu0 0.0
    %3570 = vmatprep.subr.mxu0 0.0
    %3571 = vmatpush2.msra.mxu0 0.0
    %3572 = vmatprep.subr.mxu0 0.0
    %3573 = vmatpush2.msra.mxu0 0.0
    %3574 = vmatprep.subr.mxu0 0.0
    %3575 = vmatpush2.msra.mxu0 0.0
    %3576 = vmatprep.subr.mxu0 0.0
    %3577 = vmatpush2.msra.mxu0 0.0
    %3578 = vmatprep.subr.mxu0 0.0
    %3579 = vmatpush2.msra.mxu0 0.0
    %3580 = vmatprep.subr.mxu0 0.0
    %3581 = vmatpush2.msra.mxu0 0.0
    %3582 = vmatprep.subr.mxu0 0.0
    %3583 = vmatpush2.msra.mxu0 0.0
    %3584 = vmatprep.subr.mxu0 0.0
    %3585 = vmatpush2.msra.mxu0 0.0
    %3586 = vmatprep.subr.mxu0 0.0
    %3587 = vmatpush2.msra.mxu0 0.0
    %3588 = vmatprep.subr.mxu0 0.0
    %3589 = vmatpush2.msra.mxu0 0.0
    %3590 = vmatprep.subr.mxu0 0.0
    %3591 = vmatpush2.msra.mxu0 0.0
    %3592 = vmatprep.subr.mxu0 0.0
    %3593 = vmatpush2.msra.mxu0 0.0
    %3594 = vmatprep.subr.mxu0 0.0
    %3595 = vmatpush2.msra.mxu0 0.0
    %3596 = vmatprep.subr.mxu0 0.0
    %3597 = vmatpush2.msra.mxu0 0.0
    %3598 = vmatprep.subr.mxu0 0.0
    %3599 = vmatpush2.msra.mxu0 0.0
    %3600 = vmatprep.mubr.f32.mxu0 0.0
    %3601 = vmatmul.mubr.f32.gmra.mxu0 %v3460
    %v3602 = vpop.f32.mrf.mxu0
    %v3603 = vadd.f32 0.0, %v3602
    %v3604 = vpop.f32.mrf.mxu0
    %v3605 = vadd.f32 0.0, %v3604
    %3606 = vdwg.mxu0
    %v3607 = vadd.f32 %v3461, %v3532
    %v3608 = vadd.f32 %v3462, %v3534
    %v3609 = vadd.f32 %v3463, %v3603
    %v3610 = vadd.f32 %v3464, %v3605
    %v3611 = vmul.f32 %v3607, 0.5
    %v3612 = vmul.f32 %v3608, 0.5
    %v3613 = vmul.f32 %v3609, 0.5
    %v3614 = vmul.f32 %v3610, 0.5
    %v3615 = vtanh.pop %v3611
    %v3616 = vtanh.pop %v3612
    %v3617 = vtanh.pop %v3613
    %v3618 = vtanh.pop %v3614
    %v3619 = vmul.f32 %v3615, 0.5
    %v3620 = vadd.f32 %v3619, 0.5
    %v3621 = vmul.f32 %v3616, 0.5
    %v3622 = vadd.f32 %v3621, 0.5
    %v3623 = vmul.f32 %v3617, 0.5
    %v3624 = vadd.f32 %v3623, 0.5
    %v3625 = vmul.f32 %v3622, %v3458
    %v3626 = vmul.f32 %v3620, %v3618
    %v3627 = vadd.f32 %v3625, %v3626
    %v3628 = vtanh.pop %v3627
    %v3629 = vmul.f32 %v3624, %v3628
    %v3630 = vadd.f32 %v2529, %v2813
    %v3631 = vadd.f32 %v2531, %v2815
    %v3632 = vadd.f32 %v2642, %v2926
    %v3633 = vadd.f32 %v2644, %v2928
    %3634 = vmatprep.subr.mxu0 %v2349
    %3635 = vmatpush1.msra.mxu0 %v2348
    %3636 = vmatprep.subr.mxu0 %v2345
    %3637 = vmatpush1.msra.mxu0 %v2344
    %3638 = vmatprep.subr.mxu0 %v2341
    %3639 = vmatpush1.msra.mxu0 %v2340
    %3640 = vmatprep.subr.mxu0 %v2337
    %3641 = vmatpush1.msra.mxu0 %v2336
    %3642 = vmatprep.subr.mxu0 %v2333
    %3643 = vmatpush1.msra.mxu0 %v2332
    %3644 = vmatprep.subr.mxu0 %v2329
    %3645 = vmatpush1.msra.mxu0 %v2328
    %3646 = vmatprep.subr.mxu0 %v2325
    %3647 = vmatpush1.msra.mxu0 %v2324
    %3648 = vmatprep.subr.mxu0 %v2321
    %3649 = vmatpush1.msra.mxu0 %v2320
    %3650 = vmatprep.subr.mxu0 %v2317
    %3651 = vmatpush1.msra.mxu0 %v2316
    %3652 = vmatprep.subr.mxu0 %v2313
    %3653 = vmatpush1.msra.mxu0 %v2312
    %3654 = vmatprep.subr.mxu0 %v2309
    %3655 = vmatpush1.msra.mxu0 %v2308
    %3656 = vmatprep.subr.mxu0 %v2305
    %3657 = vmatpush1.msra.mxu0 %v2304
    %3658 = vmatprep.subr.mxu0 %v2301
    %3659 = vmatpush1.msra.mxu0 %v2300
    %3660 = vmatprep.subr.mxu0 %v2297
    %3661 = vmatpush1.msra.mxu0 %v2296
    %3662 = vmatprep.subr.mxu0 %v2293
    %3663 = vmatpush1.msra.mxu0 %v2292
    %3664 = vmatprep.subr.mxu0 %v2289
    %3665 = vmatpush1.msra.mxu0 %v2288
    %3666 = vmatprep.subr.mxu0 0.0
    %3667 = vmatpush2.msra.mxu0 0.0
    %3668 = vmatprep.subr.mxu0 0.0
    %3669 = vmatpush2.msra.mxu0 0.0
    %3670 = vmatprep.subr.mxu0 0.0
    %3671 = vmatpush2.msra.mxu0 0.0
    %3672 = vmatprep.subr.mxu0 0.0
    %3673 = vmatpush2.msra.mxu0 0.0
    %3674 = vmatprep.subr.mxu0 0.0
    %3675 = vmatpush2.msra.mxu0 0.0
    %3676 = vmatprep.subr.mxu0 0.0
    %3677 = vmatpush2.msra.mxu0 0.0
    %3678 = vmatprep.subr.mxu0 0.0
    %3679 = vmatpush2.msra.mxu0 0.0
    %3680 = vmatprep.subr.mxu0 0.0
    %3681 = vmatpush2.msra.mxu0 0.0
    %3682 = vmatprep.subr.mxu0 0.0
    %3683 = vmatpush2.msra.mxu0 0.0
    %3684 = vmatprep.subr.mxu0 0.0
    %3685 = vmatpush2.msra.mxu0 0.0
    %3686 = vmatprep.subr.mxu0 0.0
    %3687 = vmatpush2.msra.mxu0 0.0
    %3688 = vmatprep.subr.mxu0 0.0
    %3689 = vmatpush2.msra.mxu0 0.0
    %3690 = vmatprep.subr.mxu0 0.0
    %3691 = vmatpush2.msra.mxu0 0.0
    %3692 = vmatprep.subr.mxu0 0.0
    %3693 = vmatpush2.msra.mxu0 0.0
    %3694 = vmatprep.subr.mxu0 0.0
    %3695 = vmatpush2.msra.mxu0 0.0
    %3696 = vmatprep.subr.mxu0 0.0
    %3697 = vmatpush2.msra.mxu0 0.0
    %3698 = vmatprep.mubr.f32.mxu0 0.0
    %3699 = vmatmul.mubr.f32.gmra.mxu0 %v3629
    %v3700 = vpop.f32.mrf.mxu0
    %v3701 = vadd.f32 0.0, %v3700
    %v3702 = vpop.f32.mrf.mxu0
    %v3703 = vadd.f32 0.0, %v3702
    %3704 = vdwg.mxu0
    %3705 = vmatprep.subr.mxu0 %v2351
    %3706 = vmatpush1.msra.mxu0 %v2350
    %3707 = vmatprep.subr.mxu0 %v2347
    %3708 = vmatpush1.msra.mxu0 %v2346
    %3709 = vmatprep.subr.mxu0 %v2343
    %3710 = vmatpush1.msra.mxu0 %v2342
    %3711 = vmatprep.subr.mxu0 %v2339
    %3712 = vmatpush1.msra.mxu0 %v2338
    %3713 = vmatprep.subr.mxu0 %v2335
    %3714 = vmatpush1.msra.mxu0 %v2334
    %3715 = vmatprep.subr.mxu0 %v2331
    %3716 = vmatpush1.msra.mxu0 %v2330
    %3717 = vmatprep.subr.mxu0 %v2327
    %3718 = vmatpush1.msra.mxu0 %v2326
    %3719 = vmatprep.subr.mxu0 %v2323
    %3720 = vmatpush1.msra.mxu0 %v2322
    %3721 = vmatprep.subr.mxu0 %v2319
    %3722 = vmatpush1.msra.mxu0 %v2318
    %3723 = vmatprep.subr.mxu0 %v2315
    %3724 = vmatpush1.msra.mxu0 %v2314
    %3725 = vmatprep.subr.mxu0 %v2311
    %3726 = vmatpush1.msra.mxu0 %v2310
    %3727 = vmatprep.subr.mxu0 %v2307
    %3728 = vmatpush1.msra.mxu0 %v2306
    %3729 = vmatprep.subr.mxu0 %v2303
    %3730 = vmatpush1.msra.mxu0 %v2302
    %3731 = vmatprep.subr.mxu0 %v2299
    %3732 = vmatpush1.msra.mxu0 %v2298
    %3733 = vmatprep.subr.mxu0 %v2295
    %3734 = vmatpush1.msra.mxu0 %v2294
    %3735 = vmatprep.subr.mxu0 %v2291
    %3736 = vmatpush1.msra.mxu0 %v2290
    %3737 = vmatprep.subr.mxu0 0.0
    %3738 = vmatpush2.msra.mxu0 0.0
    %3739 = vmatprep.subr.mxu0 0.0
    %3740 = vmatpush2.msra.mxu0 0.0
    %3741 = vmatprep.subr.mxu0 0.0
    %3742 = vmatpush2.msra.mxu0 0.0
    %3743 = vmatprep.subr.mxu0 0.0
    %3744 = vmatpush2.msra.mxu0 0.0
    %3745 = vmatprep.subr.mxu0 0.0
    %3746 = vmatpush2.msra.mxu0 0.0
    %3747 = vmatprep.subr.mxu0 0.0
    %3748 = vmatpush2.msra.mxu0 0.0
    %3749 = vmatprep.subr.mxu0 0.0
    %3750 = vmatpush2.msra.mxu0 0.0
    %3751 = vmatprep.subr.mxu0 0.0
    %3752 = vmatpush2.msra.mxu0 0.0
    %3753 = vmatprep.subr.mxu0 0.0
    %3754 = vmatpush2.msra.mxu0 0.0
    %3755 = vmatprep.subr.mxu0 0.0
    %3756 = vmatpush2.msra.mxu0 0.0
    %3757 = vmatprep.subr.mxu0 0.0
    %3758 = vmatpush2.msra.mxu0 0.0
    %3759 = vmatprep.subr.mxu0 0.0
    %3760 = vmatpush2.msra.mxu0 0.0
    %3761 = vmatprep.subr.mxu0 0.0
    %3762 = vmatpush2.msra.mxu0 0.0
    %3763 = vmatprep.subr.mxu0 0.0
    %3764 = vmatpush2.msra.mxu0 0.0
    %3765 = vmatprep.subr.mxu0 0.0
    %3766 = vmatpush2.msra.mxu0 0.0
    %3767 = vmatprep.subr.mxu0 0.0
    %3768 = vmatpush2.msra.mxu0 0.0
    %3769 = vmatprep.mubr.f32.mxu0 0.0
    %3770 = vmatmul.mubr.f32.gmra.mxu0 %v3629
    %v3771 = vpop.f32.mrf.mxu0
    %v3772 = vadd.f32 0.0, %v3771
    %v3773 = vpop.f32.mrf.mxu0
    %v3774 = vadd.f32 0.0, %v3773
    %3775 = vdwg.mxu0
    %v3776 = vadd.f32 %v3630, %v3701
    %v3777 = vadd.f32 %v3631, %v3703
    %v3778 = vadd.f32 %v3632, %v3772
    %v3779 = vadd.f32 %v3633, %v3774
    %v3780 = vmul.f32 %v3776, 0.5
    %v3781 = vmul.f32 %v3777, 0.5
    %v3782 = vmul.f32 %v3778, 0.5
    %v3783 = vmul.f32 %v3779, 0.5
    %v3784 = vtanh.pop %v3780
    %v3785 = vtanh.pop %v3781
    %v3786 = vtanh.pop %v3782
    %v3787 = vtanh.pop %v3783
    %v3788 = vmul.f32 %v3784, 0.5
    %v3789 = vadd.f32 %v3788, 0.5
    %v3790 = vmul.f32 %v3785, 0.5
    %v3791 = vadd.f32 %v3790, 0.5
    %v3792 = vmul.f32 %v3786, 0.5
    %v3793 = vadd.f32 %v3792, 0.5
    %v3794 = vmul.f32 %v3791, %v3627
    %v3795 = vmul.f32 %v3789, %v3787
    %v3796 = vadd.f32 %v3794, %v3795
    %v3797 = vtanh.pop %v3796
    %v3798 = vmul.f32 %v3793, %v3797
    %v3799 = vadd.f32 %v2535, %v2807
    %v3800 = vadd.f32 %v2537, %v2809
    %v3801 = vadd.f32 %v2648, %v2920
    %v3802 = vadd.f32 %v2650, %v2922
    %3803 = vmatprep.subr.mxu0 %v2349
    %3804 = vmatpush1.msra.mxu0 %v2348
    %3805 = vmatprep.subr.mxu0 %v2345
    %3806 = vmatpush1.msra.mxu0 %v2344
    %3807 = vmatprep.subr.mxu0 %v2341
    %3808 = vmatpush1.msra.mxu0 %v2340
    %3809 = vmatprep.subr.mxu0 %v2337
    %3810 = vmatpush1.msra.mxu0 %v2336
    %3811 = vmatprep.subr.mxu0 %v2333
    %3812 = vmatpush1.msra.mxu0 %v2332
    %3813 = vmatprep.subr.mxu0 %v2329
    %3814 = vmatpush1.msra.mxu0 %v2328
    %3815 = vmatprep.subr.mxu0 %v2325
    %3816 = vmatpush1.msra.mxu0 %v2324
    %3817 = vmatprep.subr.mxu0 %v2321
    %3818 = vmatpush1.msra.mxu0 %v2320
    %3819 = vmatprep.subr.mxu0 %v2317
    %3820 = vmatpush1.msra.mxu0 %v2316
    %3821 = vmatprep.subr.mxu0 %v2313
    %3822 = vmatpush1.msra.mxu0 %v2312
    %3823 = vmatprep.subr.mxu0 %v2309
    %3824 = vmatpush1.msra.mxu0 %v2308
    %3825 = vmatprep.subr.mxu0 %v2305
    %3826 = vmatpush1.msra.mxu0 %v2304
    %3827 = vmatprep.subr.mxu0 %v2301
    %3828 = vmatpush1.msra.mxu0 %v2300
    %3829 = vmatprep.subr.mxu0 %v2297
    %3830 = vmatpush1.msra.mxu0 %v2296
    %3831 = vmatprep.subr.mxu0 %v2293
    %3832 = vmatpush1.msra.mxu0 %v2292
    %3833 = vmatprep.subr.mxu0 %v2289
    %3834 = vmatpush1.msra.mxu0 %v2288
    %3835 = vmatprep.subr.mxu0 0.0
    %3836 = vmatpush2.msra.mxu0 0.0
    %3837 = vmatprep.subr.mxu0 0.0
    %3838 = vmatpush2.msra.mxu0 0.0
    %3839 = vmatprep.subr.mxu0 0.0
    %3840 = vmatpush2.msra.mxu0 0.0
    %3841 = vmatprep.subr.mxu0 0.0
    %3842 = vmatpush2.msra.mxu0 0.0
    %3843 = vmatprep.subr.mxu0 0.0
    %3844 = vmatpush2.msra.mxu0 0.0
    %3845 = vmatprep.subr.mxu0 0.0
    %3846 = vmatpush2.msra.mxu0 0.0
    %3847 = vmatprep.subr.mxu0 0.0
    %3848 = vmatpush2.msra.mxu0 0.0
    %3849 = vmatprep.subr.mxu0 0.0
    %3850 = vmatpush2.msra.mxu0 0.0
    %3851 = vmatprep.subr.mxu0 0.0
    %3852 = vmatpush2.msra.mxu0 0.0
    %3853 = vmatprep.subr.mxu0 0.0
    %3854 = vmatpush2.msra.mxu0 0.0
    %3855 = vmatprep.subr.mxu0 0.0
    %3856 = vmatpush2.msra.mxu0 0.0
    %3857 = vmatprep.subr.mxu0 0.0
    %3858 = vmatpush2.msra.mxu0 0.0
    %3859 = vmatprep.subr.mxu0 0.0
    %3860 = vmatpush2.msra.mxu0 0.0
    %3861 = vmatprep.subr.mxu0 0.0
    %3862 = vmatpush2.msra.mxu0 0.0
    %3863 = vmatprep.subr.mxu0 0.0
    %3864 = vmatpush2.msra.mxu0 0.0
    %3865 = vmatprep.subr.mxu0 0.0
    %3866 = vmatpush2.msra.mxu0 0.0
    %3867 = vmatprep.mubr.f32.mxu0 0.0
    %3868 = vmatmul.mubr.f32.gmra.mxu0 %v3798
    %v3869 = vpop.f32.mrf.mxu0
    %v3870 = vadd.f32 0.0, %v3869
    %v3871 = vpop.f32.mrf.mxu0
    %v3872 = vadd.f32 0.0, %v3871
    %3873 = vdwg.mxu0
    %3874 = vmatprep.subr.mxu0 %v2351
    %3875 = vmatpush1.msra.mxu0 %v2350
    %3876 = vmatprep.subr.mxu0 %v2347
    %3877 = vmatpush1.msra.mxu0 %v2346
    %3878 = vmatprep.subr.mxu0 %v2343
    %3879 = vmatpush1.msra.mxu0 %v2342
    %3880 = vmatprep.subr.mxu0 %v2339
    %3881 = vmatpush1.msra.mxu0 %v2338
    %3882 = vmatprep.subr.mxu0 %v2335
    %3883 = vmatpush1.msra.mxu0 %v2334
    %3884 = vmatprep.subr.mxu0 %v2331
    %3885 = vmatpush1.msra.mxu0 %v2330
    %3886 = vmatprep.subr.mxu0 %v2327
    %3887 = vmatpush1.msra.mxu0 %v2326
    %3888 = vmatprep.subr.mxu0 %v2323
    %3889 = vmatpush1.msra.mxu0 %v2322
    %3890 = vmatprep.subr.mxu0 %v2319
    %3891 = vmatpush1.msra.mxu0 %v2318
    %3892 = vmatprep.subr.mxu0 %v2315
    %3893 = vmatpush1.msra.mxu0 %v2314
    %3894 = vmatprep.subr.mxu0 %v2311
    %3895 = vmatpush1.msra.mxu0 %v2310
    %3896 = vmatprep.subr.mxu0 %v2307
    %3897 = vmatpush1.msra.mxu0 %v2306
    %3898 = vmatprep.subr.mxu0 %v2303
    %3899 = vmatpush1.msra.mxu0 %v2302
    %3900 = vmatprep.subr.mxu0 %v2299
    %3901 = vmatpush1.msra.mxu0 %v2298
    %3902 = vmatprep.subr.mxu0 %v2295
    %3903 = vmatpush1.msra.mxu0 %v2294
    %3904 = vmatprep.subr.mxu0 %v2291
    %3905 = vmatpush1.msra.mxu0 %v2290
    %3906 = vmatprep.subr.mxu0 0.0
    %3907 = vmatpush2.msra.mxu0 0.0
    %3908 = vmatprep.subr.mxu0 0.0
    %3909 = vmatpush2.msra.mxu0 0.0
    %3910 = vmatprep.subr.mxu0 0.0
    %3911 = vmatpush2.msra.mxu0 0.0
    %3912 = vmatprep.subr.mxu0 0.0
    %3913 = vmatpush2.msra.mxu0 0.0
    %3914 = vmatprep.subr.mxu0 0.0
    %3915 = vmatpush2.msra.mxu0 0.0
    %3916 = vmatprep.subr.mxu0 0.0
    %3917 = vmatpush2.msra.mxu0 0.0
    %3918 = vmatprep.subr.mxu0 0.0
    %3919 = vmatpush2.msra.mxu0 0.0
    %3920 = vmatprep.subr.mxu0 0.0
    %3921 = vmatpush2.msra.mxu0 0.0
    %3922 = vmatprep.subr.mxu0 0.0
    %3923 = vmatpush2.msra.mxu0 0.0
    %3924 = vmatprep.subr.mxu0 0.0
    %3925 = vmatpush2.msra.mxu0 0.0
    %3926 = vmatprep.subr.mxu0 0.0
    %3927 = vmatpush2.msra.mxu0 0.0
    %3928 = vmatprep.subr.mxu0 0.0
    %3929 = vmatpush2.msra.mxu0 0.0
    %3930 = vmatprep.subr.mxu0 0.0
    %3931 = vmatpush2.msra.mxu0 0.0
    %3932 = vmatprep.subr.mxu0 0.0
    %3933 = vmatpush2.msra.mxu0 0.0
    %3934 = vmatprep.subr.mxu0 0.0
    %3935 = vmatpush2.msra.mxu0 0.0
    %3936 = vmatprep.subr.mxu0 0.0
    %3937 = vmatpush2.msra.mxu0 0.0
    %3938 = vmatprep.mubr.f32.mxu0 0.0
    %3939 = vmatmul.mubr.f32.gmra.mxu0 %v3798
    %v3940 = vpop.f32.mrf.mxu0
    %v3941 = vadd.f32 0.0, %v3940
    %v3942 = vpop.f32.mrf.mxu0
    %v3943 = vadd.f32 0.0, %v3942
    %3944 = vdwg.mxu0
    %v3945 = vadd.f32 %v3799, %v3870
    %v3946 = vadd.f32 %v3800, %v3872
    %v3947 = vadd.f32 %v3801, %v3941
    %v3948 = vadd.f32 %v3802, %v3943
    %v3949 = vmul.f32 %v3945, 0.5
    %v3950 = vmul.f32 %v3946, 0.5
    %v3951 = vmul.f32 %v3947, 0.5
    %v3952 = vmul.f32 %v3948, 0.5
    %v3953 = vtanh.pop %v3949
    %v3954 = vtanh.pop %v3950
    %v3955 = vtanh.pop %v3951
    %v3956 = vtanh.pop %v3952
    %v3957 = vmul.f32 %v3953, 0.5
    %v3958 = vadd.f32 %v3957, 0.5
    %v3959 = vmul.f32 %v3954, 0.5
    %v3960 = vadd.f32 %v3959, 0.5
    %v3961 = vmul.f32 %v3955, 0.5
    %v3962 = vadd.f32 %v3961, 0.5
    %v3963 = vmul.f32 %v3960, %v3796
    %v3964 = vmul.f32 %v3958, %v3956
    %v3965 = vadd.f32 %v3963, %v3964
    %v3966 = vtanh.pop %v3965
    %v3967 = vmul.f32 %v3962, %v3966
    %v3968 = vadd.f32 %v2541, %v2801
    %v3969 = vadd.f32 %v2543, %v2803
    %v3970 = vadd.f32 %v2654, %v2914
    %v3971 = vadd.f32 %v2656, %v2916
    %3972 = vmatprep.subr.mxu0 %v2349
    %3973 = vmatpush1.msra.mxu0 %v2348
    %3974 = vmatprep.subr.mxu0 %v2345
    %3975 = vmatpush1.msra.mxu0 %v2344
    %3976 = vmatprep.subr.mxu0 %v2341
    %3977 = vmatpush1.msra.mxu0 %v2340
    %3978 = vmatprep.subr.mxu0 %v2337
    %3979 = vmatpush1.msra.mxu0 %v2336
    %3980 = vmatprep.subr.mxu0 %v2333
    %3981 = vmatpush1.msra.mxu0 %v2332
    %3982 = vmatprep.subr.mxu0 %v2329
    %3983 = vmatpush1.msra.mxu0 %v2328
    %3984 = vmatprep.subr.mxu0 %v2325
    %3985 = vmatpush1.msra.mxu0 %v2324
    %3986 = vmatprep.subr.mxu0 %v2321
    %3987 = vmatpush1.msra.mxu0 %v2320
    %3988 = vmatprep.subr.mxu0 %v2317
    %3989 = vmatpush1.msra.mxu0 %v2316
    %3990 = vmatprep.subr.mxu0 %v2313
    %3991 = vmatpush1.msra.mxu0 %v2312
    %3992 = vmatprep.subr.mxu0 %v2309
    %3993 = vmatpush1.msra.mxu0 %v2308
    %3994 = vmatprep.subr.mxu0 %v2305
    %3995 = vmatpush1.msra.mxu0 %v2304
    %3996 = vmatprep.subr.mxu0 %v2301
    %3997 = vmatpush1.msra.mxu0 %v2300
    %3998 = vmatprep.subr.mxu0 %v2297
    %3999 = vmatpush1.msra.mxu0 %v2296
    %4000 = vmatprep.subr.mxu0 %v2293
    %4001 = vmatpush1.msra.mxu0 %v2292
    %4002 = vmatprep.subr.mxu0 %v2289
    %4003 = vmatpush1.msra.mxu0 %v2288
    %4004 = vmatprep.subr.mxu0 0.0
    %4005 = vmatpush2.msra.mxu0 0.0
    %4006 = vmatprep.subr.mxu0 0.0
    %4007 = vmatpush2.msra.mxu0 0.0
    %4008 = vmatprep.subr.mxu0 0.0
    %4009 = vmatpush2.msra.mxu0 0.0
    %4010 = vmatprep.subr.mxu0 0.0
    %4011 = vmatpush2.msra.mxu0 0.0
    %4012 = vmatprep.subr.mxu0 0.0
    %4013 = vmatpush2.msra.mxu0 0.0
    %4014 = vmatprep.subr.mxu0 0.0
    %4015 = vmatpush2.msra.mxu0 0.0
    %4016 = vmatprep.subr.mxu0 0.0
    %4017 = vmatpush2.msra.mxu0 0.0
    %4018 = vmatprep.subr.mxu0 0.0
    %4019 = vmatpush2.msra.mxu0 0.0
    %4020 = vmatprep.subr.mxu0 0.0
    %4021 = vmatpush2.msra.mxu0 0.0
    %4022 = vmatprep.subr.mxu0 0.0
    %4023 = vmatpush2.msra.mxu0 0.0
    %4024 = vmatprep.subr.mxu0 0.0
    %4025 = vmatpush2.msra.mxu0 0.0
    %4026 = vmatprep.subr.mxu0 0.0
    %4027 = vmatpush2.msra.mxu0 0.0
    %4028 = vmatprep.subr.mxu0 0.0
    %4029 = vmatpush2.msra.mxu0 0.0
    %4030 = vmatprep.subr.mxu0 0.0
    %4031 = vmatpush2.msra.mxu0 0.0
    %4032 = vmatprep.subr.mxu0 0.0
    %4033 = vmatpush2.msra.mxu0 0.0
    %4034 = vmatprep.subr.mxu0 0.0
    %4035 = vmatpush2.msra.mxu0 0.0
    %4036 = vmatprep.mubr.f32.mxu0 0.0
    %4037 = vmatmul.mubr.f32.gmra.mxu0 %v3967
    %v4038 = vpop.f32.mrf.mxu0
    %v4039 = vadd.f32 0.0, %v4038
    %v4040 = vpop.f32.mrf.mxu0
    %v4041 = vadd.f32 0.0, %v4040
    %4042 = vdwg.mxu0
    %4043 = vmatprep.subr.mxu0 %v2351
    %4044 = vmatpush1.msra.mxu0 %v2350
    %4045 = vmatprep.subr.mxu0 %v2347
    %4046 = vmatpush1.msra.mxu0 %v2346
    %4047 = vmatprep.subr.mxu0 %v2343
    %4048 = vmatpush1.msra.mxu0 %v2342
    %4049 = vmatprep.subr.mxu0 %v2339
    %4050 = vmatpush1.msra.mxu0 %v2338
    %4051 = vmatprep.subr.mxu0 %v2335
    %4052 = vmatpush1.msra.mxu0 %v2334
    %4053 = vmatprep.subr.mxu0 %v2331
    %4054 = vmatpush1.msra.mxu0 %v2330
    %4055 = vmatprep.subr.mxu0 %v2327
    %4056 = vmatpush1.msra.mxu0 %v2326
    %4057 = vmatprep.subr.mxu0 %v2323
    %4058 = vmatpush1.msra.mxu0 %v2322
    %4059 = vmatprep.subr.mxu0 %v2319
    %4060 = vmatpush1.msra.mxu0 %v2318
    %4061 = vmatprep.subr.mxu0 %v2315
    %4062 = vmatpush1.msra.mxu0 %v2314
    %4063 = vmatprep.subr.mxu0 %v2311
    %4064 = vmatpush1.msra.mxu0 %v2310
    %4065 = vmatprep.subr.mxu0 %v2307
    %4066 = vmatpush1.msra.mxu0 %v2306
    %4067 = vmatprep.subr.mxu0 %v2303
    %4068 = vmatpush1.msra.mxu0 %v2302
    %4069 = vmatprep.subr.mxu0 %v2299
    %4070 = vmatpush1.msra.mxu0 %v2298
    %4071 = vmatprep.subr.mxu0 %v2295
    %4072 = vmatpush1.msra.mxu0 %v2294
    %4073 = vmatprep.subr.mxu0 %v2291
    %4074 = vmatpush1.msra.mxu0 %v2290
    %4075 = vmatprep.subr.mxu0 0.0
    %4076 = vmatpush2.msra.mxu0 0.0
    %4077 = vmatprep.subr.mxu0 0.0
    %4078 = vmatpush2.msra.mxu0 0.0
    %4079 = vmatprep.subr.mxu0 0.0
    %4080 = vmatpush2.msra.mxu0 0.0
    %4081 = vmatprep.subr.mxu0 0.0
    %4082 = vmatpush2.msra.mxu0 0.0
    %4083 = vmatprep.subr.mxu0 0.0
    %4084 = vmatpush2.msra.mxu0 0.0
    %4085 = vmatprep.subr.mxu0 0.0
    %4086 = vmatpush2.msra.mxu0 0.0
    %4087 = vmatprep.subr.mxu0 0.0
    %4088 = vmatpush2.msra.mxu0 0.0
    %4089 = vmatprep.subr.mxu0 0.0
    %4090 = vmatpush2.msra.mxu0 0.0
    %4091 = vmatprep.subr.mxu0 0.0
    %4092 = vmatpush2.msra.mxu0 0.0
    %4093 = vmatprep.subr.mxu0 0.0
    %4094 = vmatpush2.msra.mxu0 0.0
    %4095 = vmatprep.subr.mxu0 0.0
    %4096 = vmatpush2.msra.mxu0 0.0
    %4097 = vmatprep.subr.mxu0 0.0
    %4098 = vmatpush2.msra.mxu0 0.0
    %4099 = vmatprep.subr.mxu0 0.0
    %4100 = vmatpush2.msra.mxu0 0.0
    %4101 = vmatprep.subr.mxu0 0.0
    %4102 = vmatpush2.msra.mxu0 0.0
    %4103 = vmatprep.subr.mxu0 0.0
    %4104 = vmatpush2.msra.mxu0 0.0
    %4105 = vmatprep.subr.mxu0 0.0
    %4106 = vmatpush2.msra.mxu0 0.0
    %4107 = vmatprep.mubr.f32.mxu0 0.0
    %4108 = vmatmul.mubr.f32.gmra.mxu0 %v3967
    %v4109 = vpop.f32.mrf.mxu0
    %v4110 = vadd.f32 0.0, %v4109
    %v4111 = vpop.f32.mrf.mxu0
    %v4112 = vadd.f32 0.0, %v4111
    %4113 = vdwg.mxu0
    %v4114 = vadd.f32 %v3968, %v4039
    %v4115 = vadd.f32 %v3969, %v4041
    %v4116 = vadd.f32 %v3970, %v4110
    %v4117 = vadd.f32 %v3971, %v4112
    %v4118 = vmul.f32 %v4114, 0.5
    %v4119 = vmul.f32 %v4115, 0.5
    %v4120 = vmul.f32 %v4116, 0.5
    %v4121 = vmul.f32 %v4117, 0.5
    %v4122 = vtanh.pop %v4118
    %v4123 = vtanh.pop %v4119
    %v4124 = vtanh.pop %v4120
    %v4125 = vtanh.pop %v4121
    %v4126 = vmul.f32 %v4122, 0.5
    %v4127 = vadd.f32 %v4126, 0.5
    %v4128 = vmul.f32 %v4123, 0.5
    %v4129 = vadd.f32 %v4128, 0.5
    %v4130 = vmul.f32 %v4124, 0.5
    %v4131 = vadd.f32 %v4130, 0.5
    %v4132 = vmul.f32 %v4129, %v3965
    %v4133 = vmul.f32 %v4127, %v4125
    %v4134 = vadd.f32 %v4132, %v4133
    %v4135 = vtanh.pop %v4134
    %v4136 = vmul.f32 %v4131, %v4135
    %v4137 = vadd.f32 %v2547, %v2795
    %v4138 = vadd.f32 %v2549, %v2797
    %v4139 = vadd.f32 %v2660, %v2908
    %v4140 = vadd.f32 %v2662, %v2910
    %4141 = vmatprep.subr.mxu0 %v2349
    %4142 = vmatpush1.msra.mxu0 %v2348
    %4143 = vmatprep.subr.mxu0 %v2345
    %4144 = vmatpush1.msra.mxu0 %v2344
    %4145 = vmatprep.subr.mxu0 %v2341
    %4146 = vmatpush1.msra.mxu0 %v2340
    %4147 = vmatprep.subr.mxu0 %v2337
    %4148 = vmatpush1.msra.mxu0 %v2336
    %4149 = vmatprep.subr.mxu0 %v2333
    %4150 = vmatpush1.msra.mxu0 %v2332
    %4151 = vmatprep.subr.mxu0 %v2329
    %4152 = vmatpush1.msra.mxu0 %v2328
    %4153 = vmatprep.subr.mxu0 %v2325
    %4154 = vmatpush1.msra.mxu0 %v2324
    %4155 = vmatprep.subr.mxu0 %v2321
    %4156 = vmatpush1.msra.mxu0 %v2320
    %4157 = vmatprep.subr.mxu0 %v2317
    %4158 = vmatpush1.msra.mxu0 %v2316
    %4159 = vmatprep.subr.mxu0 %v2313
    %4160 = vmatpush1.msra.mxu0 %v2312
    %4161 = vmatprep.subr.mxu0 %v2309
    %4162 = vmatpush1.msra.mxu0 %v2308
    %4163 = vmatprep.subr.mxu0 %v2305
    %4164 = vmatpush1.msra.mxu0 %v2304
    %4165 = vmatprep.subr.mxu0 %v2301
    %4166 = vmatpush1.msra.mxu0 %v2300
    %4167 = vmatprep.subr.mxu0 %v2297
    %4168 = vmatpush1.msra.mxu0 %v2296
    %4169 = vmatprep.subr.mxu0 %v2293
    %4170 = vmatpush1.msra.mxu0 %v2292
    %4171 = vmatprep.subr.mxu0 %v2289
    %4172 = vmatpush1.msra.mxu0 %v2288
    %4173 = vmatprep.subr.mxu0 0.0
    %4174 = vmatpush2.msra.mxu0 0.0
    %4175 = vmatprep.subr.mxu0 0.0
    %4176 = vmatpush2.msra.mxu0 0.0
    %4177 = vmatprep.subr.mxu0 0.0
    %4178 = vmatpush2.msra.mxu0 0.0
    %4179 = vmatprep.subr.mxu0 0.0
    %4180 = vmatpush2.msra.mxu0 0.0
    %4181 = vmatprep.subr.mxu0 0.0
    %4182 = vmatpush2.msra.mxu0 0.0
    %4183 = vmatprep.subr.mxu0 0.0
    %4184 = vmatpush2.msra.mxu0 0.0
    %4185 = vmatprep.subr.mxu0 0.0
    %4186 = vmatpush2.msra.mxu0 0.0
    %4187 = vmatprep.subr.mxu0 0.0
    %4188 = vmatpush2.msra.mxu0 0.0
    %4189 = vmatprep.subr.mxu0 0.0
    %4190 = vmatpush2.msra.mxu0 0.0
    %4191 = vmatprep.subr.mxu0 0.0
    %4192 = vmatpush2.msra.mxu0 0.0
    %4193 = vmatprep.subr.mxu0 0.0
    %4194 = vmatpush2.msra.mxu0 0.0
    %4195 = vmatprep.subr.mxu0 0.0
    %4196 = vmatpush2.msra.mxu0 0.0
    %4197 = vmatprep.subr.mxu0 0.0
    %4198 = vmatpush2.msra.mxu0 0.0
    %4199 = vmatprep.subr.mxu0 0.0
    %4200 = vmatpush2.msra.mxu0 0.0
    %4201 = vmatprep.subr.mxu0 0.0
    %4202 = vmatpush2.msra.mxu0 0.0
    %4203 = vmatprep.subr.mxu0 0.0
    %4204 = vmatpush2.msra.mxu0 0.0
    %4205 = vmatprep.mubr.f32.mxu0 0.0
    %4206 = vmatmul.mubr.f32.gmra.mxu0 %v4136
    %v4207 = vpop.f32.mrf.mxu0
    %v4208 = vadd.f32 0.0, %v4207
    %v4209 = vpop.f32.mrf.mxu0
    %v4210 = vadd.f32 0.0, %v4209
    %4211 = vdwg.mxu0
    %4212 = vmatprep.subr.mxu0 %v2351
    %4213 = vmatpush1.msra.mxu0 %v2350
    %4214 = vmatprep.subr.mxu0 %v2347
    %4215 = vmatpush1.msra.mxu0 %v2346
    %4216 = vmatprep.subr.mxu0 %v2343
    %4217 = vmatpush1.msra.mxu0 %v2342
    %4218 = vmatprep.subr.mxu0 %v2339
    %4219 = vmatpush1.msra.mxu0 %v2338
    %4220 = vmatprep.subr.mxu0 %v2335
    %4221 = vmatpush1.msra.mxu0 %v2334
    %4222 = vmatprep.subr.mxu0 %v2331
    %4223 = vmatpush1.msra.mxu0 %v2330
    %4224 = vmatprep.subr.mxu0 %v2327
    %4225 = vmatpush1.msra.mxu0 %v2326
    %4226 = vmatprep.subr.mxu0 %v2323
    %4227 = vmatpush1.msra.mxu0 %v2322
    %4228 = vmatprep.subr.mxu0 %v2319
    %4229 = vmatpush1.msra.mxu0 %v2318
    %4230 = vmatprep.subr.mxu0 %v2315
    %4231 = vmatpush1.msra.mxu0 %v2314
    %4232 = vmatprep.subr.mxu0 %v2311
    %4233 = vmatpush1.msra.mxu0 %v2310
    %4234 = vmatprep.subr.mxu0 %v2307
    %4235 = vmatpush1.msra.mxu0 %v2306
    %4236 = vmatprep.subr.mxu0 %v2303
    %4237 = vmatpush1.msra.mxu0 %v2302
    %4238 = vmatprep.subr.mxu0 %v2299
    %4239 = vmatpush1.msra.mxu0 %v2298
    %4240 = vmatprep.subr.mxu0 %v2295
    %4241 = vmatpush1.msra.mxu0 %v2294
    %4242 = vmatprep.subr.mxu0 %v2291
    %4243 = vmatpush1.msra.mxu0 %v2290
    %4244 = vmatprep.subr.mxu0 0.0
    %4245 = vmatpush2.msra.mxu0 0.0
    %4246 = vmatprep.subr.mxu0 0.0
    %4247 = vmatpush2.msra.mxu0 0.0
    %4248 = vmatprep.subr.mxu0 0.0
    %4249 = vmatpush2.msra.mxu0 0.0
    %4250 = vmatprep.subr.mxu0 0.0
    %4251 = vmatpush2.msra.mxu0 0.0
    %4252 = vmatprep.subr.mxu0 0.0
    %4253 = vmatpush2.msra.mxu0 0.0
    %4254 = vmatprep.subr.mxu0 0.0
    %4255 = vmatpush2.msra.mxu0 0.0
    %4256 = vmatprep.subr.mxu0 0.0
    %4257 = vmatpush2.msra.mxu0 0.0
    %4258 = vmatprep.subr.mxu0 0.0
    %4259 = vmatpush2.msra.mxu0 0.0
    %4260 = vmatprep.subr.mxu0 0.0
    %4261 = vmatpush2.msra.mxu0 0.0
    %4262 = vmatprep.subr.mxu0 0.0
    %4263 = vmatpush2.msra.mxu0 0.0
    %4264 = vmatprep.subr.mxu0 0.0
    %4265 = vmatpush2.msra.mxu0 0.0
    %4266 = vmatprep.subr.mxu0 0.0
    %4267 = vmatpush2.msra.mxu0 0.0
    %4268 = vmatprep.subr.mxu0 0.0
    %4269 = vmatpush2.msra.mxu0 0.0
    %4270 = vmatprep.subr.mxu0 0.0
    %4271 = vmatpush2.msra.mxu0 0.0
    %4272 = vmatprep.subr.mxu0 0.0
    %4273 = vmatpush2.msra.mxu0 0.0
    %4274 = vmatprep.subr.mxu0 0.0
    %4275 = vmatpush2.msra.mxu0 0.0
    %4276 = vmatprep.mubr.f32.mxu0 0.0
    %4277 = vmatmul.mubr.f32.gmra.mxu0 %v4136
    %v4278 = vpop.f32.mrf.mxu0
    %v4279 = vadd.f32 0.0, %v4278
    %v4280 = vpop.f32.mrf.mxu0
    %v4281 = vadd.f32 0.0, %v4280
    %4282 = vdwg.mxu0
    %v4283 = vadd.f32 %v4137, %v4208
    %v4284 = vadd.f32 %v4138, %v4210
    %v4285 = vadd.f32 %v4139, %v4279
    %v4286 = vadd.f32 %v4140, %v4281
    %v4287 = vmul.f32 %v4283, 0.5
    %v4288 = vmul.f32 %v4284, 0.5
    %v4289 = vmul.f32 %v4285, 0.5
    %v4290 = vmul.f32 %v4286, 0.5
    %v4291 = vtanh.pop %v4287
    %v4292 = vtanh.pop %v4288
    %v4293 = vtanh.pop %v4289
    %v4294 = vtanh.pop %v4290
    %v4295 = vmul.f32 %v4291, 0.5
    %v4296 = vadd.f32 %v4295, 0.5
    %v4297 = vmul.f32 %v4292, 0.5
    %v4298 = vadd.f32 %v4297, 0.5
    %v4299 = vmul.f32 %v4293, 0.5
    %v4300 = vadd.f32 %v4299, 0.5
    %v4301 = vmul.f32 %v4298, %v4134
    %v4302 = vmul.f32 %v4296, %v4294
    %v4303 = vadd.f32 %v4301, %v4302
    %v4304 = vtanh.pop %v4303
    %v4305 = vmul.f32 %v4300, %v4304
    %v4306 = vld [vmem:[#allocation6] sm:$0xff]
    %v4307 = vld [vmem:[#allocation6 + $0x8] sm:$0xff]
    %v4308 = vld [vmem:[#allocation6 + $0x10] sm:$0xff]
    %v4309 = vld [vmem:[#allocation6 + $0x18] sm:$0xff]
    %v4310 = vld [vmem:[#allocation6 + $0x20] sm:$0xff]
    %v4311 = vld [vmem:[#allocation6 + $0x28] sm:$0xff]
    %v4312 = vld [vmem:[#allocation6 + $0x30] sm:$0xff]
    %v4313 = vld [vmem:[#allocation6 + $0x38] sm:$0xff]
    %v4314 = vld [vmem:[#allocation6 + $0x40] sm:$0xff]
    %v4315 = vld [vmem:[#allocation6 + $0x48] sm:$0xff]
    %v4316 = vld [vmem:[#allocation6 + $0x50] sm:$0xff]
    %v4317 = vld [vmem:[#allocation6 + $0x58] sm:$0xff]
    %v4318 = vld [vmem:[#allocation6 + $0x60] sm:$0xff]
    %v4319 = vld [vmem:[#allocation6 + $0x68] sm:$0xff]
    %v4320 = vld [vmem:[#allocation6 + $0x70] sm:$0xff]
    %v4321 = vld [vmem:[#allocation6 + $0x78] sm:$0xff]
    %v4322 = vld [vmem:[#allocation7] sm:$0xff]
    %v4323 = vld [vmem:[#allocation7 + $0x8] sm:$0xff]
    %v4324 = vld [vmem:[#allocation7 + $0x10] sm:$0xff]
    %v4325 = vld [vmem:[#allocation7 + $0x18] sm:$0xff]
    %v4326 = vld [vmem:[#allocation7 + $0x20] sm:$0xff]
    %v4327 = vld [vmem:[#allocation7 + $0x28] sm:$0xff]
    %v4328 = vld [vmem:[#allocation7 + $0x30] sm:$0xff]
    %v4329 = vld [vmem:[#allocation7 + $0x38] sm:$0xff]
    %v4330 = vld [vmem:[#allocation7 + $0x40] sm:$0xff]
    %v4331 = vld [vmem:[#allocation7 + $0x48] sm:$0xff]
    %v4332 = vld [vmem:[#allocation7 + $0x50] sm:$0xff]
    %v4333 = vld [vmem:[#allocation7 + $0x58] sm:$0xff]
    %v4334 = vld [vmem:[#allocation7 + $0x60] sm:$0xff]
    %v4335 = vld [vmem:[#allocation7 + $0x68] sm:$0xff]
    %v4336 = vld [vmem:[#allocation7 + $0x70] sm:$0xff]
    %v4337 = vld [vmem:[#allocation7 + $0x78] sm:$0xff]
    %4338 = vmatprep.subr.mxu0 0.0
    %4339 = vmatpush1.msra.mxu0 %v4337
    %4340 = vmatprep.subr.mxu0 0.0
    %4341 = vmatpush1.msra.mxu0 %v4336
    %4342 = vmatprep.subr.mxu0 0.0
    %4343 = vmatpush1.msra.mxu0 %v4335
    %4344 = vmatprep.subr.mxu0 0.0
    %4345 = vmatpush1.msra.mxu0 %v4334
    %4346 = vmatprep.subr.mxu0 0.0
    %4347 = vmatpush1.msra.mxu0 %v4333
    %4348 = vmatprep.subr.mxu0 0.0
    %4349 = vmatpush1.msra.mxu0 %v4332
    %4350 = vmatprep.subr.mxu0 0.0
    %4351 = vmatpush1.msra.mxu0 %v4331
    %4352 = vmatprep.subr.mxu0 0.0
    %4353 = vmatpush1.msra.mxu0 %v4330
    %4354 = vmatprep.subr.mxu0 0.0
    %4355 = vmatpush1.msra.mxu0 %v4329
    %4356 = vmatprep.subr.mxu0 0.0
    %4357 = vmatpush1.msra.mxu0 %v4328
    %4358 = vmatprep.subr.mxu0 0.0
    %4359 = vmatpush1.msra.mxu0 %v4327
    %4360 = vmatprep.subr.mxu0 0.0
    %4361 = vmatpush1.msra.mxu0 %v4326
    %4362 = vmatprep.subr.mxu0 0.0
    %4363 = vmatpush1.msra.mxu0 %v4325
    %4364 = vmatprep.subr.mxu0 0.0
    %4365 = vmatpush1.msra.mxu0 %v4324
    %4366 = vmatprep.subr.mxu0 0.0
    %4367 = vmatpush1.msra.mxu0 %v4323
    %4368 = vmatprep.subr.mxu0 0.0
    %4369 = vmatpush1.msra.mxu0 %v4322
    %4370 = vmatprep.subr.mxu0 0.0
    %4371 = vmatpush2.msra.mxu0 0.0
    %4372 = vmatprep.subr.mxu0 0.0
    %4373 = vmatpush2.msra.mxu0 0.0
    %4374 = vmatprep.subr.mxu0 0.0
    %4375 = vmatpush2.msra.mxu0 0.0
    %4376 = vmatprep.subr.mxu0 0.0
    %4377 = vmatpush2.msra.mxu0 0.0
    %4378 = vmatprep.subr.mxu0 0.0
    %4379 = vmatpush2.msra.mxu0 0.0
    %4380 = vmatprep.subr.mxu0 0.0
    %4381 = vmatpush2.msra.mxu0 0.0
    %4382 = vmatprep.subr.mxu0 0.0
    %4383 = vmatpush2.msra.mxu0 0.0
    %4384 = vmatprep.subr.mxu0 0.0
    %4385 = vmatpush2.msra.mxu0 0.0
    %4386 = vmatprep.subr.mxu0 0.0
    %4387 = vmatpush2.msra.mxu0 0.0
    %4388 = vmatprep.subr.mxu0 0.0
    %4389 = vmatpush2.msra.mxu0 0.0
    %4390 = vmatprep.subr.mxu0 0.0
    %4391 = vmatpush2.msra.mxu0 0.0
    %4392 = vmatprep.subr.mxu0 0.0
    %4393 = vmatpush2.msra.mxu0 0.0
    %4394 = vmatprep.subr.mxu0 0.0
    %4395 = vmatpush2.msra.mxu0 0.0
    %4396 = vmatprep.subr.mxu0 0.0
    %4397 = vmatpush2.msra.mxu0 0.0
    %4398 = vmatprep.subr.mxu0 0.0
    %4399 = vmatpush2.msra.mxu0 0.0
    %4400 = vmatprep.subr.mxu0 0.0
    %4401 = vmatpush2.msra.mxu0 0.0
    %4402 = vmatprep.mubr.f32.mxu0 0.0
    %4403 = vmatmul.mubr.f32.gmra.mxu0 %v4305
    %v4404 = vpop.f32.mrf.mxu0
    %v4405 = vadd.f32 0.0, %v4404
    %v4406 = vpop.f32.mrf.mxu0
    %4407 = vmatprep.mubr.f32.mxu0 0.0
    %4408 = vmatmul.mubr.f32.gmra.mxu0 %v4136
    %v4409 = vpop.f32.mrf.mxu0
    %v4410 = vadd.f32 0.0, %v4409
    %v4411 = vpop.f32.mrf.mxu0
    %4412 = vmatprep.mubr.f32.mxu0 0.0
    %4413 = vmatmul.mubr.f32.gmra.mxu0 %v3967
    %v4414 = vpop.f32.mrf.mxu0
    %v4415 = vadd.f32 0.0, %v4414
    %v4416 = vpop.f32.mrf.mxu0
    %4417 = vmatprep.mubr.f32.mxu0 0.0
    %4418 = vmatmul.mubr.f32.gmra.mxu0 %v3798
    %v4419 = vpop.f32.mrf.mxu0
    %v4420 = vadd.f32 0.0, %v4419
    %v4421 = vpop.f32.mrf.mxu0
    %4422 = vmatprep.mubr.f32.mxu0 0.0
    %4423 = vmatmul.mubr.f32.gmra.mxu0 %v3629
    %v4424 = vpop.f32.mrf.mxu0
    %v4425 = vadd.f32 0.0, %v4424
    %v4426 = vpop.f32.mrf.mxu0
    %4427 = vmatprep.mubr.f32.mxu0 0.0
    %4428 = vmatmul.mubr.f32.gmra.mxu0 %v3460
    %v4429 = vpop.f32.mrf.mxu0
    %v4430 = vadd.f32 0.0, %v4429
    %v4431 = vpop.f32.mrf.mxu0
    %4432 = vmatprep.mubr.f32.mxu0 0.0
    %4433 = vmatmul.mubr.f32.gmra.mxu0 %v3291
    %v4434 = vpop.f32.mrf.mxu0
    %v4435 = vadd.f32 0.0, %v4434
    %v4436 = vpop.f32.mrf.mxu0
    %4437 = vmatprep.mubr.f32.mxu0 0.0
    %4438 = vmatmul.mubr.f32.gmra.mxu0 %v3122
    %v4439 = vpop.f32.mrf.mxu0
    %v4440 = vadd.f32 0.0, %v4439
    %v4441 = vpop.f32.mrf.mxu0
    %4442 = vdwg.mxu0
    %4443 = vmatprep.subr.mxu0 0.0
    %4444 = vmatpush1.msra.mxu0 %v4321
    %4445 = vmatprep.subr.mxu0 0.0
    %4446 = vmatpush1.msra.mxu0 %v4320
    %4447 = vmatprep.subr.mxu0 0.0
    %4448 = vmatpush1.msra.mxu0 %v4319
    %4449 = vmatprep.subr.mxu0 0.0
    %4450 = vmatpush1.msra.mxu0 %v4318
    %4451 = vmatprep.subr.mxu0 0.0
    %4452 = vmatpush1.msra.mxu0 %v4317
    %4453 = vmatprep.subr.mxu0 0.0
    %4454 = vmatpush1.msra.mxu0 %v4316
    %4455 = vmatprep.subr.mxu0 0.0
    %4456 = vmatpush1.msra.mxu0 %v4315
    %4457 = vmatprep.subr.mxu0 0.0
    %4458 = vmatpush1.msra.mxu0 %v4314
    %4459 = vmatprep.subr.mxu0 0.0
    %4460 = vmatpush1.msra.mxu0 %v4313
    %4461 = vmatprep.subr.mxu0 0.0
    %4462 = vmatpush1.msra.mxu0 %v4312
    %4463 = vmatprep.subr.mxu0 0.0
    %4464 = vmatpush1.msra.mxu0 %v4311
    %4465 = vmatprep.subr.mxu0 0.0
    %4466 = vmatpush1.msra.mxu0 %v4310
    %4467 = vmatprep.subr.mxu0 0.0
    %4468 = vmatpush1.msra.mxu0 %v4309
    %4469 = vmatprep.subr.mxu0 0.0
    %4470 = vmatpush1.msra.mxu0 %v4308
    %4471 = vmatprep.subr.mxu0 0.0
    %4472 = vmatpush1.msra.mxu0 %v4307
    %4473 = vmatprep.subr.mxu0 0.0
    %4474 = vmatpush1.msra.mxu0 %v4306
    %4475 = vmatprep.subr.mxu0 0.0
    %4476 = vmatpush2.msra.mxu0 0.0
    %4477 = vmatprep.subr.mxu0 0.0
    %4478 = vmatpush2.msra.mxu0 0.0
    %4479 = vmatprep.subr.mxu0 0.0
    %4480 = vmatpush2.msra.mxu0 0.0
    %4481 = vmatprep.subr.mxu0 0.0
    %4482 = vmatpush2.msra.mxu0 0.0
    %4483 = vmatprep.subr.mxu0 0.0
    %4484 = vmatpush2.msra.mxu0 0.0
    %4485 = vmatprep.subr.mxu0 0.0
    %4486 = vmatpush2.msra.mxu0 0.0
    %4487 = vmatprep.subr.mxu0 0.0
    %4488 = vmatpush2.msra.mxu0 0.0
    %4489 = vmatprep.subr.mxu0 0.0
    %4490 = vmatpush2.msra.mxu0 0.0
    %4491 = vmatprep.subr.mxu0 0.0
    %4492 = vmatpush2.msra.mxu0 0.0
    %4493 = vmatprep.subr.mxu0 0.0
    %4494 = vmatpush2.msra.mxu0 0.0
    %4495 = vmatprep.subr.mxu0 0.0
    %4496 = vmatpush2.msra.mxu0 0.0
    %4497 = vmatprep.subr.mxu0 0.0
    %4498 = vmatpush2.msra.mxu0 0.0
    %4499 = vmatprep.subr.mxu0 0.0
    %4500 = vmatpush2.msra.mxu0 0.0
    %4501 = vmatprep.subr.mxu0 0.0
    %4502 = vmatpush2.msra.mxu0 0.0
    %4503 = vmatprep.subr.mxu0 0.0
    %4504 = vmatpush2.msra.mxu0 0.0
    %4505 = vmatprep.subr.mxu0 0.0
    %4506 = vmatpush2.msra.mxu0 0.0
    %4507 = vmatprep.mubr.f32.mxu0 0.0
    %4508 = vmatmul.mubr.f32.gmra.mxu0 %v3122
    %v4509 = vpop.f32.mrf.mxu0
    %v4510 = vadd.f32 %v4405, %v4509
    %v4511 = vpop.f32.mrf.mxu0
    %4512 = vmatprep.mubr.f32.mxu0 0.0
    %4513 = vmatmul.mubr.f32.gmra.mxu0 %v3291
    %v4514 = vpop.f32.mrf.mxu0
    %v4515 = vadd.f32 %v4410, %v4514
    %v4516 = vpop.f32.mrf.mxu0
    %4517 = vmatprep.mubr.f32.mxu0 0.0
    %4518 = vmatmul.mubr.f32.gmra.mxu0 %v3460
    %v4519 = vpop.f32.mrf.mxu0
    %v4520 = vadd.f32 %v4415, %v4519
    %v4521 = vpop.f32.mrf.mxu0
    %4522 = vmatprep.mubr.f32.mxu0 0.0
    %4523 = vmatmul.mubr.f32.gmra.mxu0 %v3629
    %v4524 = vpop.f32.mrf.mxu0
    %v4525 = vadd.f32 %v4420, %v4524
    %v4526 = vpop.f32.mrf.mxu0
    %4527 = vmatprep.mubr.f32.mxu0 0.0
    %4528 = vmatmul.mubr.f32.gmra.mxu0 %v3798
    %v4529 = vpop.f32.mrf.mxu0
    %v4530 = vadd.f32 %v4425, %v4529
    %v4531 = vpop.f32.mrf.mxu0
    %4532 = vmatprep.mubr.f32.mxu0 0.0
    %4533 = vmatmul.mubr.f32.gmra.mxu0 %v3967
    %v4534 = vpop.f32.mrf.mxu0
    %v4535 = vadd.f32 %v4430, %v4534
    %v4536 = vpop.f32.mrf.mxu0
    %4537 = vmatprep.mubr.f32.mxu0 0.0
    %4538 = vmatmul.mubr.f32.gmra.mxu0 %v4136
    %v4539 = vpop.f32.mrf.mxu0
    %v4540 = vadd.f32 %v4435, %v4539
    %v4541 = vpop.f32.mrf.mxu0
    %4542 = vmatprep.mubr.f32.mxu0 0.0
    %4543 = vmatmul.mubr.f32.gmra.mxu0 %v4305
    %v4544 = vpop.f32.mrf.mxu0
    %v4545 = vadd.f32 %v4440, %v4544
    %v4546 = vpop.f32.mrf.mxu0
    %4547 = vdwg.mxu0
    %v4548 = vld [vmem:[%s13] sm:$0x1]
    %v4550 = vlaneseq
    %v4551 = vshrl.u32 %v4550, 7
    %v4552 = vsub.s32 0, %v4551
    %v4553 = vrot.slane %v4548, %v4552
    %v4555 = vadd.f32 %v4510, %v4553
    %v4556 = vadd.f32 %v4515, %v4553
    %v4557 = vadd.f32 %v4520, %v4553
    %v4558 = vadd.f32 %v4525, %v4553
    %v4559 = vadd.f32 %v4530, %v4553
    %v4560 = vadd.f32 %v4535, %v4553
    %v4561 = vadd.f32 %v4540, %v4553
    %v4562 = vadd.f32 %v4545, %v4553
    %4563 = vst [vmem:[%s14] sm:$0xff] %v4555
    %4564 = vst [vmem:[%s14 + $0x8] sm:$0xff] %v4556
    %4565 = vst [vmem:[%s14 + $0x10] sm:$0xff] %v4557
    %4566 = vst [vmem:[%s14 + $0x18] sm:$0xff] %v4558
    %4567 = vst [vmem:[%s14 + $0x20] sm:$0xff] %v4559
    %4568 = vst [vmem:[%s14 + $0x28] sm:$0xff] %v4560
    %4569 = vst [vmem:[%s14 + $0x30] sm:$0xff] %v4561
    %4570 = vst [vmem:[%s14 + $0x38] sm:$0xff] %v4562
    // Predicated region
    $region74: #{crnn_forward.1} parent=1 // pred_check
      _
    $region75: #{crnn_forward.1} parent=1 // pred_check_branch
      %4572 = sbr.rel (0) target = $region77
    $region76: #{crnn_forward.1} parent=1 // pred_region
      _
    $region77: #{crnn_forward.1} parent=1 // pred_fallthru
      _
    // Predicated region
    $region78: #{crnn_forward.1} parent=1 // pred_check
      _
    $region79: #{crnn_forward.1} parent=1 // pred_check_branch
      %4574 = sbr.rel (0) target = $region81
    $region80: #{crnn_forward.1} parent=1 // pred_region
      _
    $region81: #{crnn_forward.1} parent=1 // pred_fallthru
      _
    %4575 = vsyncpa [#allocation3], 1
    %4576 = vsyncpa [#allocation5], 1
    %4577 = vsyncpa [#allocation8], 1

</llo_original>
